<compile_context>
chip_gen: v7x
topology: tpu7x:2x2x1
jax: 0.10.0
libtpu: 0.0.40
codegen_flags: <defaults>
</compile_context>

<pallas_src>
from functools import partial

import numpy as np
import jax
import jax.numpy as jnp
from jax.experimental import pallas as pl
from jax.experimental.pallas import tpu as pltpu

# ----- small, module-consistent, lane-aligned sizes -----
N_BATCH = 2          # batch
CIN     = 3          # RGB
IMG_H   = 16
IMG_W   = 16
HW      = IMG_H * IMG_W
COUT    = 128        # stem channels (stand-in for resnet50's fc in_features)
EMBED   = 128        # embed_size   (128-lane aligned)
HIDDEN  = 128        # hidden_size  (each LSTM gate = one full 128-lane vreg)
VOCAB   = 256        # vocab_size   (2 x 128 lanes -> unmasked stores)
T_CAP   = 8          # caption length
L_SEQ   = T_CAP + 1  # image feature prepended


# ---------------------------------------------------------------------------
# Fused kernel: conv-as-matmul + ReLU + GAP + cnn.fc  ->  LSTM time loop
#               (unrolled, h/c as loop carry)          ->  vocab projection.
# ---------------------------------------------------------------------------
def captioner_kernel(patches_ref, emb_ref,
                     wconv_ref, bconv_ref, wcf_ref, bcf_ref,
                     wih_ref, whh_ref, bl_ref,
                     wfc_ref, bfc_ref,
                     logits_ref):
    # ---- CNN stem: 3x3 conv as one batched matmul over all images ----
    conv = jnp.dot(patches_ref[...], wconv_ref[...],
                   preferred_element_type=jnp.float32) + bconv_ref[...]
    conv = jnp.maximum(conv, 0.0)                               # ReLU, (N*H*W, COUT)

    # Global average pool as a matmul: pool (N, N*H*W) @ conv (N*H*W, COUT).
    col = jax.lax.broadcasted_iota(jnp.int32, (N_BATCH, N_BATCH * HW), 1)
    row = jax.lax.broadcasted_iota(jnp.int32, (N_BATCH, N_BATCH * HW), 0)
    in_img = (col >= row * HW) & (col < (row + 1) * HW)
    pool = jnp.where(in_img, 1.0 / HW, 0.0)
    gap = jnp.dot(pool, conv, preferred_element_type=jnp.float32)   # (N, COUT)

    feats = jnp.dot(gap, wcf_ref[...],
                    preferred_element_type=jnp.float32) + bcf_ref[...]   # (N, E)

    # ---- weights / biases hoisted out of the time loop ----
    w_ih = wih_ref[...]                                       # (E, 4H)
    w_hh = whh_ref[...]                                       # (H, 4H)
    w_fc = wfc_ref[...]                                       # (H, VOCAB)
    b_gate = jnp.broadcast_to(bl_ref[...], (N_BATCH, 4 * HIDDEN))
    b_out = jnp.broadcast_to(bfc_ref[...], (N_BATCH, VOCAB))

    h = jnp.zeros((N_BATCH, HIDDEN), jnp.float32)
    c = jnp.zeros((N_BATCH, HIDDEN), jnp.float32)

    # ---- LSTM time loop, fully unrolled (L_SEQ static), PyTorch i,f,g,o ----
    for t in range(L_SEQ):
        x_t = feats if t == 0 else emb_ref[t - 1]             # (N, E), static idx
        gates = (jnp.dot(x_t, w_ih, preferred_element_type=jnp.float32)
                 + jnp.dot(h, w_hh, preferred_element_type=jnp.float32)
                 + b_gate)                                    # (N, 4H)
        i = jax.nn.sigmoid(gates[:, 0 * HIDDEN:1 * HIDDEN])   # vreg-aligned slices
        f = jax.nn.sigmoid(gates[:, 1 * HIDDEN:2 * HIDDEN])
        g = jnp.tanh(gates[:, 2 * HIDDEN:3 * HIDDEN])
        o = jax.nn.sigmoid(gates[:, 3 * HIDDEN:4 * HIDDEN])
        c = f * c + i * g
        h = o * jnp.tanh(c)
        # fused vocab projection, lane-dense (VOCAB = 2 x 128) store
        logits_ref[t] = (jnp.dot(h, w_fc, preferred_element_type=jnp.float32)
                         + b_out)


# ---------------------------------------------------------------------------
# Wrappers (pallas_call plumbing + glue)
# ---------------------------------------------------------------------------
def captioner_forward(patches, emb_tm, params):
    vmem = lambda: pl.BlockSpec(memory_space=pltpu.MemorySpace.VMEM)
    return pl.pallas_call(
        captioner_kernel,
        out_shape=jax.ShapeDtypeStruct((L_SEQ, N_BATCH, VOCAB), jnp.float32),
        in_specs=[vmem() for _ in range(11)],
        out_specs=vmem(),
    )(patches, emb_tm,
      params["wconv"].reshape(9 * CIN, COUT),
      params["bconv"].reshape(1, COUT),
      params["wcnn_fc"],
      params["bcnn_fc"].reshape(1, EMBED),
      params["w_ih"],
      params["w_hh"],
      params["b_lstm"].reshape(1, 4 * HIDDEN),
      params["w_fc"],
      params["b_fc"].reshape(1, VOCAB))


def packed_indices(lengths):
    """pack_padded_sequence(batch_first=True) packed-data ordering (time-major)."""
    t_idx, b_idx = [], []
    max_len = max(lengths)
    for t in range(max_len):
        for b, ln in enumerate(lengths):
            if ln > t:
                t_idx.append(t)
                b_idx.append(b)
    return np.array(t_idx, np.int32), np.array(b_idx, np.int32)


@partial(jax.jit, static_argnums=(3,))
def forward(params, images, captions, lengths):
    # images: (N, C, H, W) float32 (PyTorch NCHW), captions: (N, T) int32,
    # lengths: tuple sorted descending (as pack_padded_sequence requires).
    n, c, h, w = images.shape
    x = jnp.transpose(images, (0, 2, 3, 1))                     # NCHW -> NHWC
    xp = jnp.pad(x, ((0, 0), (1, 1), (1, 1), (0, 0)))
    patches = jnp.stack(
        [xp[:, kh:kh + h, kw:kw + w, :] for kh in range(3) for kw in range(3)],
        axis=3)                                                 # (N, H, W, 9, C)
    patches = patches.reshape(n * h * w, 9 * c)                 # im2col (glue)

    emb = params["emb"][captions]                               # (N, T, E) embedding gather (glue)
    emb_tm = jnp.transpose(emb, (1, 0, 2))                      # (T, N, E) time-major

    logits_all = captioner_forward(patches, emb_tm, params)     # (L, N, VOCAB)

    t_idx, b_idx = packed_indices(lengths)                      # pack order (glue, static)
    return logits_all[t_idx, b_idx]                             # (sum(lengths), VOCAB)


# ---------------------------------------------------------------------------
# Deterministic parameter init
# ---------------------------------------------------------------------------
def init_params(key):
    ks = jax.random.split(key, 10)
    s = 0.1
    return {
        "wconv":   jax.random.normal(ks[0], (3, 3, CIN, COUT), jnp.float32) * s,
        "bconv":   jax.random.normal(ks[1], (COUT,), jnp.float32) * s,
        "wcnn_fc": jax.random.normal(ks[2], (COUT, EMBED), jnp.float32) * s,   # replaced cnn.fc
        "bcnn_fc": jax.random.normal(ks[3], (EMBED,), jnp.float32) * s,
        "emb":     jax.random.normal(ks[4], (VOCAB, EMBED), jnp.float32) * s,
        "w_ih":    jax.random.normal(ks[5], (EMBED, 4 * HIDDEN), jnp.float32) * s,
        "w_hh":    jax.random.normal(ks[6], (HIDDEN, 4 * HIDDEN), jnp.float32) * s,
        "b_lstm":  jax.random.normal(ks[7], (4 * HIDDEN,), jnp.float32) * s,   # b_ih + b_hh
        "w_fc":    jax.random.normal(ks[8], (HIDDEN, VOCAB), jnp.float32) * s,
        "b_fc":    jax.random.normal(ks[9], (VOCAB,), jnp.float32) * s,
    }


if __name__ == "__main__":
    key = jax.random.PRNGKey(0)
    pkey, ikey, ckey = jax.random.split(key, 3)

    params = init_params(pkey)
    images = jax.random.normal(ikey, (N_BATCH, CIN, IMG_H, IMG_W), jnp.float32)
    captions = jax.random.randint(ckey, (N_BATCH, T_CAP), 0, VOCAB, jnp.int32)
    lengths = (9, 7)   # sorted descending, each <= L_SEQ

    logits = forward(params, images, captions, lengths)
    logits = jax.block_until_ready(logits)

    assert logits.shape == (sum(lengths), VOCAB), logits.shape
    assert bool(jnp.all(jnp.isfinite(logits)))
    print("KERNEL_OK")
</pallas_src>

<mosaic_0001>
module attributes {stable_mosaic.version = 11 : i64} {
  func.func @captioner_kernel(%arg0: memref<512x27xf32, #tpu.memory_space<vmem>>, %arg1: memref<8x2x128xf32, #tpu.memory_space<vmem>>, %arg2: memref<27x128xf32, #tpu.memory_space<vmem>>, %arg3: memref<1x128xf32, #tpu.memory_space<vmem>>, %arg4: memref<128x128xf32, #tpu.memory_space<vmem>>, %arg5: memref<1x128xf32, #tpu.memory_space<vmem>>, %arg6: memref<128x512xf32, #tpu.memory_space<vmem>>, %arg7: memref<128x512xf32, #tpu.memory_space<vmem>>, %arg8: memref<1x512xf32, #tpu.memory_space<vmem>>, %arg9: memref<128x256xf32, #tpu.memory_space<vmem>>, %arg10: memref<1x256xf32, #tpu.memory_space<vmem>>, %arg11: memref<9x2x256xf32, #tpu.memory_space<vmem>>) attributes {dimension_semantics = [], scalar_prefetch = 0 : i64, scratch_operands = 0 : i64, tpu.core_type = #tpu.core_type<tc>} {
    %c0 = arith.constant 0 : index
    %c0_0 = arith.constant 0 : index
    %0 = vector.load %arg0[%c0, %c0_0] : memref<512x27xf32, #tpu.memory_space<vmem>>, vector<512x27xf32>
    %c0_1 = arith.constant 0 : index
    %c0_2 = arith.constant 0 : index
    %1 = vector.load %arg2[%c0_1, %c0_2] : memref<27x128xf32, #tpu.memory_space<vmem>>, vector<27x128xf32>
    %cst = arith.constant dense<0.000000e+00> : vector<512x128xf32>
    %2 = tpu.matmul %0, %1, %cst {dimension_numbers = #tpu.dot_dimension_numbers<[1], [0], [0], [1], [0, 0, 1, 1], [], []>} : vector<512x27xf32>, vector<27x128xf32>, vector<512x128xf32> -> vector<512x128xf32>
    %c0_3 = arith.constant 0 : index
    %c0_4 = arith.constant 0 : index
    %3 = vector.load %arg3[%c0_3, %c0_4] : memref<1x128xf32, #tpu.memory_space<vmem>>, vector<1x128xf32>
    %4 = vector.broadcast %3 : vector<1x128xf32> to vector<512x128xf32>
    %5 = arith.addf %2, %4 : vector<512x128xf32>
    %cst_5 = arith.constant 0.000000e+00 : f32
    %6 = vector.broadcast %cst_5 : f32 to vector<512x128xf32>
    %7 = arith.maximumf %5, %6 : vector<512x128xf32>
    %8 = tpu.iota {dimensions = array<i32: 1>} : vector<2x512xi32>
    %9 = tpu.iota {dimensions = array<i32: 0>} : vector<2x512xi32>
    %c256_i32 = arith.constant 256 : i32
    %10 = vector.broadcast %c256_i32 : i32 to vector<2x512xi32>
    %11 = arith.muli %9, %10 : vector<2x512xi32>
    %12 = arith.cmpi sge, %8, %11 : vector<2x512xi32>
    %c1_i32 = arith.constant 1 : i32
    %13 = vector.broadcast %c1_i32 : i32 to vector<2x512xi32>
    %14 = arith.addi %9, %13 : vector<2x512xi32>
    %c256_i32_6 = arith.constant 256 : i32
    %15 = vector.broadcast %c256_i32_6 : i32 to vector<2x512xi32>
    %16 = arith.muli %14, %15 : vector<2x512xi32>
    %17 = arith.cmpi slt, %8, %16 : vector<2x512xi32>
    %18 = arith.andi %12, %17 : vector<2x512xi1>
    %cst_7 = arith.constant 3.906250e-03 : f32
    %cst_8 = arith.constant 0.000000e+00 : f32
    %19 = vector.broadcast %cst_7 : f32 to vector<2x512xf32>
    %20 = vector.broadcast %cst_8 : f32 to vector<2x512xf32>
    %21 = arith.select %18, %19, %20 : vector<2x512xi1>, vector<2x512xf32>
    %cst_9 = arith.constant dense<0.000000e+00> : vector<2x128xf32>
    %22 = tpu.matmul %21, %7, %cst_9 {dimension_numbers = #tpu.dot_dimension_numbers<[1], [0], [0], [1], [0, 0, 1, 1], [], []>} : vector<2x512xf32>, vector<512x128xf32>, vector<2x128xf32> -> vector<2x128xf32>
    %c0_10 = arith.constant 0 : index
    %c0_11 = arith.constant 0 : index
    %23 = vector.load %arg4[%c0_10, %c0_11] : memref<128x128xf32, #tpu.memory_space<vmem>>, vector<128x128xf32>
    %cst_12 = arith.constant dense<0.000000e+00> : vector<2x128xf32>
    %24 = tpu.matmul %22, %23, %cst_12 {dimension_numbers = #tpu.dot_dimension_numbers<[1], [0], [0], [1], [0, 0, 1, 1], [], []>} : vector<2x128xf32>, vector<128x128xf32>, vector<2x128xf32> -> vector<2x128xf32>
    %c0_13 = arith.constant 0 : index
    %c0_14 = arith.constant 0 : index
    %25 = vector.load %arg5[%c0_13, %c0_14] : memref<1x128xf32, #tpu.memory_space<vmem>>, vector<1x128xf32>
    %26 = vector.broadcast %25 : vector<1x128xf32> to vector<2x128xf32>
    %27 = arith.addf %24, %26 : vector<2x128xf32>
    %c0_15 = arith.constant 0 : index
    %c0_16 = arith.constant 0 : index
    %28 = vector.load %arg6[%c0_15, %c0_16] : memref<128x512xf32, #tpu.memory_space<vmem>>, vector<128x512xf32>
    %c0_17 = arith.constant 0 : index
    %c0_18 = arith.constant 0 : index
    %29 = vector.load %arg7[%c0_17, %c0_18] : memref<128x512xf32, #tpu.memory_space<vmem>>, vector<128x512xf32>
    %c0_19 = arith.constant 0 : index
    %c0_20 = arith.constant 0 : index
    %30 = vector.load %arg9[%c0_19, %c0_20] : memref<128x256xf32, #tpu.memory_space<vmem>>, vector<128x256xf32>
    %c0_21 = arith.constant 0 : index
    %c0_22 = arith.constant 0 : index
    %31 = vector.load %arg8[%c0_21, %c0_22] : memref<1x512xf32, #tpu.memory_space<vmem>>, vector<1x512xf32>
    %32 = vector.shape_cast %31 : vector<1x512xf32> to vector<1x512xf32>
    %33 = vector.broadcast %32 : vector<1x512xf32> to vector<2x512xf32>
    %c0_23 = arith.constant 0 : index
    %c0_24 = arith.constant 0 : index
    %34 = vector.load %arg10[%c0_23, %c0_24] : memref<1x256xf32, #tpu.memory_space<vmem>>, vector<1x256xf32>
    %35 = vector.shape_cast %34 : vector<1x256xf32> to vector<1x256xf32>
    %36 = vector.broadcast %35 : vector<1x256xf32> to vector<2x256xf32>
    %cst_25 = arith.constant 0.000000e+00 : f32
    %37 = vector.broadcast %cst_25 : f32 to vector<2x128xf32>
    %cst_26 = arith.constant 0.000000e+00 : f32
    %38 = vector.broadcast %cst_26 : f32 to vector<2x128xf32>
    %cst_27 = arith.constant dense<0.000000e+00> : vector<2x512xf32>
    %39 = tpu.matmul %27, %28, %cst_27 {dimension_numbers = #tpu.dot_dimension_numbers<[1], [0], [0], [1], [0, 0, 1, 1], [], []>} : vector<2x128xf32>, vector<128x512xf32>, vector<2x512xf32> -> vector<2x512xf32>
    %cst_28 = arith.constant dense<0.000000e+00> : vector<2x512xf32>
    %40 = tpu.matmul %37, %29, %cst_28 {dimension_numbers = #tpu.dot_dimension_numbers<[1], [0], [0], [1], [0, 0, 1, 1], [], []>} : vector<2x128xf32>, vector<128x512xf32>, vector<2x512xf32> -> vector<2x512xf32>
    %41 = arith.addf %39, %40 : vector<2x512xf32>
    %42 = arith.addf %41, %33 : vector<2x512xf32>
    %43 = vector.extract_strided_slice %42 {offsets = [0, 0], sizes = [2, 128], strides = [1, 1]} : vector<2x512xf32> to vector<2x128xf32>
    %44 = arith.negf %43 : vector<2x128xf32>
    %45 = math.exp %44 : vector<2x128xf32>
    %cst_29 = arith.constant 1.000000e+00 : f32
    %46 = vector.broadcast %cst_29 : f32 to vector<2x128xf32>
    %47 = arith.addf %46, %45 : vector<2x128xf32>
    %48 = arith.divf %46, %47 : vector<2x128xf32>
    %49 = vector.extract_strided_slice %42 {offsets = [0, 128], sizes = [2, 128], strides = [1, 1]} : vector<2x512xf32> to vector<2x128xf32>
    %50 = arith.negf %49 : vector<2x128xf32>
    %51 = math.exp %50 : vector<2x128xf32>
    %cst_30 = arith.constant 1.000000e+00 : f32
    %52 = vector.broadcast %cst_30 : f32 to vector<2x128xf32>
    %53 = arith.addf %52, %51 : vector<2x128xf32>
    %54 = arith.divf %52, %53 : vector<2x128xf32>
    %55 = vector.extract_strided_slice %42 {offsets = [0, 256], sizes = [2, 128], strides = [1, 1]} : vector<2x512xf32> to vector<2x128xf32>
    %56 = math.tanh %55 : vector<2x128xf32>
    %57 = vector.extract_strided_slice %42 {offsets = [0, 384], sizes = [2, 128], strides = [1, 1]} : vector<2x512xf32> to vector<2x128xf32>
    %58 = arith.negf %57 : vector<2x128xf32>
    %59 = math.exp %58 : vector<2x128xf32>
    %cst_31 = arith.constant 1.000000e+00 : f32
    %60 = vector.broadcast %cst_31 : f32 to vector<2x128xf32>
    %61 = arith.addf %60, %59 : vector<2x128xf32>
    %62 = arith.divf %60, %61 : vector<2x128xf32>
    %63 = arith.mulf %54, %38 : vector<2x128xf32>
    %64 = arith.mulf %48, %56 : vector<2x128xf32>
    %65 = arith.addf %63, %64 : vector<2x128xf32>
    %66 = math.tanh %65 : vector<2x128xf32>
    %67 = arith.mulf %62, %66 : vector<2x128xf32>
    %cst_32 = arith.constant dense<0.000000e+00> : vector<2x256xf32>
    %68 = tpu.matmul %67, %30, %cst_32 {dimension_numbers = #tpu.dot_dimension_numbers<[1], [0], [0], [1], [0, 0, 1, 1], [], []>} : vector<2x128xf32>, vector<128x256xf32>, vector<2x256xf32> -> vector<2x256xf32>
    %69 = arith.addf %68, %36 : vector<2x256xf32>
    %c0_33 = arith.constant 0 : index
    %c0_34 = arith.constant 0 : index
    %c0_35 = arith.constant 0 : index
    %70 = vector.load %arg11[%c0_33, %c0_34, %c0_35] : memref<9x2x256xf32, #tpu.memory_space<vmem>>, vector<1x2x256xf32>
    %71 = vector.shape_cast %70 : vector<1x2x256xf32> to vector<2x256xf32>
    %72 = vector.shape_cast %69 : vector<2x256xf32> to vector<1x2x256xf32>
    tpu.vector_store %arg11[%c0_33, %c0_34, %c0_35], %72 {strides = array<i32>} : memref<9x2x256xf32, #tpu.memory_space<vmem>>, vector<1x2x256xf32>,
    %c0_36 = arith.constant 0 : index
    %c0_37 = arith.constant 0 : index
    %c0_38 = arith.constant 0 : index
    %73 = vector.load %arg1[%c0_36, %c0_37, %c0_38] : memref<8x2x128xf32, #tpu.memory_space<vmem>>, vector<1x2x128xf32>
    %74 = vector.shape_cast %73 : vector<1x2x128xf32> to vector<2x128xf32>
    %cst_39 = arith.constant dense<0.000000e+00> : vector<2x512xf32>
    %75 = tpu.matmul %74, %28, %cst_39 {dimension_numbers = #tpu.dot_dimension_numbers<[1], [0], [0], [1], [0, 0, 1, 1], [], []>} : vector<2x128xf32>, vector<128x512xf32>, vector<2x512xf32> -> vector<2x512xf32>
    %cst_40 = arith.constant dense<0.000000e+00> : vector<2x512xf32>
    %76 = tpu.matmul %67, %29, %cst_40 {dimension_numbers = #tpu.dot_dimension_numbers<[1], [0], [0], [1], [0, 0, 1, 1], [], []>} : vector<2x128xf32>, vector<128x512xf32>, vector<2x512xf32> -> vector<2x512xf32>
    %77 = arith.addf %75, %76 : vector<2x512xf32>
    %78 = arith.addf %77, %33 : vector<2x512xf32>
    %79 = vector.extract_strided_slice %78 {offsets = [0, 0], sizes = [2, 128], strides = [1, 1]} : vector<2x512xf32> to vector<2x128xf32>
    %80 = arith.negf %79 : vector<2x128xf32>
    %81 = math.exp %80 : vector<2x128xf32>
    %cst_41 = arith.constant 1.000000e+00 : f32
    %82 = vector.broadcast %cst_41 : f32 to vector<2x128xf32>
    %83 = arith.addf %82, %81 : vector<2x128xf32>
    %84 = arith.divf %82, %83 : vector<2x128xf32>
    %85 = vector.extract_strided_slice %78 {offsets = [0, 128], sizes = [2, 128], strides = [1, 1]} : vector<2x512xf32> to vector<2x128xf32>
    %86 = arith.negf %85 : vector<2x128xf32>
    %87 = math.exp %86 : vector<2x128xf32>
    %cst_42 = arith.constant 1.000000e+00 : f32
    %88 = vector.broadcast %cst_42 : f32 to vector<2x128xf32>
    %89 = arith.addf %88, %87 : vector<2x128xf32>
    %90 = arith.divf %88, %89 : vector<2x128xf32>
    %91 = vector.extract_strided_slice %78 {offsets = [0, 256], sizes = [2, 128], strides = [1, 1]} : vector<2x512xf32> to vector<2x128xf32>
    %92 = math.tanh %91 : vector<2x128xf32>
    %93 = vector.extract_strided_slice %78 {offsets = [0, 384], sizes = [2, 128], strides = [1, 1]} : vector<2x512xf32> to vector<2x128xf32>
    %94 = arith.negf %93 : vector<2x128xf32>
    %95 = math.exp %94 : vector<2x128xf32>
    %cst_43 = arith.constant 1.000000e+00 : f32
    %96 = vector.broadcast %cst_43 : f32 to vector<2x128xf32>
    %97 = arith.addf %96, %95 : vector<2x128xf32>
    %98 = arith.divf %96, %97 : vector<2x128xf32>
    %99 = arith.mulf %90, %65 : vector<2x128xf32>
    %100 = arith.mulf %84, %92 : vector<2x128xf32>
    %101 = arith.addf %99, %100 : vector<2x128xf32>
    %102 = math.tanh %101 : vector<2x128xf32>
    %103 = arith.mulf %98, %102 : vector<2x128xf32>
    %cst_44 = arith.constant dense<0.000000e+00> : vector<2x256xf32>
    %104 = tpu.matmul %103, %30, %cst_44 {dimension_numbers = #tpu.dot_dimension_numbers<[1], [0], [0], [1], [0, 0, 1, 1], [], []>} : vector<2x128xf32>, vector<128x256xf32>, vector<2x256xf32> -> vector<2x256xf32>
    %105 = arith.addf %104, %36 : vector<2x256xf32>
    %c1 = arith.constant 1 : index
    %c0_45 = arith.constant 0 : index
    %c0_46 = arith.constant 0 : index
    %106 = vector.load %arg11[%c1, %c0_45, %c0_46] : memref<9x2x256xf32, #tpu.memory_space<vmem>>, vector<1x2x256xf32>
    %107 = vector.shape_cast %106 : vector<1x2x256xf32> to vector<2x256xf32>
    %108 = vector.shape_cast %105 : vector<2x256xf32> to vector<1x2x256xf32>
    tpu.vector_store %arg11[%c1, %c0_45, %c0_46], %108 {strides = array<i32>} : memref<9x2x256xf32, #tpu.memory_space<vmem>>, vector<1x2x256xf32>,
    %c1_47 = arith.constant 1 : index
    %c0_48 = arith.constant 0 : index
    %c0_49 = arith.constant 0 : index
    %109 = vector.load %arg1[%c1_47, %c0_48, %c0_49] : memref<8x2x128xf32, #tpu.memory_space<vmem>>, vector<1x2x128xf32>
    %110 = vector.shape_cast %109 : vector<1x2x128xf32> to vector<2x128xf32>
    %cst_50 = arith.constant dense<0.000000e+00> : vector<2x512xf32>
    %111 = tpu.matmul %110, %28, %cst_50 {dimension_numbers = #tpu.dot_dimension_numbers<[1], [0], [0], [1], [0, 0, 1, 1], [], []>} : vector<2x128xf32>, vector<128x512xf32>, vector<2x512xf32> -> vector<2x512xf32>
    %cst_51 = arith.constant dense<0.000000e+00> : vector<2x512xf32>
    %112 = tpu.matmul %103, %29, %cst_51 {dimension_numbers = #tpu.dot_dimension_numbers<[1], [0], [0], [1], [0, 0, 1, 1], [], []>} : vector<2x128xf32>, vector<128x512xf32>, vector<2x512xf32> -> vector<2x512xf32>
    %113 = arith.addf %111, %112 : vector<2x512xf32>
    %114 = arith.addf %113, %33 : vector<2x512xf32>
    %115 = vector.extract_strided_slice %114 {offsets = [0, 0], sizes = [2, 128], strides = [1, 1]} : vector<2x512xf32> to vector<2x128xf32>
    %116 = arith.negf %115 : vector<2x128xf32>
    %117 = math.exp %116 : vector<2x128xf32>
    %cst_52 = arith.constant 1.000000e+00 : f32
    %118 = vector.broadcast %cst_52 : f32 to vector<2x128xf32>
    %119 = arith.addf %118, %117 : vector<2x128xf32>
    %120 = arith.divf %118, %119 : vector<2x128xf32>
    %121 = vector.extract_strided_slice %114 {offsets = [0, 128], sizes = [2, 128], strides = [1, 1]} : vector<2x512xf32> to vector<2x128xf32>
    %122 = arith.negf %121 : vector<2x128xf32>
    %123 = math.exp %122 : vector<2x128xf32>
    %cst_53 = arith.constant 1.000000e+00 : f32
    %124 = vector.broadcast %cst_53 : f32 to vector<2x128xf32>
    %125 = arith.addf %124, %123 : vector<2x128xf32>
    %126 = arith.divf %124, %125 : vector<2x128xf32>
    %127 = vector.extract_strided_slice %114 {offsets = [0, 256], sizes = [2, 128], strides = [1, 1]} : vector<2x512xf32> to vector<2x128xf32>
    %128 = math.tanh %127 : vector<2x128xf32>
    %129 = vector.extract_strided_slice %114 {offsets = [0, 384], sizes = [2, 128], strides = [1, 1]} : vector<2x512xf32> to vector<2x128xf32>
    %130 = arith.negf %129 : vector<2x128xf32>
    %131 = math.exp %130 : vector<2x128xf32>
    %cst_54 = arith.constant 1.000000e+00 : f32
    %132 = vector.broadcast %cst_54 : f32 to vector<2x128xf32>
    %133 = arith.addf %132, %131 : vector<2x128xf32>
    %134 = arith.divf %132, %133 : vector<2x128xf32>
    %135 = arith.mulf %126, %101 : vector<2x128xf32>
    %136 = arith.mulf %120, %128 : vector<2x128xf32>
    %137 = arith.addf %135, %136 : vector<2x128xf32>
    %138 = math.tanh %137 : vector<2x128xf32>
    %139 = arith.mulf %134, %138 : vector<2x128xf32>
    %cst_55 = arith.constant dense<0.000000e+00> : vector<2x256xf32>
    %140 = tpu.matmul %139, %30, %cst_55 {dimension_numbers = #tpu.dot_dimension_numbers<[1], [0], [0], [1], [0, 0, 1, 1], [], []>} : vector<2x128xf32>, vector<128x256xf32>, vector<2x256xf32> -> vector<2x256xf32>
    %141 = arith.addf %140, %36 : vector<2x256xf32>
    %c2 = arith.constant 2 : index
    %c0_56 = arith.constant 0 : index
    %c0_57 = arith.constant 0 : index
    %142 = vector.load %arg11[%c2, %c0_56, %c0_57] : memref<9x2x256xf32, #tpu.memory_space<vmem>>, vector<1x2x256xf32>
    %143 = vector.shape_cast %142 : vector<1x2x256xf32> to vector<2x256xf32>
    %144 = vector.shape_cast %141 : vector<2x256xf32> to vector<1x2x256xf32>
    tpu.vector_store %arg11[%c2, %c0_56, %c0_57], %144 {strides = array<i32>} : memref<9x2x256xf32, #tpu.memory_space<vmem>>, vector<1x2x256xf32>,
    %c2_58 = arith.constant 2 : index
    %c0_59 = arith.constant 0 : index
    %c0_60 = arith.constant 0 : index
    %145 = vector.load %arg1[%c2_58, %c0_59, %c0_60] : memref<8x2x128xf32, #tpu.memory_space<vmem>>, vector<1x2x128xf32>
    %146 = vector.shape_cast %145 : vector<1x2x128xf32> to vector<2x128xf32>
    %cst_61 = arith.constant dense<0.000000e+00> : vector<2x512xf32>
    %147 = tpu.matmul %146, %28, %cst_61 {dimension_numbers = #tpu.dot_dimension_numbers<[1], [0], [0], [1], [0, 0, 1, 1], [], []>} : vector<2x128xf32>, vector<128x512xf32>, vector<2x512xf32> -> vector<2x512xf32>
    %cst_62 = arith.constant dense<0.000000e+00> : vector<2x512xf32>
    %148 = tpu.matmul %139, %29, %cst_62 {dimension_numbers = #tpu.dot_dimension_numbers<[1], [0], [0], [1], [0, 0, 1, 1], [], []>} : vector<2x128xf32>, vector<128x512xf32>, vector<2x512xf32> -> vector<2x512xf32>
    %149 = arith.addf %147, %148 : vector<2x512xf32>
    %150 = arith.addf %149, %33 : vector<2x512xf32>
    %151 = vector.extract_strided_slice %150 {offsets = [0, 0], sizes = [2, 128], strides = [1, 1]} : vector<2x512xf32> to vector<2x128xf32>
    %152 = arith.negf %151 : vector<2x128xf32>
    %153 = math.exp %152 : vector<2x128xf32>
    %cst_63 = arith.constant 1.000000e+00 : f32
    %154 = vector.broadcast %cst_63 : f32 to vector<2x128xf32>
    %155 = arith.addf %154, %153 : vector<2x128xf32>
    %156 = arith.divf %154, %155 : vector<2x128xf32>
    %157 = vector.extract_strided_slice %150 {offsets = [0, 128], sizes = [2, 128], strides = [1, 1]} : vector<2x512xf32> to vector<2x128xf32>
    %158 = arith.negf %157 : vector<2x128xf32>
    %159 = math.exp %158 : vector<2x128xf32>
    %cst_64 = arith.constant 1.000000e+00 : f32
    %160 = vector.broadcast %cst_64 : f32 to vector<2x128xf32>
    %161 = arith.addf %160, %159 : vector<2x128xf32>
    %162 = arith.divf %160, %161 : vector<2x128xf32>
    %163 = vector.extract_strided_slice %150 {offsets = [0, 256], sizes = [2, 128], strides = [1, 1]} : vector<2x512xf32> to vector<2x128xf32>
    %164 = math.tanh %163 : vector<2x128xf32>
    %165 = vector.extract_strided_slice %150 {offsets = [0, 384], sizes = [2, 128], strides = [1, 1]} : vector<2x512xf32> to vector<2x128xf32>
    %166 = arith.negf %165 : vector<2x128xf32>
    %167 = math.exp %166 : vector<2x128xf32>
    %cst_65 = arith.constant 1.000000e+00 : f32
    %168 = vector.broadcast %cst_65 : f32 to vector<2x128xf32>
    %169 = arith.addf %168, %167 : vector<2x128xf32>
    %170 = arith.divf %168, %169 : vector<2x128xf32>
    %171 = arith.mulf %162, %137 : vector<2x128xf32>
    %172 = arith.mulf %156, %164 : vector<2x128xf32>
    %173 = arith.addf %171, %172 : vector<2x128xf32>
    %174 = math.tanh %173 : vector<2x128xf32>
    %175 = arith.mulf %170, %174 : vector<2x128xf32>
    %cst_66 = arith.constant dense<0.000000e+00> : vector<2x256xf32>
    %176 = tpu.matmul %175, %30, %cst_66 {dimension_numbers = #tpu.dot_dimension_numbers<[1], [0], [0], [1], [0, 0, 1, 1], [], []>} : vector<2x128xf32>, vector<128x256xf32>, vector<2x256xf32> -> vector<2x256xf32>
    %177 = arith.addf %176, %36 : vector<2x256xf32>
    %c3 = arith.constant 3 : index
    %c0_67 = arith.constant 0 : index
    %c0_68 = arith.constant 0 : index
    %178 = vector.load %arg11[%c3, %c0_67, %c0_68] : memref<9x2x256xf32, #tpu.memory_space<vmem>>, vector<1x2x256xf32>
    %179 = vector.shape_cast %178 : vector<1x2x256xf32> to vector<2x256xf32>
    %180 = vector.shape_cast %177 : vector<2x256xf32> to vector<1x2x256xf32>
    tpu.vector_store %arg11[%c3, %c0_67, %c0_68], %180 {strides = array<i32>} : memref<9x2x256xf32, #tpu.memory_space<vmem>>, vector<1x2x256xf32>,
    %c3_69 = arith.constant 3 : index
    %c0_70 = arith.constant 0 : index
    %c0_71 = arith.constant 0 : index
    %181 = vector.load %arg1[%c3_69, %c0_70, %c0_71] : memref<8x2x128xf32, #tpu.memory_space<vmem>>, vector<1x2x128xf32>
    %182 = vector.shape_cast %181 : vector<1x2x128xf32> to vector<2x128xf32>
    %cst_72 = arith.constant dense<0.000000e+00> : vector<2x512xf32>
    %183 = tpu.matmul %182, %28, %cst_72 {dimension_numbers = #tpu.dot_dimension_numbers<[1], [0], [0], [1], [0, 0, 1, 1], [], []>} : vector<2x128xf32>, vector<128x512xf32>, vector<2x512xf32> -> vector<2x512xf32>
    %cst_73 = arith.constant dense<0.000000e+00> : vector<2x512xf32>
    %184 = tpu.matmul %175, %29, %cst_73 {dimension_numbers = #tpu.dot_dimension_numbers<[1], [0], [0], [1], [0, 0, 1, 1], [], []>} : vector<2x128xf32>, vector<128x512xf32>, vector<2x512xf32> -> vector<2x512xf32>
    %185 = arith.addf %183, %184 : vector<2x512xf32>
    %186 = arith.addf %185, %33 : vector<2x512xf32>
    %187 = vector.extract_strided_slice %186 {offsets = [0, 0], sizes = [2, 128], strides = [1, 1]} : vector<2x512xf32> to vector<2x128xf32>
    %188 = arith.negf %187 : vector<2x128xf32>
    %189 = math.exp %188 : vector<2x128xf32>
    %cst_74 = arith.constant 1.000000e+00 : f32
    %190 = vector.broadcast %cst_74 : f32 to vector<2x128xf32>
    %191 = arith.addf %190, %189 : vector<2x128xf32>
    %192 = arith.divf %190, %191 : vector<2x128xf32>
    %193 = vector.extract_strided_slice %186 {offsets = [0, 128], sizes = [2, 128], strides = [1, 1]} : vector<2x512xf32> to vector<2x128xf32>
    %194 = arith.negf %193 : vector<2x128xf32>
    %195 = math.exp %194 : vector<2x128xf32>
    %cst_75 = arith.constant 1.000000e+00 : f32
    %196 = vector.broadcast %cst_75 : f32 to vector<2x128xf32>
    %197 = arith.addf %196, %195 : vector<2x128xf32>
    %198 = arith.divf %196, %197 : vector<2x128xf32>
    %199 = vector.extract_strided_slice %186 {offsets = [0, 256], sizes = [2, 128], strides = [1, 1]} : vector<2x512xf32> to vector<2x128xf32>
    %200 = math.tanh %199 : vector<2x128xf32>
    %201 = vector.extract_strided_slice %186 {offsets = [0, 384], sizes = [2, 128], strides = [1, 1]} : vector<2x512xf32> to vector<2x128xf32>
    %202 = arith.negf %201 : vector<2x128xf32>
    %203 = math.exp %202 : vector<2x128xf32>
    %cst_76 = arith.constant 1.000000e+00 : f32
    %204 = vector.broadcast %cst_76 : f32 to vector<2x128xf32>
    %205 = arith.addf %204, %203 : vector<2x128xf32>
    %206 = arith.divf %204, %205 : vector<2x128xf32>
    %207 = arith.mulf %198, %173 : vector<2x128xf32>
    %208 = arith.mulf %192, %200 : vector<2x128xf32>
    %209 = arith.addf %207, %208 : vector<2x128xf32>
    %210 = math.tanh %209 : vector<2x128xf32>
    %211 = arith.mulf %206, %210 : vector<2x128xf32>
    %cst_77 = arith.constant dense<0.000000e+00> : vector<2x256xf32>
    %212 = tpu.matmul %211, %30, %cst_77 {dimension_numbers = #tpu.dot_dimension_numbers<[1], [0], [0], [1], [0, 0, 1, 1], [], []>} : vector<2x128xf32>, vector<128x256xf32>, vector<2x256xf32> -> vector<2x256xf32>
    %213 = arith.addf %212, %36 : vector<2x256xf32>
    %c4 = arith.constant 4 : index
    %c0_78 = arith.constant 0 : index
    %c0_79 = arith.constant 0 : index
    %214 = vector.load %arg11[%c4, %c0_78, %c0_79] : memref<9x2x256xf32, #tpu.memory_space<vmem>>, vector<1x2x256xf32>
    %215 = vector.shape_cast %214 : vector<1x2x256xf32> to vector<2x256xf32>
    %216 = vector.shape_cast %213 : vector<2x256xf32> to vector<1x2x256xf32>
    tpu.vector_store %arg11[%c4, %c0_78, %c0_79], %216 {strides = array<i32>} : memref<9x2x256xf32, #tpu.memory_space<vmem>>, vector<1x2x256xf32>,
    %c4_80 = arith.constant 4 : index
    %c0_81 = arith.constant 0 : index
    %c0_82 = arith.constant 0 : index
    %217 = vector.load %arg1[%c4_80, %c0_81, %c0_82] : memref<8x2x128xf32, #tpu.memory_space<vmem>>, vector<1x2x128xf32>
    %218 = vector.shape_cast %217 : vector<1x2x128xf32> to vector<2x128xf32>
    %cst_83 = arith.constant dense<0.000000e+00> : vector<2x512xf32>
    %219 = tpu.matmul %218, %28, %cst_83 {dimension_numbers = #tpu.dot_dimension_numbers<[1], [0], [0], [1], [0, 0, 1, 1], [], []>} : vector<2x128xf32>, vector<128x512xf32>, vector<2x512xf32> -> vector<2x512xf32>
    %cst_84 = arith.constant dense<0.000000e+00> : vector<2x512xf32>
    %220 = tpu.matmul %211, %29, %cst_84 {dimension_numbers = #tpu.dot_dimension_numbers<[1], [0], [0], [1], [0, 0, 1, 1], [], []>} : vector<2x128xf32>, vector<128x512xf32>, vector<2x512xf32> -> vector<2x512xf32>
    %221 = arith.addf %219, %220 : vector<2x512xf32>
    %222 = arith.addf %221, %33 : vector<2x512xf32>
    %223 = vector.extract_strided_slice %222 {offsets = [0, 0], sizes = [2, 128], strides = [1, 1]} : vector<2x512xf32> to vector<2x128xf32>
    %224 = arith.negf %223 : vector<2x128xf32>
    %225 = math.exp %224 : vector<2x128xf32>
    %cst_85 = arith.constant 1.000000e+00 : f32
    %226 = vector.broadcast %cst_85 : f32 to vector<2x128xf32>
    %227 = arith.addf %226, %225 : vector<2x128xf32>
    %228 = arith.divf %226, %227 : vector<2x128xf32>
    %229 = vector.extract_strided_slice %222 {offsets = [0, 128], sizes = [2, 128], strides = [1, 1]} : vector<2x512xf32> to vector<2x128xf32>
    %230 = arith.negf %229 : vector<2x128xf32>
    %231 = math.exp %230 : vector<2x128xf32>
    %cst_86 = arith.constant 1.000000e+00 : f32
    %232 = vector.broadcast %cst_86 : f32 to vector<2x128xf32>
    %233 = arith.addf %232, %231 : vector<2x128xf32>
    %234 = arith.divf %232, %233 : vector<2x128xf32>
    %235 = vector.extract_strided_slice %222 {offsets = [0, 256], sizes = [2, 128], strides = [1, 1]} : vector<2x512xf32> to vector<2x128xf32>
    %236 = math.tanh %235 : vector<2x128xf32>
    %237 = vector.extract_strided_slice %222 {offsets = [0, 384], sizes = [2, 128], strides = [1, 1]} : vector<2x512xf32> to vector<2x128xf32>
    %238 = arith.negf %237 : vector<2x128xf32>
    %239 = math.exp %238 : vector<2x128xf32>
    %cst_87 = arith.constant 1.000000e+00 : f32
    %240 = vector.broadcast %cst_87 : f32 to vector<2x128xf32>
    %241 = arith.addf %240, %239 : vector<2x128xf32>
    %242 = arith.divf %240, %241 : vector<2x128xf32>
    %243 = arith.mulf %234, %209 : vector<2x128xf32>
    %244 = arith.mulf %228, %236 : vector<2x128xf32>
    %245 = arith.addf %243, %244 : vector<2x128xf32>
    %246 = math.tanh %245 : vector<2x128xf32>
    %247 = arith.mulf %242, %246 : vector<2x128xf32>
    %cst_88 = arith.constant dense<0.000000e+00> : vector<2x256xf32>
    %248 = tpu.matmul %247, %30, %cst_88 {dimension_numbers = #tpu.dot_dimension_numbers<[1], [0], [0], [1], [0, 0, 1, 1], [], []>} : vector<2x128xf32>, vector<128x256xf32>, vector<2x256xf32> -> vector<2x256xf32>
    %249 = arith.addf %248, %36 : vector<2x256xf32>
    %c5 = arith.constant 5 : index
    %c0_89 = arith.constant 0 : index
    %c0_90 = arith.constant 0 : index
    %250 = vector.load %arg11[%c5, %c0_89, %c0_90] : memref<9x2x256xf32, #tpu.memory_space<vmem>>, vector<1x2x256xf32>
    %251 = vector.shape_cast %250 : vector<1x2x256xf32> to vector<2x256xf32>
    %252 = vector.shape_cast %249 : vector<2x256xf32> to vector<1x2x256xf32>
    tpu.vector_store %arg11[%c5, %c0_89, %c0_90], %252 {strides = array<i32>} : memref<9x2x256xf32, #tpu.memory_space<vmem>>, vector<1x2x256xf32>,
    %c5_91 = arith.constant 5 : index
    %c0_92 = arith.constant 0 : index
    %c0_93 = arith.constant 0 : index
    %253 = vector.load %arg1[%c5_91, %c0_92, %c0_93] : memref<8x2x128xf32, #tpu.memory_space<vmem>>, vector<1x2x128xf32>
    %254 = vector.shape_cast %253 : vector<1x2x128xf32> to vector<2x128xf32>
    %cst_94 = arith.constant dense<0.000000e+00> : vector<2x512xf32>
    %255 = tpu.matmul %254, %28, %cst_94 {dimension_numbers = #tpu.dot_dimension_numbers<[1], [0], [0], [1], [0, 0, 1, 1], [], []>} : vector<2x128xf32>, vector<128x512xf32>, vector<2x512xf32> -> vector<2x512xf32>
    %cst_95 = arith.constant dense<0.000000e+00> : vector<2x512xf32>
    %256 = tpu.matmul %247, %29, %cst_95 {dimension_numbers = #tpu.dot_dimension_numbers<[1], [0], [0], [1], [0, 0, 1, 1], [], []>} : vector<2x128xf32>, vector<128x512xf32>, vector<2x512xf32> -> vector<2x512xf32>
    %257 = arith.addf %255, %256 : vector<2x512xf32>
    %258 = arith.addf %257, %33 : vector<2x512xf32>
    %259 = vector.extract_strided_slice %258 {offsets = [0, 0], sizes = [2, 128], strides = [1, 1]} : vector<2x512xf32> to vector<2x128xf32>
    %260 = arith.negf %259 : vector<2x128xf32>
    %261 = math.exp %260 : vector<2x128xf32>
    %cst_96 = arith.constant 1.000000e+00 : f32
    %262 = vector.broadcast %cst_96 : f32 to vector<2x128xf32>
    %263 = arith.addf %262, %261 : vector<2x128xf32>
    %264 = arith.divf %262, %263 : vector<2x128xf32>
    %265 = vector.extract_strided_slice %258 {offsets = [0, 128], sizes = [2, 128], strides = [1, 1]} : vector<2x512xf32> to vector<2x128xf32>
    %266 = arith.negf %265 : vector<2x128xf32>
    %267 = math.exp %266 : vector<2x128xf32>
    %cst_97 = arith.constant 1.000000e+00 : f32
    %268 = vector.broadcast %cst_97 : f32 to vector<2x128xf32>
    %269 = arith.addf %268, %267 : vector<2x128xf32>
    %270 = arith.divf %268, %269 : vector<2x128xf32>
    %271 = vector.extract_strided_slice %258 {offsets = [0, 256], sizes = [2, 128], strides = [1, 1]} : vector<2x512xf32> to vector<2x128xf32>
    %272 = math.tanh %271 : vector<2x128xf32>
    %273 = vector.extract_strided_slice %258 {offsets = [0, 384], sizes = [2, 128], strides = [1, 1]} : vector<2x512xf32> to vector<2x128xf32>
    %274 = arith.negf %273 : vector<2x128xf32>
    %275 = math.exp %274 : vector<2x128xf32>
    %cst_98 = arith.constant 1.000000e+00 : f32
    %276 = vector.broadcast %cst_98 : f32 to vector<2x128xf32>
    %277 = arith.addf %276, %275 : vector<2x128xf32>
    %278 = arith.divf %276, %277 : vector<2x128xf32>
    %279 = arith.mulf %270, %245 : vector<2x128xf32>
    %280 = arith.mulf %264, %272 : vector<2x128xf32>
    %281 = arith.addf %279, %280 : vector<2x128xf32>
    %282 = math.tanh %281 : vector<2x128xf32>
    %283 = arith.mulf %278, %282 : vector<2x128xf32>
    %cst_99 = arith.constant dense<0.000000e+00> : vector<2x256xf32>
    %284 = tpu.matmul %283, %30, %cst_99 {dimension_numbers = #tpu.dot_dimension_numbers<[1], [0], [0], [1], [0, 0, 1, 1], [], []>} : vector<2x128xf32>, vector<128x256xf32>, vector<2x256xf32> -> vector<2x256xf32>
    %285 = arith.addf %284, %36 : vector<2x256xf32>
    %c6 = arith.constant 6 : index
    %c0_100 = arith.constant 0 : index
    %c0_101 = arith.constant 0 : index
    %286 = vector.load %arg11[%c6, %c0_100, %c0_101] : memref<9x2x256xf32, #tpu.memory_space<vmem>>, vector<1x2x256xf32>
    %287 = vector.shape_cast %286 : vector<1x2x256xf32> to vector<2x256xf32>
    %288 = vector.shape_cast %285 : vector<2x256xf32> to vector<1x2x256xf32>
    tpu.vector_store %arg11[%c6, %c0_100, %c0_101], %288 {strides = array<i32>} : memref<9x2x256xf32, #tpu.memory_space<vmem>>, vector<1x2x256xf32>,
    %c6_102 = arith.constant 6 : index
    %c0_103 = arith.constant 0 : index
    %c0_104 = arith.constant 0 : index
    %289 = vector.load %arg1[%c6_102, %c0_103, %c0_104] : memref<8x2x128xf32, #tpu.memory_space<vmem>>, vector<1x2x128xf32>
    %290 = vector.shape_cast %289 : vector<1x2x128xf32> to vector<2x128xf32>
    %cst_105 = arith.constant dense<0.000000e+00> : vector<2x512xf32>
    %291 = tpu.matmul %290, %28, %cst_105 {dimension_numbers = #tpu.dot_dimension_numbers<[1], [0], [0], [1], [0, 0, 1, 1], [], []>} : vector<2x128xf32>, vector<128x512xf32>, vector<2x512xf32> -> vector<2x512xf32>
    %cst_106 = arith.constant dense<0.000000e+00> : vector<2x512xf32>
    %292 = tpu.matmul %283, %29, %cst_106 {dimension_numbers = #tpu.dot_dimension_numbers<[1], [0], [0], [1], [0, 0, 1, 1], [], []>} : vector<2x128xf32>, vector<128x512xf32>, vector<2x512xf32> -> vector<2x512xf32>
    %293 = arith.addf %291, %292 : vector<2x512xf32>
    %294 = arith.addf %293, %33 : vector<2x512xf32>
    %295 = vector.extract_strided_slice %294 {offsets = [0, 0], sizes = [2, 128], strides = [1, 1]} : vector<2x512xf32> to vector<2x128xf32>
    %296 = arith.negf %295 : vector<2x128xf32>
    %297 = math.exp %296 : vector<2x128xf32>
    %cst_107 = arith.constant 1.000000e+00 : f32
    %298 = vector.broadcast %cst_107 : f32 to vector<2x128xf32>
    %299 = arith.addf %298, %297 : vector<2x128xf32>
    %300 = arith.divf %298, %299 : vector<2x128xf32>
    %301 = vector.extract_strided_slice %294 {offsets = [0, 128], sizes = [2, 128], strides = [1, 1]} : vector<2x512xf32> to vector<2x128xf32>
    %302 = arith.negf %301 : vector<2x128xf32>
    %303 = math.exp %302 : vector<2x128xf32>
    %cst_108 = arith.constant 1.000000e+00 : f32
    %304 = vector.broadcast %cst_108 : f32 to vector<2x128xf32>
    %305 = arith.addf %304, %303 : vector<2x128xf32>
    %306 = arith.divf %304, %305 : vector<2x128xf32>
    %307 = vector.extract_strided_slice %294 {offsets = [0, 256], sizes = [2, 128], strides = [1, 1]} : vector<2x512xf32> to vector<2x128xf32>
    %308 = math.tanh %307 : vector<2x128xf32>
    %309 = vector.extract_strided_slice %294 {offsets = [0, 384], sizes = [2, 128], strides = [1, 1]} : vector<2x512xf32> to vector<2x128xf32>
    %310 = arith.negf %309 : vector<2x128xf32>
    %311 = math.exp %310 : vector<2x128xf32>
    %cst_109 = arith.constant 1.000000e+00 : f32
    %312 = vector.broadcast %cst_109 : f32 to vector<2x128xf32>
    %313 = arith.addf %312, %311 : vector<2x128xf32>
    %314 = arith.divf %312, %313 : vector<2x128xf32>
    %315 = arith.mulf %306, %281 : vector<2x128xf32>
    %316 = arith.mulf %300, %308 : vector<2x128xf32>
    %317 = arith.addf %315, %316 : vector<2x128xf32>
    %318 = math.tanh %317 : vector<2x128xf32>
    %319 = arith.mulf %314, %318 : vector<2x128xf32>
    %cst_110 = arith.constant dense<0.000000e+00> : vector<2x256xf32>
    %320 = tpu.matmul %319, %30, %cst_110 {dimension_numbers = #tpu.dot_dimension_numbers<[1], [0], [0], [1], [0, 0, 1, 1], [], []>} : vector<2x128xf32>, vector<128x256xf32>, vector<2x256xf32> -> vector<2x256xf32>
    %321 = arith.addf %320, %36 : vector<2x256xf32>
    %c7 = arith.constant 7 : index
    %c0_111 = arith.constant 0 : index
    %c0_112 = arith.constant 0 : index
    %322 = vector.load %arg11[%c7, %c0_111, %c0_112] : memref<9x2x256xf32, #tpu.memory_space<vmem>>, vector<1x2x256xf32>
    %323 = vector.shape_cast %322 : vector<1x2x256xf32> to vector<2x256xf32>
    %324 = vector.shape_cast %321 : vector<2x256xf32> to vector<1x2x256xf32>
    tpu.vector_store %arg11[%c7, %c0_111, %c0_112], %324 {strides = array<i32>} : memref<9x2x256xf32, #tpu.memory_space<vmem>>, vector<1x2x256xf32>,
    %c7_113 = arith.constant 7 : index
    %c0_114 = arith.constant 0 : index
    %c0_115 = arith.constant 0 : index
    %325 = vector.load %arg1[%c7_113, %c0_114, %c0_115] : memref<8x2x128xf32, #tpu.memory_space<vmem>>, vector<1x2x128xf32>
    %326 = vector.shape_cast %325 : vector<1x2x128xf32> to vector<2x128xf32>
    %cst_116 = arith.constant dense<0.000000e+00> : vector<2x512xf32>
    %327 = tpu.matmul %326, %28, %cst_116 {dimension_numbers = #tpu.dot_dimension_numbers<[1], [0], [0], [1], [0, 0, 1, 1], [], []>} : vector<2x128xf32>, vector<128x512xf32>, vector<2x512xf32> -> vector<2x512xf32>
    %cst_117 = arith.constant dense<0.000000e+00> : vector<2x512xf32>
    %328 = tpu.matmul %319, %29, %cst_117 {dimension_numbers = #tpu.dot_dimension_numbers<[1], [0], [0], [1], [0, 0, 1, 1], [], []>} : vector<2x128xf32>, vector<128x512xf32>, vector<2x512xf32> -> vector<2x512xf32>
    %329 = arith.addf %327, %328 : vector<2x512xf32>
    %330 = arith.addf %329, %33 : vector<2x512xf32>
    %331 = vector.extract_strided_slice %330 {offsets = [0, 0], sizes = [2, 128], strides = [1, 1]} : vector<2x512xf32> to vector<2x128xf32>
    %332 = arith.negf %331 : vector<2x128xf32>
    %333 = math.exp %332 : vector<2x128xf32>
    %cst_118 = arith.constant 1.000000e+00 : f32
    %334 = vector.broadcast %cst_118 : f32 to vector<2x128xf32>
    %335 = arith.addf %334, %333 : vector<2x128xf32>
    %336 = arith.divf %334, %335 : vector<2x128xf32>
    %337 = vector.extract_strided_slice %330 {offsets = [0, 128], sizes = [2, 128], strides = [1, 1]} : vector<2x512xf32> to vector<2x128xf32>
    %338 = arith.negf %337 : vector<2x128xf32>
    %339 = math.exp %338 : vector<2x128xf32>
    %cst_119 = arith.constant 1.000000e+00 : f32
    %340 = vector.broadcast %cst_119 : f32 to vector<2x128xf32>
    %341 = arith.addf %340, %339 : vector<2x128xf32>
    %342 = arith.divf %340, %341 : vector<2x128xf32>
    %343 = vector.extract_strided_slice %330 {offsets = [0, 256], sizes = [2, 128], strides = [1, 1]} : vector<2x512xf32> to vector<2x128xf32>
    %344 = math.tanh %343 : vector<2x128xf32>
    %345 = vector.extract_strided_slice %330 {offsets = [0, 384], sizes = [2, 128], strides = [1, 1]} : vector<2x512xf32> to vector<2x128xf32>
    %346 = arith.negf %345 : vector<2x128xf32>
    %347 = math.exp %346 : vector<2x128xf32>
    %cst_120 = arith.constant 1.000000e+00 : f32
    %348 = vector.broadcast %cst_120 : f32 to vector<2x128xf32>
    %349 = arith.addf %348, %347 : vector<2x128xf32>
    %350 = arith.divf %348, %349 : vector<2x128xf32>
    %351 = arith.mulf %342, %317 : vector<2x128xf32>
    %352 = arith.mulf %336, %344 : vector<2x128xf32>
    %353 = arith.addf %351, %352 : vector<2x128xf32>
    %354 = math.tanh %353 : vector<2x128xf32>
    %355 = arith.mulf %350, %354 : vector<2x128xf32>
    %cst_121 = arith.constant dense<0.000000e+00> : vector<2x256xf32>
    %356 = tpu.matmul %355, %30, %cst_121 {dimension_numbers = #tpu.dot_dimension_numbers<[1], [0], [0], [1], [0, 0, 1, 1], [], []>} : vector<2x128xf32>, vector<128x256xf32>, vector<2x256xf32> -> vector<2x256xf32>
    %357 = arith.addf %356, %36 : vector<2x256xf32>
    %c8 = arith.constant 8 : index
    %c0_122 = arith.constant 0 : index
    %c0_123 = arith.constant 0 : index
    %358 = vector.load %arg11[%c8, %c0_122, %c0_123] : memref<9x2x256xf32, #tpu.memory_space<vmem>>, vector<1x2x256xf32>
    %359 = vector.shape_cast %358 : vector<1x2x256xf32> to vector<2x256xf32>
    %360 = vector.shape_cast %357 : vector<2x256xf32> to vector<1x2x256xf32>
    tpu.vector_store %arg11[%c8, %c0_122, %c0_123], %360 {strides = array<i32>} : memref<9x2x256xf32, #tpu.memory_space<vmem>>, vector<1x2x256xf32>,
    return
  }
}

</mosaic_0001>

<llo_original>
// kernel: forward.1
$region0: #{forward.1}
  #allocation0 [shape = 'u32[]', space=smem, size = 0x4, offset = 0x4, fixed_abs, tag = 'smem constant byte address 0x4 - core index']
  #allocation1 [shape = 'u32[144,128]{1,0:T(1,128)}', space=vmem, size = 0x12000, scoped, tag = 'internal scratch']
  %s0 = inlined_call_operand.vmem [shape: f32[512,27], index: 0, kind: input, shape index: {}]
  %s1 = inlined_call_operand.vmem [shape: f32[8,2,128], index: 1, kind: input, shape index: {}]
  %s2 = inlined_call_operand.vmem [shape: f32[27,128], index: 2, kind: input, shape index: {}]
  %s3 = inlined_call_operand.vmem [shape: f32[1,128], index: 3, kind: input, shape index: {}]
  %s4 = inlined_call_operand.vmem [shape: f32[128,128], index: 4, kind: input, shape index: {}]
  %s5 = inlined_call_operand.vmem [shape: f32[1,128], index: 5, kind: input, shape index: {}]
  %s6 = inlined_call_operand.vmem [shape: f32[128,512], index: 6, kind: input, shape index: {}]
  %s7 = inlined_call_operand.vmem [shape: f32[128,512], index: 7, kind: input, shape index: {}]
  %s8 = inlined_call_operand.vmem [shape: f32[1,512], index: 8, kind: input, shape index: {}]
  %s9 = inlined_call_operand.vmem [shape: f32[128,256], index: 9, kind: input, shape index: {}]
  %s10 = inlined_call_operand.vmem [shape: f32[1,256], index: 10, kind: input, shape index: {}]
  %s11 = inlined_call_operand.vmem [shape: f32[9,2,256], index: 11, kind: output, shape index: {}]
  %s12 = sld [smem:[#allocation0]]
  $region54: #{forward.1} parent=0
    _
  %s14 = ssub.s32 1, %s12
  %s15 = scalar_select 0, %s14, %s12
  // Predicated region
  $region2: #{forward.1} parent=0 // pred_check
    _
  $region3: #{forward.1} parent=0 // pred_check_branch
    %17 = sbr.rel (0) target = $region5
  $region4: #{forward.1} parent=0 // pred_region
    _
  $region5: #{forward.1} parent=0 // pred_fallthru
    _
  // Predicated region
  $region6: #{forward.1} parent=0 // pred_check
    _
  $region7: #{forward.1} parent=0 // pred_check_branch
    %19 = sbr.rel (0) target = $region9
  $region8: #{forward.1} parent=0 // pred_region
    _
  $region9: #{forward.1} parent=0 // pred_fallthru
    _
  // Predicated region
  $region10: #{forward.1} parent=0 // pred_check
    _
  $region11: #{forward.1} parent=0 // pred_check_branch
    %21 = sbr.rel (0) target = $region13
  $region12: #{forward.1} parent=0 // pred_region
    _
  $region13: #{forward.1} parent=0 // pred_fallthru
    _
  // Predicated region
  $region14: #{forward.1} parent=0 // pred_check
    _
  $region15: #{forward.1} parent=0 // pred_check_branch
    %23 = sbr.rel (0) target = $region17
  $region16: #{forward.1} parent=0 // pred_region
    _
  $region17: #{forward.1} parent=0 // pred_fallthru
    _
  // Predicated region
  $region18: #{forward.1} parent=0 // pred_check
    _
  $region19: #{forward.1} parent=0 // pred_check_branch
    %25 = sbr.rel (0) target = $region21
  $region20: #{forward.1} parent=0 // pred_region
    _
  $region21: #{forward.1} parent=0 // pred_fallthru
    _
  // Predicated region
  $region22: #{forward.1} parent=0 // pred_check
    _
  $region23: #{forward.1} parent=0 // pred_check_branch
    %27 = sbr.rel (0) target = $region25
  $region24: #{forward.1} parent=0 // pred_region
    _
  $region25: #{forward.1} parent=0 // pred_fallthru
    _
  // Predicated region
  $region26: #{forward.1} parent=0 // pred_check
    _
  $region27: #{forward.1} parent=0 // pred_check_branch
    %29 = sbr.rel (0) target = $region29
  $region28: #{forward.1} parent=0 // pred_region
    _
  $region29: #{forward.1} parent=0 // pred_fallthru
    _
  // Predicated region
  $region30: #{forward.1} parent=0 // pred_check
    _
  $region31: #{forward.1} parent=0 // pred_check_branch
    %31 = sbr.rel (0) target = $region33
  $region32: #{forward.1} parent=0 // pred_region
    _
  $region33: #{forward.1} parent=0 // pred_fallthru
    _
  // Predicated region
  $region34: #{forward.1} parent=0 // pred_check
    _
  $region35: #{forward.1} parent=0 // pred_check_branch
    %33 = sbr.rel (0) target = $region37
  $region36: #{forward.1} parent=0 // pred_region
    _
  $region37: #{forward.1} parent=0 // pred_fallthru
    _
  // Predicated region
  $region38: #{forward.1} parent=0 // pred_check
    _
  $region39: #{forward.1} parent=0 // pred_check_branch
    %35 = sbr.rel (0) target = $region41
  $region40: #{forward.1} parent=0 // pred_region
    _
  $region41: #{forward.1} parent=0 // pred_fallthru
    _
  // Predicated region
  $region42: #{forward.1} parent=0 // pred_check
    _
  $region43: #{forward.1} parent=0 // pred_check_branch
    %37 = sbr.rel (0) target = $region45
  $region44: #{forward.1} parent=0 // pred_region
    _
  $region45: #{forward.1} parent=0 // pred_fallthru
    _
  %v38 = vld [vmem:[%s0] sm:$0xff]
  %v39 = vld [vmem:[%s0 + $0x8] sm:$0xff]
  %v40 = vld [vmem:[%s0 + $0x10] sm:$0xff]
  %v41 = vld [vmem:[%s0 + $0x18] sm:$0xff]
  %v42 = vld [vmem:[%s0 + $0x20] sm:$0xff]
  %v43 = vld [vmem:[%s0 + $0x28] sm:$0xff]
  %v44 = vld [vmem:[%s0 + $0x30] sm:$0xff]
  %v45 = vld [vmem:[%s0 + $0x38] sm:$0xff]
  %v46 = vld [vmem:[%s0 + $0x40] sm:$0xff]
  %v47 = vld [vmem:[%s0 + $0x48] sm:$0xff]
  %v48 = vld [vmem:[%s0 + $0x50] sm:$0xff]
  %v49 = vld [vmem:[%s0 + $0x58] sm:$0xff]
  %v50 = vld [vmem:[%s0 + $0x60] sm:$0xff]
  %v51 = vld [vmem:[%s0 + $0x68] sm:$0xff]
  %v52 = vld [vmem:[%s0 + $0x70] sm:$0xff]
  %v53 = vld [vmem:[%s0 + $0x78] sm:$0xff]
  %v54 = vld [vmem:[%s0 + $0x80] sm:$0xff]
  %v55 = vld [vmem:[%s0 + $0x88] sm:$0xff]
  %v56 = vld [vmem:[%s0 + $0x90] sm:$0xff]
  %v57 = vld [vmem:[%s0 + $0x98] sm:$0xff]
  %v58 = vld [vmem:[%s0 + $0xa0] sm:$0xff]
  %v59 = vld [vmem:[%s0 + $0xa8] sm:$0xff]
  %v60 = vld [vmem:[%s0 + $0xb0] sm:$0xff]
  %v61 = vld [vmem:[%s0 + $0xb8] sm:$0xff]
  %v62 = vld [vmem:[%s0 + $0xc0] sm:$0xff]
  %v63 = vld [vmem:[%s0 + $0xc8] sm:$0xff]
  %v64 = vld [vmem:[%s0 + $0xd0] sm:$0xff]
  %v65 = vld [vmem:[%s0 + $0xd8] sm:$0xff]
  %v66 = vld [vmem:[%s0 + $0xe0] sm:$0xff]
  %v67 = vld [vmem:[%s0 + $0xe8] sm:$0xff]
  %v68 = vld [vmem:[%s0 + $0xf0] sm:$0xff]
  %v69 = vld [vmem:[%s0 + $0xf8] sm:$0xff]
  %v70 = vld [vmem:[%s0 + $0x100] sm:$0xff]
  %v71 = vld [vmem:[%s0 + $0x108] sm:$0xff]
  %v72 = vld [vmem:[%s0 + $0x110] sm:$0xff]
  %v73 = vld [vmem:[%s0 + $0x118] sm:$0xff]
  %v74 = vld [vmem:[%s0 + $0x120] sm:$0xff]
  %v75 = vld [vmem:[%s0 + $0x128] sm:$0xff]
  %v76 = vld [vmem:[%s0 + $0x130] sm:$0xff]
  %v77 = vld [vmem:[%s0 + $0x138] sm:$0xff]
  %v78 = vld [vmem:[%s0 + $0x140] sm:$0xff]
  %v79 = vld [vmem:[%s0 + $0x148] sm:$0xff]
  %v80 = vld [vmem:[%s0 + $0x150] sm:$0xff]
  %v81 = vld [vmem:[%s0 + $0x158] sm:$0xff]
  %v82 = vld [vmem:[%s0 + $0x160] sm:$0xff]
  %v83 = vld [vmem:[%s0 + $0x168] sm:$0xff]
  %v84 = vld [vmem:[%s0 + $0x170] sm:$0xff]
  %v85 = vld [vmem:[%s0 + $0x178] sm:$0xff]
  %v86 = vld [vmem:[%s0 + $0x180] sm:$0xff]
  %v87 = vld [vmem:[%s0 + $0x188] sm:$0xff]
  %v88 = vld [vmem:[%s0 + $0x190] sm:$0xff]
  %v89 = vld [vmem:[%s0 + $0x198] sm:$0xff]
  %v90 = vld [vmem:[%s0 + $0x1a0] sm:$0xff]
  %v91 = vld [vmem:[%s0 + $0x1a8] sm:$0xff]
  %v92 = vld [vmem:[%s0 + $0x1b0] sm:$0xff]
  %v93 = vld [vmem:[%s0 + $0x1b8] sm:$0xff]
  %v94 = vld [vmem:[%s0 + $0x1c0] sm:$0xff]
  %v95 = vld [vmem:[%s0 + $0x1c8] sm:$0xff]
  %v96 = vld [vmem:[%s0 + $0x1d0] sm:$0xff]
  %v97 = vld [vmem:[%s0 + $0x1d8] sm:$0xff]
  %v98 = vld [vmem:[%s0 + $0x1e0] sm:$0xff]
  %v99 = vld [vmem:[%s0 + $0x1e8] sm:$0xff]
  %v100 = vld [vmem:[%s0 + $0x1f0] sm:$0xff]
  %v101 = vld [vmem:[%s0 + $0x1f8] sm:$0xff]
  %v102 = vld [vmem:[%s2] sm:$0xff]
  %v103 = vld [vmem:[%s2 + $0x8] sm:$0xff]
  %v104 = vld [vmem:[%s2 + $0x10] sm:$0xff]
  %v105 = vld [vmem:[%s2 + $0x18] sm:$0x7]
  %v106 = vld [vmem:[%s3] sm:$0x1]
  %v108 = vlaneseq
  %v109 = vshrl.u32 %v108, 7
  %v110 = vsub.s32 0, %v109
  %v111 = vrot.slane %v106, %v110
  %vm113 = vcmask 220160
  %v115 = vsel %vm113, %v38, 0
  %v118 = vsel %vm113, %v39, 0
  %v121 = vsel %vm113, %v40, 0
  %v124 = vsel %vm113, %v41, 0
  %v127 = vsel %vm113, %v42, 0
  %v130 = vsel %vm113, %v43, 0
  %v133 = vsel %vm113, %v44, 0
  %v136 = vsel %vm113, %v45, 0
  %v139 = vsel %vm113, %v46, 0
  %v142 = vsel %vm113, %v47, 0
  %v145 = vsel %vm113, %v48, 0
  %v148 = vsel %vm113, %v49, 0
  %v151 = vsel %vm113, %v50, 0
  %v154 = vsel %vm113, %v51, 0
  %v157 = vsel %vm113, %v52, 0
  %v160 = vsel %vm113, %v53, 0
  %v163 = vsel %vm113, %v54, 0
  %v166 = vsel %vm113, %v55, 0
  %v169 = vsel %vm113, %v56, 0
  %v172 = vsel %vm113, %v57, 0
  %v175 = vsel %vm113, %v58, 0
  %v178 = vsel %vm113, %v59, 0
  %v181 = vsel %vm113, %v60, 0
  %v184 = vsel %vm113, %v61, 0
  %v187 = vsel %vm113, %v62, 0
  %v190 = vsel %vm113, %v63, 0
  %v193 = vsel %vm113, %v64, 0
  %v196 = vsel %vm113, %v65, 0
  %v199 = vsel %vm113, %v66, 0
  %v202 = vsel %vm113, %v67, 0
  %v205 = vsel %vm113, %v68, 0
  %v208 = vsel %vm113, %v69, 0
  %v211 = vsel %vm113, %v70, 0
  %v214 = vsel %vm113, %v71, 0
  %v217 = vsel %vm113, %v72, 0
  %v220 = vsel %vm113, %v73, 0
  %v223 = vsel %vm113, %v74, 0
  %v226 = vsel %vm113, %v75, 0
  %v229 = vsel %vm113, %v76, 0
  %v232 = vsel %vm113, %v77, 0
  %v235 = vsel %vm113, %v78, 0
  %v238 = vsel %vm113, %v79, 0
  %v241 = vsel %vm113, %v80, 0
  %v244 = vsel %vm113, %v81, 0
  %v247 = vsel %vm113, %v82, 0
  %v250 = vsel %vm113, %v83, 0
  %v253 = vsel %vm113, %v84, 0
  %v256 = vsel %vm113, %v85, 0
  %v259 = vsel %vm113, %v86, 0
  %v262 = vsel %vm113, %v87, 0
  %v265 = vsel %vm113, %v88, 0
  %v268 = vsel %vm113, %v89, 0
  %v271 = vsel %vm113, %v90, 0
  %v274 = vsel %vm113, %v91, 0
  %v277 = vsel %vm113, %v92, 0
  %v280 = vsel %vm113, %v93, 0
  %v283 = vsel %vm113, %v94, 0
  %v286 = vsel %vm113, %v95, 0
  %v289 = vsel %vm113, %v96, 0
  %v292 = vsel %vm113, %v97, 0
  %v295 = vsel %vm113, %v98, 0
  %v298 = vsel %vm113, %v99, 0
  %v301 = vsel %vm113, %v100, 0
  %v304 = vsel %vm113, %v101, 0
  %vm306 = vcmask 1042432
  %v308 = vsel %vm306, %v105, 0
  %310 = vmatprep.subr.mxu0 0.0
  %311 = vmatpush1.msra.mxu0 %v102
  %312 = vmatprep.subr.mxu0 0.0
  %313 = vmatpush1.msra.mxu0 %v103
  %314 = vmatprep.subr.mxu0 0.0
  %315 = vmatpush1.msra.mxu0 %v104
  %316 = vmatprep.subr.mxu0 0.0
  %317 = vmatpush1.msra.mxu0 %v308
  %318 = vmatprep.subr.mxu0 0.0
  %319 = vmatpush1.msra.mxu0 0.0
  %320 = vmatprep.subr.mxu0 0.0
  %321 = vmatpush1.msra.mxu0 0.0
  %322 = vmatprep.subr.mxu0 0.0
  %323 = vmatpush1.msra.mxu0 0.0
  %324 = vmatprep.subr.mxu0 0.0
  %325 = vmatpush1.msra.mxu0 0.0
  %326 = vmatprep.subr.mxu0 0.0
  %327 = vmatpush1.msra.mxu0 0.0
  %328 = vmatprep.subr.mxu0 0.0
  %329 = vmatpush1.msra.mxu0 0.0
  %330 = vmatprep.subr.mxu0 0.0
  %331 = vmatpush1.msra.mxu0 0.0
  %332 = vmatprep.subr.mxu0 0.0
  %333 = vmatpush1.msra.mxu0 0.0
  %334 = vmatprep.subr.mxu0 0.0
  %335 = vmatpush1.msra.mxu0 0.0
  %336 = vmatprep.subr.mxu0 0.0
  %337 = vmatpush1.msra.mxu0 0.0
  %338 = vmatprep.subr.mxu0 0.0
  %339 = vmatpush1.msra.mxu0 0.0
  %340 = vmatprep.subr.mxu0 0.0
  %341 = vmatpush1.msra.mxu0 0.0
  %342 = vmatprep.subr.mxu0 0.0
  %343 = vmatpush1.msra.mxu0 0.0
  %344 = vmatprep.subr.mxu0 0.0
  %345 = vmatpush1.msra.mxu0 0.0
  %346 = vmatprep.subr.mxu0 0.0
  %347 = vmatpush1.msra.mxu0 0.0
  %348 = vmatprep.subr.mxu0 0.0
  %349 = vmatpush1.msra.mxu0 0.0
  %350 = vmatprep.subr.mxu0 0.0
  %351 = vmatpush1.msra.mxu0 0.0
  %352 = vmatprep.subr.mxu0 0.0
  %353 = vmatpush1.msra.mxu0 0.0
  %354 = vmatprep.subr.mxu0 0.0
  %355 = vmatpush1.msra.mxu0 0.0
  %356 = vmatprep.subr.mxu0 0.0
  %357 = vmatpush1.msra.mxu0 0.0
  %358 = vmatprep.subr.mxu0 0.0
  %359 = vmatpush1.msra.mxu0 0.0
  %360 = vmatprep.subr.mxu0 0.0
  %361 = vmatpush1.msra.mxu0 0.0
  %362 = vmatprep.subr.mxu0 0.0
  %363 = vmatpush1.msra.mxu0 0.0
  %364 = vmatprep.subr.mxu0 0.0
  %365 = vmatpush1.msra.mxu0 0.0
  %366 = vmatprep.subr.mxu0 0.0
  %367 = vmatpush1.msra.mxu0 0.0
  %368 = vmatprep.subr.mxu0 0.0
  %369 = vmatpush1.msra.mxu0 0.0
  %370 = vmatprep.subr.mxu0 0.0
  %371 = vmatpush1.msra.mxu0 0.0
  %372 = vmatprep.subr.mxu0 0.0
  %373 = vmatpush1.msra.mxu0 0.0
  %374 = vmatprep.mubr.f32.mxu0 0.0
  %375 = vmatmul.mubr.f32.gmra.mrb[0].mxu0 %v115
  %v376 = vpop.f32.mrb[0].mxu0
  %v377 = vadd.f32 %v111, %v376
  %v378 = vpop.f32.mrb[0].mxu0
  %379 = vmatprep.mubr.f32.mxu0 0.0
  %380 = vmatmul.mubr.f32.gmra.mrb[0].mxu0 %v118
  %v381 = vpop.f32.mrb[0].mxu0
  %v382 = vadd.f32 %v111, %v381
  %v383 = vpop.f32.mrb[0].mxu0
  %384 = vmatprep.mubr.f32.mxu0 0.0
  %385 = vmatmul.mubr.f32.gmra.mrb[0].mxu0 %v121
  %v386 = vpop.f32.mrb[0].mxu0
  %v387 = vadd.f32 %v111, %v386
  %v388 = vpop.f32.mrb[0].mxu0
  %389 = vmatprep.mubr.f32.mxu0 0.0
  %390 = vmatmul.mubr.f32.gmra.mrb[0].mxu0 %v124
  %v391 = vpop.f32.mrb[0].mxu0
  %v392 = vadd.f32 %v111, %v391
  %v393 = vpop.f32.mrb[0].mxu0
  %394 = vmatprep.mubr.f32.mxu0 0.0
  %395 = vmatmul.mubr.f32.gmra.mrb[0].mxu0 %v127
  %v396 = vpop.f32.mrb[0].mxu0
  %v397 = vadd.f32 %v111, %v396
  %v398 = vpop.f32.mrb[0].mxu0
  %399 = vmatprep.mubr.f32.mxu0 0.0
  %400 = vmatmul.mubr.f32.gmra.mrb[0].mxu0 %v130
  %v401 = vpop.f32.mrb[0].mxu0
  %v402 = vadd.f32 %v111, %v401
  %v403 = vpop.f32.mrb[0].mxu0
  %404 = vmatprep.mubr.f32.mxu0 0.0
  %405 = vmatmul.mubr.f32.gmra.mrb[0].mxu0 %v133
  %v406 = vpop.f32.mrb[0].mxu0
  %v407 = vadd.f32 %v111, %v406
  %v408 = vpop.f32.mrb[0].mxu0
  %409 = vmatprep.mubr.f32.mxu0 0.0
  %410 = vmatmul.mubr.f32.gmra.mrb[0].mxu0 %v136
  %v411 = vpop.f32.mrb[0].mxu0
  %v412 = vadd.f32 %v111, %v411
  %v413 = vpop.f32.mrb[0].mxu0
  %414 = vmatprep.mubr.f32.mxu0 0.0
  %415 = vmatmul.mubr.f32.gmra.mrb[0].mxu0 %v139
  %v416 = vpop.f32.mrb[0].mxu0
  %v417 = vadd.f32 %v111, %v416
  %v418 = vpop.f32.mrb[0].mxu0
  %419 = vmatprep.mubr.f32.mxu0 0.0
  %420 = vmatmul.mubr.f32.gmra.mrb[0].mxu0 %v142
  %v421 = vpop.f32.mrb[0].mxu0
  %v422 = vadd.f32 %v111, %v421
  %v423 = vpop.f32.mrb[0].mxu0
  %424 = vmatprep.mubr.f32.mxu0 0.0
  %425 = vmatmul.mubr.f32.gmra.mrb[0].mxu0 %v145
  %v426 = vpop.f32.mrb[0].mxu0
  %v427 = vadd.f32 %v111, %v426
  %v428 = vpop.f32.mrb[0].mxu0
  %429 = vmatprep.mubr.f32.mxu0 0.0
  %430 = vmatmul.mubr.f32.gmra.mrb[0].mxu0 %v148
  %v431 = vpop.f32.mrb[0].mxu0
  %v432 = vadd.f32 %v111, %v431
  %v433 = vpop.f32.mrb[0].mxu0
  %434 = vmatprep.mubr.f32.mxu0 0.0
  %435 = vmatmul.mubr.f32.gmra.mrb[0].mxu0 %v151
  %v436 = vpop.f32.mrb[0].mxu0
  %v437 = vadd.f32 %v111, %v436
  %v438 = vpop.f32.mrb[0].mxu0
  %439 = vmatprep.mubr.f32.mxu0 0.0
  %440 = vmatmul.mubr.f32.gmra.mrb[0].mxu0 %v154
  %v441 = vpop.f32.mrb[0].mxu0
  %v442 = vadd.f32 %v111, %v441
  %v443 = vpop.f32.mrb[0].mxu0
  %444 = vmatprep.mubr.f32.mxu0 0.0
  %445 = vmatmul.mubr.f32.gmra.mrb[0].mxu0 %v157
  %v446 = vpop.f32.mrb[0].mxu0
  %v447 = vadd.f32 %v111, %v446
  %v448 = vpop.f32.mrb[0].mxu0
  %449 = vmatprep.mubr.f32.mxu0 0.0
  %450 = vmatmul.mubr.f32.gmra.mrb[0].mxu0 %v160
  %v451 = vpop.f32.mrb[0].mxu0
  %v452 = vadd.f32 %v111, %v451
  %v453 = vpop.f32.mrb[0].mxu0
  %454 = vmatprep.mubr.f32.mxu0 0.0
  %455 = vmatmul.mubr.f32.gmra.mrb[0].mxu0 %v163
  %v456 = vpop.f32.mrb[0].mxu0
  %v457 = vadd.f32 %v111, %v456
  %v458 = vpop.f32.mrb[0].mxu0
  %459 = vmatprep.mubr.f32.mxu0 0.0
  %460 = vmatmul.mubr.f32.gmra.mrb[0].mxu0 %v166
  %v461 = vpop.f32.mrb[0].mxu0
  %v462 = vadd.f32 %v111, %v461
  %v463 = vpop.f32.mrb[0].mxu0
  %464 = vmatprep.mubr.f32.mxu0 0.0
  %465 = vmatmul.mubr.f32.gmra.mrb[0].mxu0 %v169
  %v466 = vpop.f32.mrb[0].mxu0
  %v467 = vadd.f32 %v111, %v466
  %v468 = vpop.f32.mrb[0].mxu0
  %469 = vmatprep.mubr.f32.mxu0 0.0
  %470 = vmatmul.mubr.f32.gmra.mrb[0].mxu0 %v172
  %v471 = vpop.f32.mrb[0].mxu0
  %v472 = vadd.f32 %v111, %v471
  %v473 = vpop.f32.mrb[0].mxu0
  %474 = vmatprep.mubr.f32.mxu0 0.0
  %475 = vmatmul.mubr.f32.gmra.mrb[0].mxu0 %v175
  %v476 = vpop.f32.mrb[0].mxu0
  %v477 = vadd.f32 %v111, %v476
  %v478 = vpop.f32.mrb[0].mxu0
  %479 = vmatprep.mubr.f32.mxu0 0.0
  %480 = vmatmul.mubr.f32.gmra.mrb[0].mxu0 %v178
  %v481 = vpop.f32.mrb[0].mxu0
  %v482 = vadd.f32 %v111, %v481
  %v483 = vpop.f32.mrb[0].mxu0
  %484 = vmatprep.mubr.f32.mxu0 0.0
  %485 = vmatmul.mubr.f32.gmra.mrb[0].mxu0 %v181
  %v486 = vpop.f32.mrb[0].mxu0
  %v487 = vadd.f32 %v111, %v486
  %v488 = vpop.f32.mrb[0].mxu0
  %489 = vmatprep.mubr.f32.mxu0 0.0
  %490 = vmatmul.mubr.f32.gmra.mrb[0].mxu0 %v184
  %v491 = vpop.f32.mrb[0].mxu0
  %v492 = vadd.f32 %v111, %v491
  %v493 = vpop.f32.mrb[0].mxu0
  %494 = vmatprep.mubr.f32.mxu0 0.0
  %495 = vmatmul.mubr.f32.gmra.mrb[0].mxu0 %v187
  %v496 = vpop.f32.mrb[0].mxu0
  %v497 = vadd.f32 %v111, %v496
  %v498 = vpop.f32.mrb[0].mxu0
  %499 = vmatprep.mubr.f32.mxu0 0.0
  %500 = vmatmul.mubr.f32.gmra.mrb[0].mxu0 %v190
  %v501 = vpop.f32.mrb[0].mxu0
  %v502 = vadd.f32 %v111, %v501
  %v503 = vpop.f32.mrb[0].mxu0
  %504 = vmatprep.mubr.f32.mxu0 0.0
  %505 = vmatmul.mubr.f32.gmra.mrb[0].mxu0 %v193
  %v506 = vpop.f32.mrb[0].mxu0
  %v507 = vadd.f32 %v111, %v506
  %v508 = vpop.f32.mrb[0].mxu0
  %509 = vmatprep.mubr.f32.mxu0 0.0
  %510 = vmatmul.mubr.f32.gmra.mrb[0].mxu0 %v196
  %v511 = vpop.f32.mrb[0].mxu0
  %v512 = vadd.f32 %v111, %v511
  %v513 = vpop.f32.mrb[0].mxu0
  %514 = vmatprep.mubr.f32.mxu0 0.0
  %515 = vmatmul.mubr.f32.gmra.mrb[0].mxu0 %v199
  %v516 = vpop.f32.mrb[0].mxu0
  %v517 = vadd.f32 %v111, %v516
  %v518 = vpop.f32.mrb[0].mxu0
  %519 = vmatprep.mubr.f32.mxu0 0.0
  %520 = vmatmul.mubr.f32.gmra.mrb[0].mxu0 %v202
  %v521 = vpop.f32.mrb[0].mxu0
  %v522 = vadd.f32 %v111, %v521
  %v523 = vpop.f32.mrb[0].mxu0
  %524 = vmatprep.mubr.f32.mxu0 0.0
  %525 = vmatmul.mubr.f32.gmra.mrb[0].mxu0 %v205
  %v526 = vpop.f32.mrb[0].mxu0
  %v527 = vadd.f32 %v111, %v526
  %v528 = vpop.f32.mrb[0].mxu0
  %529 = vmatprep.mubr.f32.mxu0 0.0
  %530 = vmatmul.mubr.f32.gmra.mrb[0].mxu0 %v208
  %v531 = vpop.f32.mrb[0].mxu0
  %v532 = vadd.f32 %v111, %v531
  %v533 = vpop.f32.mrb[0].mxu0
  %534 = vmatprep.mubr.f32.mxu0 0.0
  %535 = vmatmul.mubr.f32.gmra.mrb[0].mxu0 %v211
  %v536 = vpop.f32.mrb[0].mxu0
  %v537 = vadd.f32 %v111, %v536
  %v538 = vpop.f32.mrb[0].mxu0
  %539 = vmatprep.mubr.f32.mxu0 0.0
  %540 = vmatmul.mubr.f32.gmra.mrb[0].mxu0 %v214
  %v541 = vpop.f32.mrb[0].mxu0
  %v542 = vadd.f32 %v111, %v541
  %v543 = vpop.f32.mrb[0].mxu0
  %544 = vmatprep.mubr.f32.mxu0 0.0
  %545 = vmatmul.mubr.f32.gmra.mrb[0].mxu0 %v217
  %v546 = vpop.f32.mrb[0].mxu0
  %v547 = vadd.f32 %v111, %v546
  %v548 = vpop.f32.mrb[0].mxu0
  %549 = vmatprep.mubr.f32.mxu0 0.0
  %550 = vmatmul.mubr.f32.gmra.mrb[0].mxu0 %v220
  %v551 = vpop.f32.mrb[0].mxu0
  %v552 = vadd.f32 %v111, %v551
  %v553 = vpop.f32.mrb[0].mxu0
  %554 = vmatprep.mubr.f32.mxu0 0.0
  %555 = vmatmul.mubr.f32.gmra.mrb[0].mxu0 %v223
  %v556 = vpop.f32.mrb[0].mxu0
  %v557 = vadd.f32 %v111, %v556
  %v558 = vpop.f32.mrb[0].mxu0
  %559 = vmatprep.mubr.f32.mxu0 0.0
  %560 = vmatmul.mubr.f32.gmra.mrb[0].mxu0 %v226
  %v561 = vpop.f32.mrb[0].mxu0
  %v562 = vadd.f32 %v111, %v561
  %v563 = vpop.f32.mrb[0].mxu0
  %564 = vmatprep.mubr.f32.mxu0 0.0
  %565 = vmatmul.mubr.f32.gmra.mrb[0].mxu0 %v229
  %v566 = vpop.f32.mrb[0].mxu0
  %v567 = vadd.f32 %v111, %v566
  %v568 = vpop.f32.mrb[0].mxu0
  %569 = vmatprep.mubr.f32.mxu0 0.0
  %570 = vmatmul.mubr.f32.gmra.mrb[0].mxu0 %v232
  %v571 = vpop.f32.mrb[0].mxu0
  %v572 = vadd.f32 %v111, %v571
  %v573 = vpop.f32.mrb[0].mxu0
  %574 = vmatprep.mubr.f32.mxu0 0.0
  %575 = vmatmul.mubr.f32.gmra.mrb[0].mxu0 %v235
  %v576 = vpop.f32.mrb[0].mxu0
  %v577 = vadd.f32 %v111, %v576
  %v578 = vpop.f32.mrb[0].mxu0
  %579 = vmatprep.mubr.f32.mxu0 0.0
  %580 = vmatmul.mubr.f32.gmra.mrb[0].mxu0 %v238
  %v581 = vpop.f32.mrb[0].mxu0
  %v582 = vadd.f32 %v111, %v581
  %v583 = vpop.f32.mrb[0].mxu0
  %584 = vmatprep.mubr.f32.mxu0 0.0
  %585 = vmatmul.mubr.f32.gmra.mrb[0].mxu0 %v241
  %v586 = vpop.f32.mrb[0].mxu0
  %v587 = vadd.f32 %v111, %v586
  %v588 = vpop.f32.mrb[0].mxu0
  %589 = vmatprep.mubr.f32.mxu0 0.0
  %590 = vmatmul.mubr.f32.gmra.mrb[0].mxu0 %v244
  %v591 = vpop.f32.mrb[0].mxu0
  %v592 = vadd.f32 %v111, %v591
  %v593 = vpop.f32.mrb[0].mxu0
  %594 = vmatprep.mubr.f32.mxu0 0.0
  %595 = vmatmul.mubr.f32.gmra.mrb[0].mxu0 %v247
  %v596 = vpop.f32.mrb[0].mxu0
  %v597 = vadd.f32 %v111, %v596
  %v598 = vpop.f32.mrb[0].mxu0
  %599 = vmatprep.mubr.f32.mxu0 0.0
  %600 = vmatmul.mubr.f32.gmra.mrb[0].mxu0 %v250
  %v601 = vpop.f32.mrb[0].mxu0
  %v602 = vadd.f32 %v111, %v601
  %v603 = vpop.f32.mrb[0].mxu0
  %604 = vmatprep.mubr.f32.mxu0 0.0
  %605 = vmatmul.mubr.f32.gmra.mrb[0].mxu0 %v253
  %v606 = vpop.f32.mrb[0].mxu0
  %v607 = vadd.f32 %v111, %v606
  %v608 = vpop.f32.mrb[0].mxu0
  %609 = vmatprep.mubr.f32.mxu0 0.0
  %610 = vmatmul.mubr.f32.gmra.mrb[0].mxu0 %v256
  %v611 = vpop.f32.mrb[0].mxu0
  %v612 = vadd.f32 %v111, %v611
  %v613 = vpop.f32.mrb[0].mxu0
  %614 = vmatprep.mubr.f32.mxu0 0.0
  %615 = vmatmul.mubr.f32.gmra.mrb[0].mxu0 %v259
  %v616 = vpop.f32.mrb[0].mxu0
  %v617 = vadd.f32 %v111, %v616
  %v618 = vpop.f32.mrb[0].mxu0
  %619 = vmatprep.mubr.f32.mxu0 0.0
  %620 = vmatmul.mubr.f32.gmra.mrb[0].mxu0 %v262
  %v621 = vpop.f32.mrb[0].mxu0
  %v622 = vadd.f32 %v111, %v621
  %v623 = vpop.f32.mrb[0].mxu0
  %624 = vmatprep.mubr.f32.mxu0 0.0
  %625 = vmatmul.mubr.f32.gmra.mrb[0].mxu0 %v265
  %v626 = vpop.f32.mrb[0].mxu0
  %v627 = vadd.f32 %v111, %v626
  %v628 = vpop.f32.mrb[0].mxu0
  %629 = vmatprep.mubr.f32.mxu0 0.0
  %630 = vmatmul.mubr.f32.gmra.mrb[0].mxu0 %v268
  %v631 = vpop.f32.mrb[0].mxu0
  %v632 = vadd.f32 %v111, %v631
  %v633 = vpop.f32.mrb[0].mxu0
  %634 = vmatprep.mubr.f32.mxu0 0.0
  %635 = vmatmul.mubr.f32.gmra.mrb[0].mxu0 %v271
  %v636 = vpop.f32.mrb[0].mxu0
  %v637 = vadd.f32 %v111, %v636
  %v638 = vpop.f32.mrb[0].mxu0
  %639 = vmatprep.mubr.f32.mxu0 0.0
  %640 = vmatmul.mubr.f32.gmra.mrb[0].mxu0 %v274
  %v641 = vpop.f32.mrb[0].mxu0
  %v642 = vadd.f32 %v111, %v641
  %v643 = vpop.f32.mrb[0].mxu0
  %644 = vmatprep.mubr.f32.mxu0 0.0
  %645 = vmatmul.mubr.f32.gmra.mrb[0].mxu0 %v277
  %v646 = vpop.f32.mrb[0].mxu0
  %v647 = vadd.f32 %v111, %v646
  %v648 = vpop.f32.mrb[0].mxu0
  %649 = vmatprep.mubr.f32.mxu0 0.0
  %650 = vmatmul.mubr.f32.gmra.mrb[0].mxu0 %v280
  %v651 = vpop.f32.mrb[0].mxu0
  %v652 = vadd.f32 %v111, %v651
  %v653 = vpop.f32.mrb[0].mxu0
  %654 = vmatprep.mubr.f32.mxu0 0.0
  %655 = vmatmul.mubr.f32.gmra.mrb[0].mxu0 %v283
  %v656 = vpop.f32.mrb[0].mxu0
  %v657 = vadd.f32 %v111, %v656
  %v658 = vpop.f32.mrb[0].mxu0
  %659 = vmatprep.mubr.f32.mxu0 0.0
  %660 = vmatmul.mubr.f32.gmra.mrb[0].mxu0 %v286
  %v661 = vpop.f32.mrb[0].mxu0
  %v662 = vadd.f32 %v111, %v661
  %v663 = vpop.f32.mrb[0].mxu0
  %664 = vmatprep.mubr.f32.mxu0 0.0
  %665 = vmatmul.mubr.f32.gmra.mrb[0].mxu0 %v289
  %v666 = vpop.f32.mrb[0].mxu0
  %v667 = vadd.f32 %v111, %v666
  %v668 = vpop.f32.mrb[0].mxu0
  %669 = vmatprep.mubr.f32.mxu0 0.0
  %670 = vmatmul.mubr.f32.gmra.mrb[0].mxu0 %v292
  %v671 = vpop.f32.mrb[0].mxu0
  %v672 = vadd.f32 %v111, %v671
  %v673 = vpop.f32.mrb[0].mxu0
  %674 = vmatprep.mubr.f32.mxu0 0.0
  %675 = vmatmul.mubr.f32.gmra.mrb[0].mxu0 %v295
  %v676 = vpop.f32.mrb[0].mxu0
  %v677 = vadd.f32 %v111, %v676
  %v678 = vpop.f32.mrb[0].mxu0
  %679 = vmatprep.mubr.f32.mxu0 0.0
  %680 = vmatmul.mubr.f32.gmra.mrb[0].mxu0 %v298
  %v681 = vpop.f32.mrb[0].mxu0
  %v682 = vadd.f32 %v111, %v681
  %v683 = vpop.f32.mrb[0].mxu0
  %684 = vmatprep.mubr.f32.mxu0 0.0
  %685 = vmatmul.mubr.f32.gmra.mrb[0].mxu0 %v301
  %v686 = vpop.f32.mrb[0].mxu0
  %v687 = vadd.f32 %v111, %v686
  %v688 = vpop.f32.mrb[0].mxu0
  %689 = vmatprep.mubr.f32.mxu0 0.0
  %690 = vmatmul.mubr.f32.gmra.mrb[0].mxu0 %v304
  %v691 = vpop.f32.mrb[0].mxu0
  %v692 = vadd.f32 %v111, %v691
  %v693 = vpop.f32.mrb[0].mxu0
  %694 = vdwg.mxu0
  %v695 = vmax.f32 %v377, 0.0
  %v696 = vmax.f32 %v382, 0.0
  %v697 = vmax.f32 %v387, 0.0
  %v698 = vmax.f32 %v392, 0.0
  %v699 = vmax.f32 %v397, 0.0
  %v700 = vmax.f32 %v402, 0.0
  %v701 = vmax.f32 %v407, 0.0
  %v702 = vmax.f32 %v412, 0.0
  %v703 = vmax.f32 %v417, 0.0
  %v704 = vmax.f32 %v422, 0.0
  %v705 = vmax.f32 %v427, 0.0
  %v706 = vmax.f32 %v432, 0.0
  %v707 = vmax.f32 %v437, 0.0
  %v708 = vmax.f32 %v442, 0.0
  %v709 = vmax.f32 %v447, 0.0
  %v710 = vmax.f32 %v452, 0.0
  %v711 = vmax.f32 %v457, 0.0
  %v712 = vmax.f32 %v462, 0.0
  %v713 = vmax.f32 %v467, 0.0
  %v714 = vmax.f32 %v472, 0.0
  %v715 = vmax.f32 %v477, 0.0
  %v716 = vmax.f32 %v482, 0.0
  %v717 = vmax.f32 %v487, 0.0
  %v718 = vmax.f32 %v492, 0.0
  %v719 = vmax.f32 %v497, 0.0
  %v720 = vmax.f32 %v502, 0.0
  %v721 = vmax.f32 %v507, 0.0
  %v722 = vmax.f32 %v512, 0.0
  %v723 = vmax.f32 %v517, 0.0
  %v724 = vmax.f32 %v522, 0.0
  %v725 = vmax.f32 %v527, 0.0
  %v726 = vmax.f32 %v532, 0.0
  %v727 = vmax.f32 %v537, 0.0
  %v728 = vmax.f32 %v542, 0.0
  %v729 = vmax.f32 %v547, 0.0
  %v730 = vmax.f32 %v552, 0.0
  %v731 = vmax.f32 %v557, 0.0
  %v732 = vmax.f32 %v562, 0.0
  %v733 = vmax.f32 %v567, 0.0
  %v734 = vmax.f32 %v572, 0.0
  %v735 = vmax.f32 %v577, 0.0
  %v736 = vmax.f32 %v582, 0.0
  %v737 = vmax.f32 %v587, 0.0
  %v738 = vmax.f32 %v592, 0.0
  %v739 = vmax.f32 %v597, 0.0
  %v740 = vmax.f32 %v602, 0.0
  %v741 = vmax.f32 %v607, 0.0
  %v742 = vmax.f32 %v612, 0.0
  %v743 = vmax.f32 %v617, 0.0
  %v744 = vmax.f32 %v622, 0.0
  %v745 = vmax.f32 %v627, 0.0
  %v746 = vmax.f32 %v632, 0.0
  %v747 = vmax.f32 %v637, 0.0
  %v748 = vmax.f32 %v642, 0.0
  %v749 = vmax.f32 %v647, 0.0
  %v750 = vmax.f32 %v652, 0.0
  %v751 = vmax.f32 %v657, 0.0
  %v752 = vmax.f32 %v662, 0.0
  %v753 = vmax.f32 %v667, 0.0
  %v754 = vmax.f32 %v672, 0.0
  %v755 = vmax.f32 %v677, 0.0
  %v756 = vmax.f32 %v682, 0.0
  %v757 = vmax.f32 %v687, 0.0
  %v758 = vmax.f32 %v692, 0.0
  %v759 = vlaneseq
  %v760 = vand.u32 %v759, 127
  %v761 = vadd.s32 %v760, 128
  %v762 = vadd.s32 %v760, 256
  %v763 = vadd.s32 %v760, 384
  %v764 = vlaneseq
  %v765 = vshrl.u32 %v764, 7
  %v766 = vmul.u32 %v765, 256
  %vm767 = vcmp.ge.s32.totalorder %v760, %v766
  %vm768 = vcmp.ge.s32.totalorder %v761, %v766
  %vm769 = vcmp.ge.s32.totalorder %v762, %v766
  %vm770 = vcmp.ge.s32.totalorder %v763, %v766
  %v771 = vadd.s32 %v765, 1
  %v772 = vmul.u32 %v771, 256
  %vm773 = vcmp.lt.s32.totalorder %v760, %v772
  %vm774 = vcmp.lt.s32.totalorder %v761, %v772
  %vm775 = vcmp.lt.s32.totalorder %v762, %v772
  %vm776 = vcmp.lt.s32.totalorder %v763, %v772
  %vm777 = vmand %vm767, %vm773
  %vm778 = vmand %vm768, %vm774
  %vm779 = vmand %vm769, %vm775
  %vm780 = vmand %vm770, %vm776
  %v781 = vsel %vm777, 0.00390625, 0.0
  %v782 = vsel %vm778, 0.00390625, 0.0
  %v783 = vsel %vm779, 0.00390625, 0.0
  %v784 = vsel %vm780, 0.00390625, 0.0
  %785 = vmatprep.subr.mxu0 0.0
  %786 = vmatpush1.msra.mxu0 %v695
  %787 = vmatprep.subr.mxu0 0.0
  %788 = vmatpush1.msra.mxu0 %v696
  %789 = vmatprep.subr.mxu0 0.0
  %790 = vmatpush1.msra.mxu0 %v697
  %791 = vmatprep.subr.mxu0 0.0
  %792 = vmatpush1.msra.mxu0 %v698
  %793 = vmatprep.subr.mxu0 0.0
  %794 = vmatpush1.msra.mxu0 %v699
  %795 = vmatprep.subr.mxu0 0.0
  %796 = vmatpush1.msra.mxu0 %v700
  %797 = vmatprep.subr.mxu0 0.0
  %798 = vmatpush1.msra.mxu0 %v701
  %799 = vmatprep.subr.mxu0 0.0
  %800 = vmatpush1.msra.mxu0 %v702
  %801 = vmatprep.subr.mxu0 0.0
  %802 = vmatpush1.msra.mxu0 %v703
  %803 = vmatprep.subr.mxu0 0.0
  %804 = vmatpush1.msra.mxu0 %v704
  %805 = vmatprep.subr.mxu0 0.0
  %806 = vmatpush1.msra.mxu0 %v705
  %807 = vmatprep.subr.mxu0 0.0
  %808 = vmatpush1.msra.mxu0 %v706
  %809 = vmatprep.subr.mxu0 0.0
  %810 = vmatpush1.msra.mxu0 %v707
  %811 = vmatprep.subr.mxu0 0.0
  %812 = vmatpush1.msra.mxu0 %v708
  %813 = vmatprep.subr.mxu0 0.0
  %814 = vmatpush1.msra.mxu0 %v709
  %815 = vmatprep.subr.mxu0 0.0
  %816 = vmatpush1.msra.mxu0 %v710
  %817 = vmatprep.subr.mxu0 0.0
  %818 = vmatpush1.msra.mxu0 %v711
  %819 = vmatprep.subr.mxu0 0.0
  %820 = vmatpush1.msra.mxu0 %v712
  %821 = vmatprep.subr.mxu0 0.0
  %822 = vmatpush1.msra.mxu0 %v713
  %823 = vmatprep.subr.mxu0 0.0
  %824 = vmatpush1.msra.mxu0 %v714
  %825 = vmatprep.subr.mxu0 0.0
  %826 = vmatpush1.msra.mxu0 %v715
  %827 = vmatprep.subr.mxu0 0.0
  %828 = vmatpush1.msra.mxu0 %v716
  %829 = vmatprep.subr.mxu0 0.0
  %830 = vmatpush1.msra.mxu0 %v717
  %831 = vmatprep.subr.mxu0 0.0
  %832 = vmatpush1.msra.mxu0 %v718
  %833 = vmatprep.subr.mxu0 0.0
  %834 = vmatpush1.msra.mxu0 %v719
  %835 = vmatprep.subr.mxu0 0.0
  %836 = vmatpush1.msra.mxu0 %v720
  %837 = vmatprep.subr.mxu0 0.0
  %838 = vmatpush1.msra.mxu0 %v721
  %839 = vmatprep.subr.mxu0 0.0
  %840 = vmatpush1.msra.mxu0 %v722
  %841 = vmatprep.subr.mxu0 0.0
  %842 = vmatpush1.msra.mxu0 %v723
  %843 = vmatprep.subr.mxu0 0.0
  %844 = vmatpush1.msra.mxu0 %v724
  %845 = vmatprep.subr.mxu0 0.0
  %846 = vmatpush1.msra.mxu0 %v725
  %847 = vmatprep.subr.mxu0 0.0
  %848 = vmatpush1.msra.mxu0 %v726
  %849 = vmatprep.mubr.f32.mxu0 %v782
  %850 = vmatmul.mubr.f32.gmra.mrb[0].mxu0 %v781
  %v851 = vpop.f32.mrb[0].mxu0
  %v852 = vadd.f32 0.0, %v851
  %v853 = vpop.f32.mrb[0].mxu0
  %854 = vdwg.mxu0
  %855 = vmatprep.subr.mxu0 0.0
  %856 = vmatpush1.msra.mxu0 %v727
  %857 = vmatprep.subr.mxu0 0.0
  %858 = vmatpush1.msra.mxu0 %v728
  %859 = vmatprep.subr.mxu0 0.0
  %860 = vmatpush1.msra.mxu0 %v729
  %861 = vmatprep.subr.mxu0 0.0
  %862 = vmatpush1.msra.mxu0 %v730
  %863 = vmatprep.subr.mxu0 0.0
  %864 = vmatpush1.msra.mxu0 %v731
  %865 = vmatprep.subr.mxu0 0.0
  %866 = vmatpush1.msra.mxu0 %v732
  %867 = vmatprep.subr.mxu0 0.0
  %868 = vmatpush1.msra.mxu0 %v733
  %869 = vmatprep.subr.mxu0 0.0
  %870 = vmatpush1.msra.mxu0 %v734
  %871 = vmatprep.subr.mxu0 0.0
  %872 = vmatpush1.msra.mxu0 %v735
  %873 = vmatprep.subr.mxu0 0.0
  %874 = vmatpush1.msra.mxu0 %v736
  %875 = vmatprep.subr.mxu0 0.0
  %876 = vmatpush1.msra.mxu0 %v737
  %877 = vmatprep.subr.mxu0 0.0
  %878 = vmatpush1.msra.mxu0 %v738
  %879 = vmatprep.subr.mxu0 0.0
  %880 = vmatpush1.msra.mxu0 %v739
  %881 = vmatprep.subr.mxu0 0.0
  %882 = vmatpush1.msra.mxu0 %v740
  %883 = vmatprep.subr.mxu0 0.0
  %884 = vmatpush1.msra.mxu0 %v741
  %885 = vmatprep.subr.mxu0 0.0
  %886 = vmatpush1.msra.mxu0 %v742
  %887 = vmatprep.subr.mxu0 0.0
  %888 = vmatpush1.msra.mxu0 %v743
  %889 = vmatprep.subr.mxu0 0.0
  %890 = vmatpush1.msra.mxu0 %v744
  %891 = vmatprep.subr.mxu0 0.0
  %892 = vmatpush1.msra.mxu0 %v745
  %893 = vmatprep.subr.mxu0 0.0
  %894 = vmatpush1.msra.mxu0 %v746
  %895 = vmatprep.subr.mxu0 0.0
  %896 = vmatpush1.msra.mxu0 %v747
  %897 = vmatprep.subr.mxu0 0.0
  %898 = vmatpush1.msra.mxu0 %v748
  %899 = vmatprep.subr.mxu0 0.0
  %900 = vmatpush1.msra.mxu0 %v749
  %901 = vmatprep.subr.mxu0 0.0
  %902 = vmatpush1.msra.mxu0 %v750
  %903 = vmatprep.subr.mxu0 0.0
  %904 = vmatpush1.msra.mxu0 %v751
  %905 = vmatprep.subr.mxu0 0.0
  %906 = vmatpush1.msra.mxu0 %v752
  %907 = vmatprep.subr.mxu0 0.0
  %908 = vmatpush1.msra.mxu0 %v753
  %909 = vmatprep.subr.mxu0 0.0
  %910 = vmatpush1.msra.mxu0 %v754
  %911 = vmatprep.subr.mxu0 0.0
  %912 = vmatpush1.msra.mxu0 %v755
  %913 = vmatprep.subr.mxu0 0.0
  %914 = vmatpush1.msra.mxu0 %v756
  %915 = vmatprep.subr.mxu0 0.0
  %916 = vmatpush1.msra.mxu0 %v757
  %917 = vmatprep.subr.mxu0 0.0
  %918 = vmatpush1.msra.mxu0 %v758
  %919 = vmatprep.mubr.f32.mxu0 %v784
  %920 = vmatmul.mubr.f32.gmra.mrb[0].mxu0 %v783
  %v921 = vpop.f32.mrb[0].mxu0
  %v922 = vadd.f32 %v852, %v921
  %v923 = vpop.f32.mrb[0].mxu0
  %924 = vdwg.mxu0
  %v925 = vld [vmem:[%s4] sm:$0xff]
  %v926 = vld [vmem:[%s4 + $0x8] sm:$0xff]
  %v927 = vld [vmem:[%s4 + $0x10] sm:$0xff]
  %v928 = vld [vmem:[%s4 + $0x18] sm:$0xff]
  %v929 = vld [vmem:[%s4 + $0x20] sm:$0xff]
  %v930 = vld [vmem:[%s4 + $0x28] sm:$0xff]
  %v931 = vld [vmem:[%s4 + $0x30] sm:$0xff]
  %v932 = vld [vmem:[%s4 + $0x38] sm:$0xff]
  %v933 = vld [vmem:[%s4 + $0x40] sm:$0xff]
  %v934 = vld [vmem:[%s4 + $0x48] sm:$0xff]
  %v935 = vld [vmem:[%s4 + $0x50] sm:$0xff]
  %v936 = vld [vmem:[%s4 + $0x58] sm:$0xff]
  %v937 = vld [vmem:[%s4 + $0x60] sm:$0xff]
  %v938 = vld [vmem:[%s4 + $0x68] sm:$0xff]
  %v939 = vld [vmem:[%s4 + $0x70] sm:$0xff]
  %v940 = vld [vmem:[%s4 + $0x78] sm:$0xff]
  %v941 = vld [vmem:[%s5] sm:$0x1]
  %v943 = vlaneseq
  %v944 = vshrl.u32 %v943, 7
  %v945 = vsub.s32 0, %v944
  %v946 = vrot.slane %v941, %v945
  %948 = vmatprep.subr.mxu0 0.0
  %949 = vmatpush1.msra.mxu0 %v925
  %950 = vmatprep.subr.mxu0 0.0
  %951 = vmatpush1.msra.mxu0 %v926
  %952 = vmatprep.subr.mxu0 0.0
  %953 = vmatpush1.msra.mxu0 %v927
  %954 = vmatprep.subr.mxu0 0.0
  %955 = vmatpush1.msra.mxu0 %v928
  %956 = vmatprep.subr.mxu0 0.0
  %957 = vmatpush1.msra.mxu0 %v929
  %958 = vmatprep.subr.mxu0 0.0
  %959 = vmatpush1.msra.mxu0 %v930
  %960 = vmatprep.subr.mxu0 0.0
  %961 = vmatpush1.msra.mxu0 %v931
  %962 = vmatprep.subr.mxu0 0.0
  %963 = vmatpush1.msra.mxu0 %v932
  %964 = vmatprep.subr.mxu0 0.0
  %965 = vmatpush1.msra.mxu0 %v933
  %966 = vmatprep.subr.mxu0 0.0
  %967 = vmatpush1.msra.mxu0 %v934
  %968 = vmatprep.subr.mxu0 0.0
  %969 = vmatpush1.msra.mxu0 %v935
  %970 = vmatprep.subr.mxu0 0.0
  %971 = vmatpush1.msra.mxu0 %v936
  %972 = vmatprep.subr.mxu0 0.0
  %973 = vmatpush1.msra.mxu0 %v937
  %974 = vmatprep.subr.mxu0 0.0
  %975 = vmatpush1.msra.mxu0 %v938
  %976 = vmatprep.subr.mxu0 0.0
  %977 = vmatpush1.msra.mxu0 %v939
  %978 = vmatprep.subr.mxu0 0.0
  %979 = vmatpush1.msra.mxu0 %v940
  %980 = vmatprep.subr.mxu0 0.0
  %981 = vmatpush1.msra.mxu0 0.0
  %982 = vmatprep.subr.mxu0 0.0
  %983 = vmatpush1.msra.mxu0 0.0
  %984 = vmatprep.subr.mxu0 0.0
  %985 = vmatpush1.msra.mxu0 0.0
  %986 = vmatprep.subr.mxu0 0.0
  %987 = vmatpush1.msra.mxu0 0.0
  %988 = vmatprep.subr.mxu0 0.0
  %989 = vmatpush1.msra.mxu0 0.0
  %990 = vmatprep.subr.mxu0 0.0
  %991 = vmatpush1.msra.mxu0 0.0
  %992 = vmatprep.subr.mxu0 0.0
  %993 = vmatpush1.msra.mxu0 0.0
  %994 = vmatprep.subr.mxu0 0.0
  %995 = vmatpush1.msra.mxu0 0.0
  %996 = vmatprep.subr.mxu0 0.0
  %997 = vmatpush1.msra.mxu0 0.0
  %998 = vmatprep.subr.mxu0 0.0
  %999 = vmatpush1.msra.mxu0 0.0
  %1000 = vmatprep.subr.mxu0 0.0
  %1001 = vmatpush1.msra.mxu0 0.0
  %1002 = vmatprep.subr.mxu0 0.0
  %1003 = vmatpush1.msra.mxu0 0.0
  %1004 = vmatprep.subr.mxu0 0.0
  %1005 = vmatpush1.msra.mxu0 0.0
  %1006 = vmatprep.subr.mxu0 0.0
  %1007 = vmatpush1.msra.mxu0 0.0
  %1008 = vmatprep.subr.mxu0 0.0
  %1009 = vmatpush1.msra.mxu0 0.0
  %1010 = vmatprep.subr.mxu0 0.0
  %1011 = vmatpush1.msra.mxu0 0.0
  %1012 = vmatprep.mubr.f32.mxu0 0.0
  %1013 = vmatmul.mubr.f32.gmra.mrb[0].mxu0 %v922
  %v1014 = vpop.f32.mrb[0].mxu0
  %v1015 = vadd.f32 %v946, %v1014
  %v1016 = vpop.f32.mrb[0].mxu0
  %1017 = vdwg.mxu0
  %v1018 = vld [vmem:[%s6] sm:$0xff]
  %v1019 = vld [vmem:[%s6 + $0x8] sm:$0xff]
  %v1020 = vld [vmem:[%s6 + $0x10] sm:$0xff]
  %v1021 = vld [vmem:[%s6 + $0x18] sm:$0xff]
  %v1022 = vld [vmem:[%s6 + $0x20] sm:$0xff]
  %v1023 = vld [vmem:[%s6 + $0x28] sm:$0xff]
  %v1024 = vld [vmem:[%s6 + $0x30] sm:$0xff]
  %v1025 = vld [vmem:[%s6 + $0x38] sm:$0xff]
  %v1026 = vld [vmem:[%s6 + $0x40] sm:$0xff]
  %v1027 = vld [vmem:[%s6 + $0x48] sm:$0xff]
  %v1028 = vld [vmem:[%s6 + $0x50] sm:$0xff]
  %v1029 = vld [vmem:[%s6 + $0x58] sm:$0xff]
  %v1030 = vld [vmem:[%s6 + $0x60] sm:$0xff]
  %v1031 = vld [vmem:[%s6 + $0x68] sm:$0xff]
  %v1032 = vld [vmem:[%s6 + $0x70] sm:$0xff]
  %v1033 = vld [vmem:[%s6 + $0x78] sm:$0xff]
  %v1034 = vld [vmem:[%s6 + $0x80] sm:$0xff]
  %v1035 = vld [vmem:[%s6 + $0x88] sm:$0xff]
  %v1036 = vld [vmem:[%s6 + $0x90] sm:$0xff]
  %v1037 = vld [vmem:[%s6 + $0x98] sm:$0xff]
  %v1038 = vld [vmem:[%s6 + $0xa0] sm:$0xff]
  %v1039 = vld [vmem:[%s6 + $0xa8] sm:$0xff]
  %v1040 = vld [vmem:[%s6 + $0xb0] sm:$0xff]
  %v1041 = vld [vmem:[%s6 + $0xb8] sm:$0xff]
  %v1042 = vld [vmem:[%s6 + $0xc0] sm:$0xff]
  %v1043 = vld [vmem:[%s6 + $0xc8] sm:$0xff]
  %v1044 = vld [vmem:[%s6 + $0xd0] sm:$0xff]
  %v1045 = vld [vmem:[%s6 + $0xd8] sm:$0xff]
  %v1046 = vld [vmem:[%s6 + $0xe0] sm:$0xff]
  %v1047 = vld [vmem:[%s6 + $0xe8] sm:$0xff]
  %v1048 = vld [vmem:[%s6 + $0xf0] sm:$0xff]
  %v1049 = vld [vmem:[%s6 + $0xf8] sm:$0xff]
  %v1050 = vld [vmem:[%s6 + $0x100] sm:$0xff]
  %v1051 = vld [vmem:[%s6 + $0x108] sm:$0xff]
  %v1052 = vld [vmem:[%s6 + $0x110] sm:$0xff]
  %v1053 = vld [vmem:[%s6 + $0x118] sm:$0xff]
  %v1054 = vld [vmem:[%s6 + $0x120] sm:$0xff]
  %v1055 = vld [vmem:[%s6 + $0x128] sm:$0xff]
  %v1056 = vld [vmem:[%s6 + $0x130] sm:$0xff]
  %v1057 = vld [vmem:[%s6 + $0x138] sm:$0xff]
  %v1058 = vld [vmem:[%s6 + $0x140] sm:$0xff]
  %v1059 = vld [vmem:[%s6 + $0x148] sm:$0xff]
  %v1060 = vld [vmem:[%s6 + $0x150] sm:$0xff]
  %v1061 = vld [vmem:[%s6 + $0x158] sm:$0xff]
  %v1062 = vld [vmem:[%s6 + $0x160] sm:$0xff]
  %v1063 = vld [vmem:[%s6 + $0x168] sm:$0xff]
  %v1064 = vld [vmem:[%s6 + $0x170] sm:$0xff]
  %v1065 = vld [vmem:[%s6 + $0x178] sm:$0xff]
  %v1066 = vld [vmem:[%s6 + $0x180] sm:$0xff]
  %v1067 = vld [vmem:[%s6 + $0x188] sm:$0xff]
  %v1068 = vld [vmem:[%s6 + $0x190] sm:$0xff]
  %v1069 = vld [vmem:[%s6 + $0x198] sm:$0xff]
  %v1070 = vld [vmem:[%s6 + $0x1a0] sm:$0xff]
  %v1071 = vld [vmem:[%s6 + $0x1a8] sm:$0xff]
  %v1072 = vld [vmem:[%s6 + $0x1b0] sm:$0xff]
  %v1073 = vld [vmem:[%s6 + $0x1b8] sm:$0xff]
  %v1074 = vld [vmem:[%s6 + $0x1c0] sm:$0xff]
  %v1075 = vld [vmem:[%s6 + $0x1c8] sm:$0xff]
  %v1076 = vld [vmem:[%s6 + $0x1d0] sm:$0xff]
  %v1077 = vld [vmem:[%s6 + $0x1d8] sm:$0xff]
  %v1078 = vld [vmem:[%s6 + $0x1e0] sm:$0xff]
  %v1079 = vld [vmem:[%s6 + $0x1e8] sm:$0xff]
  %v1080 = vld [vmem:[%s6 + $0x1f0] sm:$0xff]
  %v1081 = vld [vmem:[%s6 + $0x1f8] sm:$0xff]
  %v1082 = vld [vmem:[%s7] sm:$0xff]
  %v1083 = vld [vmem:[%s7 + $0x8] sm:$0xff]
  %v1084 = vld [vmem:[%s7 + $0x10] sm:$0xff]
  %v1085 = vld [vmem:[%s7 + $0x18] sm:$0xff]
  %v1086 = vld [vmem:[%s7 + $0x20] sm:$0xff]
  %v1087 = vld [vmem:[%s7 + $0x28] sm:$0xff]
  %v1088 = vld [vmem:[%s7 + $0x30] sm:$0xff]
  %v1089 = vld [vmem:[%s7 + $0x38] sm:$0xff]
  %v1090 = vld [vmem:[%s7 + $0x40] sm:$0xff]
  %v1091 = vld [vmem:[%s7 + $0x48] sm:$0xff]
  %v1092 = vld [vmem:[%s7 + $0x50] sm:$0xff]
  %v1093 = vld [vmem:[%s7 + $0x58] sm:$0xff]
  %v1094 = vld [vmem:[%s7 + $0x60] sm:$0xff]
  %v1095 = vld [vmem:[%s7 + $0x68] sm:$0xff]
  %v1096 = vld [vmem:[%s7 + $0x70] sm:$0xff]
  %v1097 = vld [vmem:[%s7 + $0x78] sm:$0xff]
  %v1098 = vld [vmem:[%s7 + $0x80] sm:$0xff]
  %v1099 = vld [vmem:[%s7 + $0x88] sm:$0xff]
  %v1100 = vld [vmem:[%s7 + $0x90] sm:$0xff]
  %v1101 = vld [vmem:[%s7 + $0x98] sm:$0xff]
  %v1102 = vld [vmem:[%s7 + $0xa0] sm:$0xff]
  %v1103 = vld [vmem:[%s7 + $0xa8] sm:$0xff]
  %v1104 = vld [vmem:[%s7 + $0xb0] sm:$0xff]
  %v1105 = vld [vmem:[%s7 + $0xb8] sm:$0xff]
  %v1106 = vld [vmem:[%s7 + $0xc0] sm:$0xff]
  %v1107 = vld [vmem:[%s7 + $0xc8] sm:$0xff]
  %v1108 = vld [vmem:[%s7 + $0xd0] sm:$0xff]
  %v1109 = vld [vmem:[%s7 + $0xd8] sm:$0xff]
  %v1110 = vld [vmem:[%s7 + $0xe0] sm:$0xff]
  %v1111 = vld [vmem:[%s7 + $0xe8] sm:$0xff]
  %v1112 = vld [vmem:[%s7 + $0xf0] sm:$0xff]
  %v1113 = vld [vmem:[%s7 + $0xf8] sm:$0xff]
  %v1114 = vld [vmem:[%s7 + $0x100] sm:$0xff]
  %v1115 = vld [vmem:[%s7 + $0x108] sm:$0xff]
  %v1116 = vld [vmem:[%s7 + $0x110] sm:$0xff]
  %v1117 = vld [vmem:[%s7 + $0x118] sm:$0xff]
  %v1118 = vld [vmem:[%s7 + $0x120] sm:$0xff]
  %v1119 = vld [vmem:[%s7 + $0x128] sm:$0xff]
  %v1120 = vld [vmem:[%s7 + $0x130] sm:$0xff]
  %v1121 = vld [vmem:[%s7 + $0x138] sm:$0xff]
  %v1122 = vld [vmem:[%s7 + $0x140] sm:$0xff]
  %v1123 = vld [vmem:[%s7 + $0x148] sm:$0xff]
  %v1124 = vld [vmem:[%s7 + $0x150] sm:$0xff]
  %v1125 = vld [vmem:[%s7 + $0x158] sm:$0xff]
  %v1126 = vld [vmem:[%s7 + $0x160] sm:$0xff]
  %v1127 = vld [vmem:[%s7 + $0x168] sm:$0xff]
  %v1128 = vld [vmem:[%s7 + $0x170] sm:$0xff]
  %v1129 = vld [vmem:[%s7 + $0x178] sm:$0xff]
  %v1130 = vld [vmem:[%s7 + $0x180] sm:$0xff]
  %v1131 = vld [vmem:[%s7 + $0x188] sm:$0xff]
  %v1132 = vld [vmem:[%s7 + $0x190] sm:$0xff]
  %v1133 = vld [vmem:[%s7 + $0x198] sm:$0xff]
  %v1134 = vld [vmem:[%s7 + $0x1a0] sm:$0xff]
  %v1135 = vld [vmem:[%s7 + $0x1a8] sm:$0xff]
  %v1136 = vld [vmem:[%s7 + $0x1b0] sm:$0xff]
  %v1137 = vld [vmem:[%s7 + $0x1b8] sm:$0xff]
  %v1138 = vld [vmem:[%s7 + $0x1c0] sm:$0xff]
  %v1139 = vld [vmem:[%s7 + $0x1c8] sm:$0xff]
  %v1140 = vld [vmem:[%s7 + $0x1d0] sm:$0xff]
  %v1141 = vld [vmem:[%s7 + $0x1d8] sm:$0xff]
  %v1142 = vld [vmem:[%s7 + $0x1e0] sm:$0xff]
  %v1143 = vld [vmem:[%s7 + $0x1e8] sm:$0xff]
  %v1144 = vld [vmem:[%s7 + $0x1f0] sm:$0xff]
  %v1145 = vld [vmem:[%s7 + $0x1f8] sm:$0xff]
  %v1146 = vld [vmem:[%s9] sm:$0xff]
  %v1147 = vld [vmem:[%s9 + $0x8] sm:$0xff]
  %v1148 = vld [vmem:[%s9 + $0x10] sm:$0xff]
  %v1149 = vld [vmem:[%s9 + $0x18] sm:$0xff]
  %v1150 = vld [vmem:[%s9 + $0x20] sm:$0xff]
  %v1151 = vld [vmem:[%s9 + $0x28] sm:$0xff]
  %v1152 = vld [vmem:[%s9 + $0x30] sm:$0xff]
  %v1153 = vld [vmem:[%s9 + $0x38] sm:$0xff]
  %v1154 = vld [vmem:[%s9 + $0x40] sm:$0xff]
  %v1155 = vld [vmem:[%s9 + $0x48] sm:$0xff]
  %v1156 = vld [vmem:[%s9 + $0x50] sm:$0xff]
  %v1157 = vld [vmem:[%s9 + $0x58] sm:$0xff]
  %v1158 = vld [vmem:[%s9 + $0x60] sm:$0xff]
  %v1159 = vld [vmem:[%s9 + $0x68] sm:$0xff]
  %v1160 = vld [vmem:[%s9 + $0x70] sm:$0xff]
  %v1161 = vld [vmem:[%s9 + $0x78] sm:$0xff]
  %v1162 = vld [vmem:[%s9 + $0x80] sm:$0xff]
  %v1163 = vld [vmem:[%s9 + $0x88] sm:$0xff]
  %v1164 = vld [vmem:[%s9 + $0x90] sm:$0xff]
  %v1165 = vld [vmem:[%s9 + $0x98] sm:$0xff]
  %v1166 = vld [vmem:[%s9 + $0xa0] sm:$0xff]
  %v1167 = vld [vmem:[%s9 + $0xa8] sm:$0xff]
  %v1168 = vld [vmem:[%s9 + $0xb0] sm:$0xff]
  %v1169 = vld [vmem:[%s9 + $0xb8] sm:$0xff]
  %v1170 = vld [vmem:[%s9 + $0xc0] sm:$0xff]
  %v1171 = vld [vmem:[%s9 + $0xc8] sm:$0xff]
  %v1172 = vld [vmem:[%s9 + $0xd0] sm:$0xff]
  %v1173 = vld [vmem:[%s9 + $0xd8] sm:$0xff]
  %v1174 = vld [vmem:[%s9 + $0xe0] sm:$0xff]
  %v1175 = vld [vmem:[%s9 + $0xe8] sm:$0xff]
  %v1176 = vld [vmem:[%s9 + $0xf0] sm:$0xff]
  %v1177 = vld [vmem:[%s9 + $0xf8] sm:$0xff]
  %v1178 = vld [vmem:[%s8] sm:$0xf]
  %v1180 = vlaneseq
  %v1181 = vshrl.u32 %v1180, 7
  %v1182 = vsub.s32 0, %v1181
  %v1183 = vrot.slane %v1178, %v1182
  %v1184 = vlaneseq
  %v1185 = vshrl.u32 %v1184, 7
  %v1186 = vsub.s32 1, %v1185
  %v1187 = vrot.slane %v1178, %v1186
  %v1188 = vlaneseq
  %v1189 = vshrl.u32 %v1188, 7
  %v1190 = vsub.s32 2, %v1189
  %v1191 = vrot.slane %v1178, %v1190
  %v1192 = vlaneseq
  %v1193 = vshrl.u32 %v1192, 7
  %v1194 = vsub.s32 3, %v1193
  %v1195 = vrot.slane %v1178, %v1194
  %v1200 = vld [vmem:[%s10] sm:$0x3]
  %v1202 = vlaneseq
  %v1203 = vshrl.u32 %v1202, 7
  %v1204 = vsub.s32 0, %v1203
  %v1205 = vrot.slane %v1200, %v1204
  %v1206 = vlaneseq
  %v1207 = vshrl.u32 %v1206, 7
  %v1208 = vsub.s32 1, %v1207
  %v1209 = vrot.slane %v1200, %v1208
  %1212 = vmatprep.subr.mxu0 %v1083
  %1213 = vmatpush1.msra.mxu0 %v1082
  %1214 = vmatprep.subr.mxu0 %v1087
  %1215 = vmatpush1.msra.mxu0 %v1086
  %1216 = vmatprep.subr.mxu0 %v1091
  %1217 = vmatpush1.msra.mxu0 %v1090
  %1218 = vmatprep.subr.mxu0 %v1095
  %1219 = vmatpush1.msra.mxu0 %v1094
  %1220 = vmatprep.subr.mxu0 %v1099
  %1221 = vmatpush1.msra.mxu0 %v1098
  %1222 = vmatprep.subr.mxu0 %v1103
  %1223 = vmatpush1.msra.mxu0 %v1102
  %1224 = vmatprep.subr.mxu0 %v1107
  %1225 = vmatpush1.msra.mxu0 %v1106
  %1226 = vmatprep.subr.mxu0 %v1111
  %1227 = vmatpush1.msra.mxu0 %v1110
  %1228 = vmatprep.subr.mxu0 %v1115
  %1229 = vmatpush1.msra.mxu0 %v1114
  %1230 = vmatprep.subr.mxu0 %v1119
  %1231 = vmatpush1.msra.mxu0 %v1118
  %1232 = vmatprep.subr.mxu0 %v1123
  %1233 = vmatpush1.msra.mxu0 %v1122
  %1234 = vmatprep.subr.mxu0 %v1127
  %1235 = vmatpush1.msra.mxu0 %v1126
  %1236 = vmatprep.subr.mxu0 %v1131
  %1237 = vmatpush1.msra.mxu0 %v1130
  %1238 = vmatprep.subr.mxu0 %v1135
  %1239 = vmatpush1.msra.mxu0 %v1134
  %1240 = vmatprep.subr.mxu0 %v1139
  %1241 = vmatpush1.msra.mxu0 %v1138
  %1242 = vmatprep.subr.mxu0 %v1143
  %1243 = vmatpush1.msra.mxu0 %v1142
  %1244 = vmatprep.subr.mxu0 0.0
  %1245 = vmatpush1.msra.mxu0 0.0
  %1246 = vmatprep.subr.mxu0 0.0
  %1247 = vmatpush1.msra.mxu0 0.0
  %1248 = vmatprep.subr.mxu0 0.0
  %1249 = vmatpush1.msra.mxu0 0.0
  %1250 = vmatprep.subr.mxu0 0.0
  %1251 = vmatpush1.msra.mxu0 0.0
  %1252 = vmatprep.subr.mxu0 0.0
  %1253 = vmatpush1.msra.mxu0 0.0
  %1254 = vmatprep.subr.mxu0 0.0
  %1255 = vmatpush1.msra.mxu0 0.0
  %1256 = vmatprep.subr.mxu0 0.0
  %1257 = vmatpush1.msra.mxu0 0.0
  %1258 = vmatprep.subr.mxu0 0.0
  %1259 = vmatpush1.msra.mxu0 0.0
  %1260 = vmatprep.subr.mxu0 0.0
  %1261 = vmatpush1.msra.mxu0 0.0
  %1262 = vmatprep.subr.mxu0 0.0
  %1263 = vmatpush1.msra.mxu0 0.0
  %1264 = vmatprep.subr.mxu0 0.0
  %1265 = vmatpush1.msra.mxu0 0.0
  %1266 = vmatprep.subr.mxu0 0.0
  %1267 = vmatpush1.msra.mxu0 0.0
  %1268 = vmatprep.subr.mxu0 0.0
  %1269 = vmatpush1.msra.mxu0 0.0
  %1270 = vmatprep.subr.mxu0 0.0
  %1271 = vmatpush1.msra.mxu0 0.0
  %1272 = vmatprep.subr.mxu0 0.0
  %1273 = vmatpush1.msra.mxu0 0.0
  %1274 = vmatprep.subr.mxu0 0.0
  %1275 = vmatpush1.msra.mxu0 0.0
  %1276 = vmatprep.mubr.f32.mxu0 0.0
  %1277 = vmatmul.mubr.f32.gmra.mrb[0].mxu0 0.0
  %v1278 = vpop.f32.mrb[0].mxu0
  %v1279 = vadd.f32 0.0, %v1278
  %v1280 = vpop.f32.mrb[0].mxu0
  %v1281 = vadd.f32 0.0, %v1280
  %1282 = vdwg.mxu0
  %1283 = vmatprep.subr.mxu0 %v1085
  %1284 = vmatpush1.msra.mxu0 %v1084
  %1285 = vmatprep.subr.mxu0 %v1089
  %1286 = vmatpush1.msra.mxu0 %v1088
  %1287 = vmatprep.subr.mxu0 %v1093
  %1288 = vmatpush1.msra.mxu0 %v1092
  %1289 = vmatprep.subr.mxu0 %v1097
  %1290 = vmatpush1.msra.mxu0 %v1096
  %1291 = vmatprep.subr.mxu0 %v1101
  %1292 = vmatpush1.msra.mxu0 %v1100
  %1293 = vmatprep.subr.mxu0 %v1105
  %1294 = vmatpush1.msra.mxu0 %v1104
  %1295 = vmatprep.subr.mxu0 %v1109
  %1296 = vmatpush1.msra.mxu0 %v1108
  %1297 = vmatprep.subr.mxu0 %v1113
  %1298 = vmatpush1.msra.mxu0 %v1112
  %1299 = vmatprep.subr.mxu0 %v1117
  %1300 = vmatpush1.msra.mxu0 %v1116
  %1301 = vmatprep.subr.mxu0 %v1121
  %1302 = vmatpush1.msra.mxu0 %v1120
  %1303 = vmatprep.subr.mxu0 %v1125
  %1304 = vmatpush1.msra.mxu0 %v1124
  %1305 = vmatprep.subr.mxu0 %v1129
  %1306 = vmatpush1.msra.mxu0 %v1128
  %1307 = vmatprep.subr.mxu0 %v1133
  %1308 = vmatpush1.msra.mxu0 %v1132
  %1309 = vmatprep.subr.mxu0 %v1137
  %1310 = vmatpush1.msra.mxu0 %v1136
  %1311 = vmatprep.subr.mxu0 %v1141
  %1312 = vmatpush1.msra.mxu0 %v1140
  %1313 = vmatprep.subr.mxu0 %v1145
  %1314 = vmatpush1.msra.mxu0 %v1144
  %1315 = vmatprep.subr.mxu0 0.0
  %1316 = vmatpush1.msra.mxu0 0.0
  %1317 = vmatprep.subr.mxu0 0.0
  %1318 = vmatpush1.msra.mxu0 0.0
  %1319 = vmatprep.subr.mxu0 0.0
  %1320 = vmatpush1.msra.mxu0 0.0
  %1321 = vmatprep.subr.mxu0 0.0
  %1322 = vmatpush1.msra.mxu0 0.0
  %1323 = vmatprep.subr.mxu0 0.0
  %1324 = vmatpush1.msra.mxu0 0.0
  %1325 = vmatprep.subr.mxu0 0.0
  %1326 = vmatpush1.msra.mxu0 0.0
  %1327 = vmatprep.subr.mxu0 0.0
  %1328 = vmatpush1.msra.mxu0 0.0
  %1329 = vmatprep.subr.mxu0 0.0
  %1330 = vmatpush1.msra.mxu0 0.0
  %1331 = vmatprep.subr.mxu0 0.0
  %1332 = vmatpush1.msra.mxu0 0.0
  %1333 = vmatprep.subr.mxu0 0.0
  %1334 = vmatpush1.msra.mxu0 0.0
  %1335 = vmatprep.subr.mxu0 0.0
  %1336 = vmatpush1.msra.mxu0 0.0
  %1337 = vmatprep.subr.mxu0 0.0
  %1338 = vmatpush1.msra.mxu0 0.0
  %1339 = vmatprep.subr.mxu0 0.0
  %1340 = vmatpush1.msra.mxu0 0.0
  %1341 = vmatprep.subr.mxu0 0.0
  %1342 = vmatpush1.msra.mxu0 0.0
  %1343 = vmatprep.subr.mxu0 0.0
  %1344 = vmatpush1.msra.mxu0 0.0
  %1345 = vmatprep.subr.mxu0 0.0
  %1346 = vmatpush1.msra.mxu0 0.0
  %1347 = vmatprep.mubr.f32.mxu0 0.0
  %1348 = vmatmul.mubr.f32.gmra.mrb[0].mxu0 0.0
  %v1349 = vpop.f32.mrb[0].mxu0
  %v1350 = vadd.f32 0.0, %v1349
  %v1351 = vpop.f32.mrb[0].mxu0
  %v1352 = vadd.f32 0.0, %v1351
  %1353 = vdwg.mxu0
  %1354 = vmatprep.subr.mxu0 %v1019
  %1355 = vmatpush1.msra.mxu0 %v1018
  %1356 = vmatprep.subr.mxu0 %v1023
  %1357 = vmatpush1.msra.mxu0 %v1022
  %1358 = vmatprep.subr.mxu0 %v1027
  %1359 = vmatpush1.msra.mxu0 %v1026
  %1360 = vmatprep.subr.mxu0 %v1031
  %1361 = vmatpush1.msra.mxu0 %v1030
  %1362 = vmatprep.subr.mxu0 %v1035
  %1363 = vmatpush1.msra.mxu0 %v1034
  %1364 = vmatprep.subr.mxu0 %v1039
  %1365 = vmatpush1.msra.mxu0 %v1038
  %1366 = vmatprep.subr.mxu0 %v1043
  %1367 = vmatpush1.msra.mxu0 %v1042
  %1368 = vmatprep.subr.mxu0 %v1047
  %1369 = vmatpush1.msra.mxu0 %v1046
  %1370 = vmatprep.subr.mxu0 %v1051
  %1371 = vmatpush1.msra.mxu0 %v1050
  %1372 = vmatprep.subr.mxu0 %v1055
  %1373 = vmatpush1.msra.mxu0 %v1054
  %1374 = vmatprep.subr.mxu0 %v1059
  %1375 = vmatpush1.msra.mxu0 %v1058
  %1376 = vmatprep.subr.mxu0 %v1063
  %1377 = vmatpush1.msra.mxu0 %v1062
  %1378 = vmatprep.subr.mxu0 %v1067
  %1379 = vmatpush1.msra.mxu0 %v1066
  %1380 = vmatprep.subr.mxu0 %v1071
  %1381 = vmatpush1.msra.mxu0 %v1070
  %1382 = vmatprep.subr.mxu0 %v1075
  %1383 = vmatpush1.msra.mxu0 %v1074
  %1384 = vmatprep.subr.mxu0 %v1079
  %1385 = vmatpush1.msra.mxu0 %v1078
  %1386 = vmatprep.subr.mxu0 0.0
  %1387 = vmatpush1.msra.mxu0 0.0
  %1388 = vmatprep.subr.mxu0 0.0
  %1389 = vmatpush1.msra.mxu0 0.0
  %1390 = vmatprep.subr.mxu0 0.0
  %1391 = vmatpush1.msra.mxu0 0.0
  %1392 = vmatprep.subr.mxu0 0.0
  %1393 = vmatpush1.msra.mxu0 0.0
  %1394 = vmatprep.subr.mxu0 0.0
  %1395 = vmatpush1.msra.mxu0 0.0
  %1396 = vmatprep.subr.mxu0 0.0
  %1397 = vmatpush1.msra.mxu0 0.0
  %1398 = vmatprep.subr.mxu0 0.0
  %1399 = vmatpush1.msra.mxu0 0.0
  %1400 = vmatprep.subr.mxu0 0.0
  %1401 = vmatpush1.msra.mxu0 0.0
  %1402 = vmatprep.subr.mxu0 0.0
  %1403 = vmatpush1.msra.mxu0 0.0
  %1404 = vmatprep.subr.mxu0 0.0
  %1405 = vmatpush1.msra.mxu0 0.0
  %1406 = vmatprep.subr.mxu0 0.0
  %1407 = vmatpush1.msra.mxu0 0.0
  %1408 = vmatprep.subr.mxu0 0.0
  %1409 = vmatpush1.msra.mxu0 0.0
  %1410 = vmatprep.subr.mxu0 0.0
  %1411 = vmatpush1.msra.mxu0 0.0
  %1412 = vmatprep.subr.mxu0 0.0
  %1413 = vmatpush1.msra.mxu0 0.0
  %1414 = vmatprep.subr.mxu0 0.0
  %1415 = vmatpush1.msra.mxu0 0.0
  %1416 = vmatprep.subr.mxu0 0.0
  %1417 = vmatpush1.msra.mxu0 0.0
  %1418 = vmatprep.mubr.f32.mxu0 0.0
  %1419 = vmatmul.mubr.f32.gmra.mrb[0].mxu0 %v1015
  %v1420 = vpop.f32.mrb[0].mxu0
  %v1421 = vadd.f32 %v1279, %v1420
  %v1422 = vpop.f32.mrb[0].mxu0
  %v1423 = vadd.f32 %v1281, %v1422
  %1424 = vdwg.mxu0
  %1425 = vmatprep.subr.mxu0 %v1021
  %1426 = vmatpush1.msra.mxu0 %v1020
  %1427 = vmatprep.subr.mxu0 %v1025
  %1428 = vmatpush1.msra.mxu0 %v1024
  %1429 = vmatprep.subr.mxu0 %v1029
  %1430 = vmatpush1.msra.mxu0 %v1028
  %1431 = vmatprep.subr.mxu0 %v1033
  %1432 = vmatpush1.msra.mxu0 %v1032
  %1433 = vmatprep.subr.mxu0 %v1037
  %1434 = vmatpush1.msra.mxu0 %v1036
  %1435 = vmatprep.subr.mxu0 %v1041
  %1436 = vmatpush1.msra.mxu0 %v1040
  %1437 = vmatprep.subr.mxu0 %v1045
  %1438 = vmatpush1.msra.mxu0 %v1044
  %1439 = vmatprep.subr.mxu0 %v1049
  %1440 = vmatpush1.msra.mxu0 %v1048
  %1441 = vmatprep.subr.mxu0 %v1053
  %1442 = vmatpush1.msra.mxu0 %v1052
  %1443 = vmatprep.subr.mxu0 %v1057
  %1444 = vmatpush1.msra.mxu0 %v1056
  %1445 = vmatprep.subr.mxu0 %v1061
  %1446 = vmatpush1.msra.mxu0 %v1060
  %1447 = vmatprep.subr.mxu0 %v1065
  %1448 = vmatpush1.msra.mxu0 %v1064
  %1449 = vmatprep.subr.mxu0 %v1069
  %1450 = vmatpush1.msra.mxu0 %v1068
  %1451 = vmatprep.subr.mxu0 %v1073
  %1452 = vmatpush1.msra.mxu0 %v1072
  %1453 = vmatprep.subr.mxu0 %v1077
  %1454 = vmatpush1.msra.mxu0 %v1076
  %1455 = vmatprep.subr.mxu0 %v1081
  %1456 = vmatpush1.msra.mxu0 %v1080
  %1457 = vmatprep.subr.mxu0 0.0
  %1458 = vmatpush1.msra.mxu0 0.0
  %1459 = vmatprep.subr.mxu0 0.0
  %1460 = vmatpush1.msra.mxu0 0.0
  %1461 = vmatprep.subr.mxu0 0.0
  %1462 = vmatpush1.msra.mxu0 0.0
  %1463 = vmatprep.subr.mxu0 0.0
  %1464 = vmatpush1.msra.mxu0 0.0
  %1465 = vmatprep.subr.mxu0 0.0
  %1466 = vmatpush1.msra.mxu0 0.0
  %1467 = vmatprep.subr.mxu0 0.0
  %1468 = vmatpush1.msra.mxu0 0.0
  %1469 = vmatprep.subr.mxu0 0.0
  %1470 = vmatpush1.msra.mxu0 0.0
  %1471 = vmatprep.subr.mxu0 0.0
  %1472 = vmatpush1.msra.mxu0 0.0
  %1473 = vmatprep.subr.mxu0 0.0
  %1474 = vmatpush1.msra.mxu0 0.0
  %1475 = vmatprep.subr.mxu0 0.0
  %1476 = vmatpush1.msra.mxu0 0.0
  %1477 = vmatprep.subr.mxu0 0.0
  %1478 = vmatpush1.msra.mxu0 0.0
  %1479 = vmatprep.subr.mxu0 0.0
  %1480 = vmatpush1.msra.mxu0 0.0
  %1481 = vmatprep.subr.mxu0 0.0
  %1482 = vmatpush1.msra.mxu0 0.0
  %1483 = vmatprep.subr.mxu0 0.0
  %1484 = vmatpush1.msra.mxu0 0.0
  %1485 = vmatprep.subr.mxu0 0.0
  %1486 = vmatpush1.msra.mxu0 0.0
  %1487 = vmatprep.subr.mxu0 0.0
  %1488 = vmatpush1.msra.mxu0 0.0
  %1489 = vmatprep.mubr.f32.mxu0 0.0
  %1490 = vmatmul.mubr.f32.gmra.mrb[0].mxu0 %v1015
  %v1491 = vpop.f32.mrb[0].mxu0
  %v1492 = vadd.f32 %v1350, %v1491
  %v1493 = vpop.f32.mrb[0].mxu0
  %v1494 = vadd.f32 %v1352, %v1493
  %1495 = vdwg.mxu0
  %v1496 = vadd.f32 %v1421, %v1183
  %v1497 = vadd.f32 %v1423, %v1187
  %v1498 = vadd.f32 %v1492, %v1191
  %v1499 = vadd.f32 %v1494, %v1195
  %v1500 = vxor.u32 %v1496, 2147483648
  %v1501 = vmul.f32 %v1500, 1.442695
  %v1502 = vpow.pop %v1501
  %v1503 = vadd.f32 %v1502, 1.0
  %v1504 = vrcp.pop %v1503
  %v1505 = vmul.f32 1.0, %v1504
  %v1506 = vxor.u32 %v1497, 2147483648
  %v1507 = vmul.f32 %v1506, 1.442695
  %v1508 = vpow.pop %v1507
  %v1509 = vadd.f32 %v1508, 1.0
  %v1510 = vrcp.pop %v1509
  %v1511 = vmul.f32 1.0, %v1510
  %v1512 = vtanh.pop %v1498
  %v1513 = vxor.u32 %v1499, 2147483648
  %v1514 = vmul.f32 %v1513, 1.442695
  %v1515 = vpow.pop %v1514
  %v1516 = vadd.f32 %v1515, 1.0
  %v1517 = vrcp.pop %v1516
  %v1518 = vmul.f32 1.0, %v1517
  %v1519 = vmul.f32 %v1511, 0.0
  %v1520 = vmul.f32 %v1505, %v1512
  %v1521 = vadd.f32 %v1519, %v1520
  %v1522 = vtanh.pop %v1521
  %v1523 = vmul.f32 %v1518, %v1522
  %1524 = vmatprep.subr.mxu0 %v1147
  %1525 = vmatpush1.msra.mxu0 %v1146
  %1526 = vmatprep.subr.mxu0 %v1149
  %1527 = vmatpush1.msra.mxu0 %v1148
  %1528 = vmatprep.subr.mxu0 %v1151
  %1529 = vmatpush1.msra.mxu0 %v1150
  %1530 = vmatprep.subr.mxu0 %v1153
  %1531 = vmatpush1.msra.mxu0 %v1152
  %1532 = vmatprep.subr.mxu0 %v1155
  %1533 = vmatpush1.msra.mxu0 %v1154
  %1534 = vmatprep.subr.mxu0 %v1157
  %1535 = vmatpush1.msra.mxu0 %v1156
  %1536 = vmatprep.subr.mxu0 %v1159
  %1537 = vmatpush1.msra.mxu0 %v1158
  %1538 = vmatprep.subr.mxu0 %v1161
  %1539 = vmatpush1.msra.mxu0 %v1160
  %1540 = vmatprep.subr.mxu0 %v1163
  %1541 = vmatpush1.msra.mxu0 %v1162
  %1542 = vmatprep.subr.mxu0 %v1165
  %1543 = vmatpush1.msra.mxu0 %v1164
  %1544 = vmatprep.subr.mxu0 %v1167
  %1545 = vmatpush1.msra.mxu0 %v1166
  %1546 = vmatprep.subr.mxu0 %v1169
  %1547 = vmatpush1.msra.mxu0 %v1168
  %1548 = vmatprep.subr.mxu0 %v1171
  %1549 = vmatpush1.msra.mxu0 %v1170
  %1550 = vmatprep.subr.mxu0 %v1173
  %1551 = vmatpush1.msra.mxu0 %v1172
  %1552 = vmatprep.subr.mxu0 %v1175
  %1553 = vmatpush1.msra.mxu0 %v1174
  %1554 = vmatprep.subr.mxu0 %v1177
  %1555 = vmatpush1.msra.mxu0 %v1176
  %1556 = vmatprep.subr.mxu0 0.0
  %1557 = vmatpush1.msra.mxu0 0.0
  %1558 = vmatprep.subr.mxu0 0.0
  %1559 = vmatpush1.msra.mxu0 0.0
  %1560 = vmatprep.subr.mxu0 0.0
  %1561 = vmatpush1.msra.mxu0 0.0
  %1562 = vmatprep.subr.mxu0 0.0
  %1563 = vmatpush1.msra.mxu0 0.0
  %1564 = vmatprep.subr.mxu0 0.0
  %1565 = vmatpush1.msra.mxu0 0.0
  %1566 = vmatprep.subr.mxu0 0.0
  %1567 = vmatpush1.msra.mxu0 0.0
  %1568 = vmatprep.subr.mxu0 0.0
  %1569 = vmatpush1.msra.mxu0 0.0
  %1570 = vmatprep.subr.mxu0 0.0
  %1571 = vmatpush1.msra.mxu0 0.0
  %1572 = vmatprep.subr.mxu0 0.0
  %1573 = vmatpush1.msra.mxu0 0.0
  %1574 = vmatprep.subr.mxu0 0.0
  %1575 = vmatpush1.msra.mxu0 0.0
  %1576 = vmatprep.subr.mxu0 0.0
  %1577 = vmatpush1.msra.mxu0 0.0
  %1578 = vmatprep.subr.mxu0 0.0
  %1579 = vmatpush1.msra.mxu0 0.0
  %1580 = vmatprep.subr.mxu0 0.0
  %1581 = vmatpush1.msra.mxu0 0.0
  %1582 = vmatprep.subr.mxu0 0.0
  %1583 = vmatpush1.msra.mxu0 0.0
  %1584 = vmatprep.subr.mxu0 0.0
  %1585 = vmatpush1.msra.mxu0 0.0
  %1586 = vmatprep.subr.mxu0 0.0
  %1587 = vmatpush1.msra.mxu0 0.0
  %1588 = vmatprep.mubr.f32.mxu0 0.0
  %1589 = vmatmul.mubr.f32.gmra.mrb[0].mxu0 %v1523
  %v1590 = vpop.f32.mrb[0].mxu0
  %v1591 = vadd.f32 %v1205, %v1590
  %v1592 = vpop.f32.mrb[0].mxu0
  %v1593 = vadd.f32 %v1209, %v1592
  %1594 = vdwg.mxu0
  %v1597 = vcombine.low %v1591, %v1593
  %v1599 = vunpack.c.l.s4 1983009808
  %v1600 = vunpack.c.0.s8 %v1599
  %v1601 = vlaneseq
  %v1602 = vshrl.u32 %v1601, 7
  %v1603 = vsub.s32 %v1600, %v1602
  %v1604 = vrot.slane %v1597, %v1603
  %1606 = vst [vmem:[%s11] sm:$0xf] %v1604
  %v1607 = vld [vmem:[%s1] sm:$0x3]
  %1608 = vmatprep.subr.mxu0 %v1083
  %1609 = vmatpush1.msra.mxu0 %v1082
  %1610 = vmatprep.subr.mxu0 %v1087
  %1611 = vmatpush1.msra.mxu0 %v1086
  %1612 = vmatprep.subr.mxu0 %v1091
  %1613 = vmatpush1.msra.mxu0 %v1090
  %1614 = vmatprep.subr.mxu0 %v1095
  %1615 = vmatpush1.msra.mxu0 %v1094
  %1616 = vmatprep.subr.mxu0 %v1099
  %1617 = vmatpush1.msra.mxu0 %v1098
  %1618 = vmatprep.subr.mxu0 %v1103
  %1619 = vmatpush1.msra.mxu0 %v1102
  %1620 = vmatprep.subr.mxu0 %v1107
  %1621 = vmatpush1.msra.mxu0 %v1106
  %1622 = vmatprep.subr.mxu0 %v1111
  %1623 = vmatpush1.msra.mxu0 %v1110
  %1624 = vmatprep.subr.mxu0 %v1115
  %1625 = vmatpush1.msra.mxu0 %v1114
  %1626 = vmatprep.subr.mxu0 %v1119
  %1627 = vmatpush1.msra.mxu0 %v1118
  %1628 = vmatprep.subr.mxu0 %v1123
  %1629 = vmatpush1.msra.mxu0 %v1122
  %1630 = vmatprep.subr.mxu0 %v1127
  %1631 = vmatpush1.msra.mxu0 %v1126
  %1632 = vmatprep.subr.mxu0 %v1131
  %1633 = vmatpush1.msra.mxu0 %v1130
  %1634 = vmatprep.subr.mxu0 %v1135
  %1635 = vmatpush1.msra.mxu0 %v1134
  %1636 = vmatprep.subr.mxu0 %v1139
  %1637 = vmatpush1.msra.mxu0 %v1138
  %1638 = vmatprep.subr.mxu0 %v1143
  %1639 = vmatpush1.msra.mxu0 %v1142
  %1640 = vmatprep.subr.mxu0 0.0
  %1641 = vmatpush1.msra.mxu0 0.0
  %1642 = vmatprep.subr.mxu0 0.0
  %1643 = vmatpush1.msra.mxu0 0.0
  %1644 = vmatprep.subr.mxu0 0.0
  %1645 = vmatpush1.msra.mxu0 0.0
  %1646 = vmatprep.subr.mxu0 0.0
  %1647 = vmatpush1.msra.mxu0 0.0
  %1648 = vmatprep.subr.mxu0 0.0
  %1649 = vmatpush1.msra.mxu0 0.0
  %1650 = vmatprep.subr.mxu0 0.0
  %1651 = vmatpush1.msra.mxu0 0.0
  %1652 = vmatprep.subr.mxu0 0.0
  %1653 = vmatpush1.msra.mxu0 0.0
  %1654 = vmatprep.subr.mxu0 0.0
  %1655 = vmatpush1.msra.mxu0 0.0
  %1656 = vmatprep.subr.mxu0 0.0
  %1657 = vmatpush1.msra.mxu0 0.0
  %1658 = vmatprep.subr.mxu0 0.0
  %1659 = vmatpush1.msra.mxu0 0.0
  %1660 = vmatprep.subr.mxu0 0.0
  %1661 = vmatpush1.msra.mxu0 0.0
  %1662 = vmatprep.subr.mxu0 0.0
  %1663 = vmatpush1.msra.mxu0 0.0
  %1664 = vmatprep.subr.mxu0 0.0
  %1665 = vmatpush1.msra.mxu0 0.0
  %1666 = vmatprep.subr.mxu0 0.0
  %1667 = vmatpush1.msra.mxu0 0.0
  %1668 = vmatprep.subr.mxu0 0.0
  %1669 = vmatpush1.msra.mxu0 0.0
  %1670 = vmatprep.subr.mxu0 0.0
  %1671 = vmatpush1.msra.mxu0 0.0
  %1672 = vmatprep.mubr.f32.mxu0 0.0
  %1673 = vmatmul.mubr.f32.gmra.mrb[0].mxu0 %v1523
  %v1674 = vpop.f32.mrb[0].mxu0
  %v1675 = vadd.f32 0.0, %v1674
  %v1676 = vpop.f32.mrb[0].mxu0
  %v1677 = vadd.f32 0.0, %v1676
  %1678 = vdwg.mxu0
  %1679 = vmatprep.subr.mxu0 %v1085
  %1680 = vmatpush1.msra.mxu0 %v1084
  %1681 = vmatprep.subr.mxu0 %v1089
  %1682 = vmatpush1.msra.mxu0 %v1088
  %1683 = vmatprep.subr.mxu0 %v1093
  %1684 = vmatpush1.msra.mxu0 %v1092
  %1685 = vmatprep.subr.mxu0 %v1097
  %1686 = vmatpush1.msra.mxu0 %v1096
  %1687 = vmatprep.subr.mxu0 %v1101
  %1688 = vmatpush1.msra.mxu0 %v1100
  %1689 = vmatprep.subr.mxu0 %v1105
  %1690 = vmatpush1.msra.mxu0 %v1104
  %1691 = vmatprep.subr.mxu0 %v1109
  %1692 = vmatpush1.msra.mxu0 %v1108
  %1693 = vmatprep.subr.mxu0 %v1113
  %1694 = vmatpush1.msra.mxu0 %v1112
  %1695 = vmatprep.subr.mxu0 %v1117
  %1696 = vmatpush1.msra.mxu0 %v1116
  %1697 = vmatprep.subr.mxu0 %v1121
  %1698 = vmatpush1.msra.mxu0 %v1120
  %1699 = vmatprep.subr.mxu0 %v1125
  %1700 = vmatpush1.msra.mxu0 %v1124
  %1701 = vmatprep.subr.mxu0 %v1129
  %1702 = vmatpush1.msra.mxu0 %v1128
  %1703 = vmatprep.subr.mxu0 %v1133
  %1704 = vmatpush1.msra.mxu0 %v1132
  %1705 = vmatprep.subr.mxu0 %v1137
  %1706 = vmatpush1.msra.mxu0 %v1136
  %1707 = vmatprep.subr.mxu0 %v1141
  %1708 = vmatpush1.msra.mxu0 %v1140
  %1709 = vmatprep.subr.mxu0 %v1145
  %1710 = vmatpush1.msra.mxu0 %v1144
  %1711 = vmatprep.subr.mxu0 0.0
  %1712 = vmatpush1.msra.mxu0 0.0
  %1713 = vmatprep.subr.mxu0 0.0
  %1714 = vmatpush1.msra.mxu0 0.0
  %1715 = vmatprep.subr.mxu0 0.0
  %1716 = vmatpush1.msra.mxu0 0.0
  %1717 = vmatprep.subr.mxu0 0.0
  %1718 = vmatpush1.msra.mxu0 0.0
  %1719 = vmatprep.subr.mxu0 0.0
  %1720 = vmatpush1.msra.mxu0 0.0
  %1721 = vmatprep.subr.mxu0 0.0
  %1722 = vmatpush1.msra.mxu0 0.0
  %1723 = vmatprep.subr.mxu0 0.0
  %1724 = vmatpush1.msra.mxu0 0.0
  %1725 = vmatprep.subr.mxu0 0.0
  %1726 = vmatpush1.msra.mxu0 0.0
  %1727 = vmatprep.subr.mxu0 0.0
  %1728 = vmatpush1.msra.mxu0 0.0
  %1729 = vmatprep.subr.mxu0 0.0
  %1730 = vmatpush1.msra.mxu0 0.0
  %1731 = vmatprep.subr.mxu0 0.0
  %1732 = vmatpush1.msra.mxu0 0.0
  %1733 = vmatprep.subr.mxu0 0.0
  %1734 = vmatpush1.msra.mxu0 0.0
  %1735 = vmatprep.subr.mxu0 0.0
  %1736 = vmatpush1.msra.mxu0 0.0
  %1737 = vmatprep.subr.mxu0 0.0
  %1738 = vmatpush1.msra.mxu0 0.0
  %1739 = vmatprep.subr.mxu0 0.0
  %1740 = vmatpush1.msra.mxu0 0.0
  %1741 = vmatprep.subr.mxu0 0.0
  %1742 = vmatpush1.msra.mxu0 0.0
  %1743 = vmatprep.mubr.f32.mxu0 0.0
  %1744 = vmatmul.mubr.f32.gmra.mrb[0].mxu0 %v1523
  %v1745 = vpop.f32.mrb[0].mxu0
  %v1746 = vadd.f32 0.0, %v1745
  %v1747 = vpop.f32.mrb[0].mxu0
  %v1748 = vadd.f32 0.0, %v1747
  %1749 = vdwg.mxu0
  %1750 = vmatprep.subr.mxu0 %v1019
  %1751 = vmatpush1.msra.mxu0 %v1018
  %1752 = vmatprep.subr.mxu0 %v1023
  %1753 = vmatpush1.msra.mxu0 %v1022
  %1754 = vmatprep.subr.mxu0 %v1027
  %1755 = vmatpush1.msra.mxu0 %v1026
  %1756 = vmatprep.subr.mxu0 %v1031
  %1757 = vmatpush1.msra.mxu0 %v1030
  %1758 = vmatprep.subr.mxu0 %v1035
  %1759 = vmatpush1.msra.mxu0 %v1034
  %1760 = vmatprep.subr.mxu0 %v1039
  %1761 = vmatpush1.msra.mxu0 %v1038
  %1762 = vmatprep.subr.mxu0 %v1043
  %1763 = vmatpush1.msra.mxu0 %v1042
  %1764 = vmatprep.subr.mxu0 %v1047
  %1765 = vmatpush1.msra.mxu0 %v1046
  %1766 = vmatprep.subr.mxu0 %v1051
  %1767 = vmatpush1.msra.mxu0 %v1050
  %1768 = vmatprep.subr.mxu0 %v1055
  %1769 = vmatpush1.msra.mxu0 %v1054
  %1770 = vmatprep.subr.mxu0 %v1059
  %1771 = vmatpush1.msra.mxu0 %v1058
  %1772 = vmatprep.subr.mxu0 %v1063
  %1773 = vmatpush1.msra.mxu0 %v1062
  %1774 = vmatprep.subr.mxu0 %v1067
  %1775 = vmatpush1.msra.mxu0 %v1066
  %1776 = vmatprep.subr.mxu0 %v1071
  %1777 = vmatpush1.msra.mxu0 %v1070
  %1778 = vmatprep.subr.mxu0 %v1075
  %1779 = vmatpush1.msra.mxu0 %v1074
  %1780 = vmatprep.subr.mxu0 %v1079
  %1781 = vmatpush1.msra.mxu0 %v1078
  %1782 = vmatprep.subr.mxu0 0.0
  %1783 = vmatpush1.msra.mxu0 0.0
  %1784 = vmatprep.subr.mxu0 0.0
  %1785 = vmatpush1.msra.mxu0 0.0
  %1786 = vmatprep.subr.mxu0 0.0
  %1787 = vmatpush1.msra.mxu0 0.0
  %1788 = vmatprep.subr.mxu0 0.0
  %1789 = vmatpush1.msra.mxu0 0.0
  %1790 = vmatprep.subr.mxu0 0.0
  %1791 = vmatpush1.msra.mxu0 0.0
  %1792 = vmatprep.subr.mxu0 0.0
  %1793 = vmatpush1.msra.mxu0 0.0
  %1794 = vmatprep.subr.mxu0 0.0
  %1795 = vmatpush1.msra.mxu0 0.0
  %1796 = vmatprep.subr.mxu0 0.0
  %1797 = vmatpush1.msra.mxu0 0.0
  %1798 = vmatprep.subr.mxu0 0.0
  %1799 = vmatpush1.msra.mxu0 0.0
  %1800 = vmatprep.subr.mxu0 0.0
  %1801 = vmatpush1.msra.mxu0 0.0
  %1802 = vmatprep.subr.mxu0 0.0
  %1803 = vmatpush1.msra.mxu0 0.0
  %1804 = vmatprep.subr.mxu0 0.0
  %1805 = vmatpush1.msra.mxu0 0.0
  %1806 = vmatprep.subr.mxu0 0.0
  %1807 = vmatpush1.msra.mxu0 0.0
  %1808 = vmatprep.subr.mxu0 0.0
  %1809 = vmatpush1.msra.mxu0 0.0
  %1810 = vmatprep.subr.mxu0 0.0
  %1811 = vmatpush1.msra.mxu0 0.0
  %1812 = vmatprep.subr.mxu0 0.0
  %1813 = vmatpush1.msra.mxu0 0.0
  %1814 = vmatprep.mubr.f32.mxu0 0.0
  %1815 = vmatmul.mubr.f32.gmra.mrb[0].mxu0 %v1607
  %v1816 = vpop.f32.mrb[0].mxu0
  %v1817 = vadd.f32 %v1675, %v1816
  %v1818 = vpop.f32.mrb[0].mxu0
  %v1819 = vadd.f32 %v1677, %v1818
  %1820 = vdwg.mxu0
  %1821 = vmatprep.subr.mxu0 %v1021
  %1822 = vmatpush1.msra.mxu0 %v1020
  %1823 = vmatprep.subr.mxu0 %v1025
  %1824 = vmatpush1.msra.mxu0 %v1024
  %1825 = vmatprep.subr.mxu0 %v1029
  %1826 = vmatpush1.msra.mxu0 %v1028
  %1827 = vmatprep.subr.mxu0 %v1033
  %1828 = vmatpush1.msra.mxu0 %v1032
  %1829 = vmatprep.subr.mxu0 %v1037
  %1830 = vmatpush1.msra.mxu0 %v1036
  %1831 = vmatprep.subr.mxu0 %v1041
  %1832 = vmatpush1.msra.mxu0 %v1040
  %1833 = vmatprep.subr.mxu0 %v1045
  %1834 = vmatpush1.msra.mxu0 %v1044
  %1835 = vmatprep.subr.mxu0 %v1049
  %1836 = vmatpush1.msra.mxu0 %v1048
  %1837 = vmatprep.subr.mxu0 %v1053
  %1838 = vmatpush1.msra.mxu0 %v1052
  %1839 = vmatprep.subr.mxu0 %v1057
  %1840 = vmatpush1.msra.mxu0 %v1056
  %1841 = vmatprep.subr.mxu0 %v1061
  %1842 = vmatpush1.msra.mxu0 %v1060
  %1843 = vmatprep.subr.mxu0 %v1065
  %1844 = vmatpush1.msra.mxu0 %v1064
  %1845 = vmatprep.subr.mxu0 %v1069
  %1846 = vmatpush1.msra.mxu0 %v1068
  %1847 = vmatprep.subr.mxu0 %v1073
  %1848 = vmatpush1.msra.mxu0 %v1072
  %1849 = vmatprep.subr.mxu0 %v1077
  %1850 = vmatpush1.msra.mxu0 %v1076
  %1851 = vmatprep.subr.mxu0 %v1081
  %1852 = vmatpush1.msra.mxu0 %v1080
  %1853 = vmatprep.subr.mxu0 0.0
  %1854 = vmatpush1.msra.mxu0 0.0
  %1855 = vmatprep.subr.mxu0 0.0
  %1856 = vmatpush1.msra.mxu0 0.0
  %1857 = vmatprep.subr.mxu0 0.0
  %1858 = vmatpush1.msra.mxu0 0.0
  %1859 = vmatprep.subr.mxu0 0.0
  %1860 = vmatpush1.msra.mxu0 0.0
  %1861 = vmatprep.subr.mxu0 0.0
  %1862 = vmatpush1.msra.mxu0 0.0
  %1863 = vmatprep.subr.mxu0 0.0
  %1864 = vmatpush1.msra.mxu0 0.0
  %1865 = vmatprep.subr.mxu0 0.0
  %1866 = vmatpush1.msra.mxu0 0.0
  %1867 = vmatprep.subr.mxu0 0.0
  %1868 = vmatpush1.msra.mxu0 0.0
  %1869 = vmatprep.subr.mxu0 0.0
  %1870 = vmatpush1.msra.mxu0 0.0
  %1871 = vmatprep.subr.mxu0 0.0
  %1872 = vmatpush1.msra.mxu0 0.0
  %1873 = vmatprep.subr.mxu0 0.0
  %1874 = vmatpush1.msra.mxu0 0.0
  %1875 = vmatprep.subr.mxu0 0.0
  %1876 = vmatpush1.msra.mxu0 0.0
  %1877 = vmatprep.subr.mxu0 0.0
  %1878 = vmatpush1.msra.mxu0 0.0
  %1879 = vmatprep.subr.mxu0 0.0
  %1880 = vmatpush1.msra.mxu0 0.0
  %1881 = vmatprep.subr.mxu0 0.0
  %1882 = vmatpush1.msra.mxu0 0.0
  %1883 = vmatprep.subr.mxu0 0.0
  %1884 = vmatpush1.msra.mxu0 0.0
  %1885 = vmatprep.mubr.f32.mxu0 0.0
  %1886 = vmatmul.mubr.f32.gmra.mrb[0].mxu0 %v1607
  %v1887 = vpop.f32.mrb[0].mxu0
  %v1888 = vadd.f32 %v1746, %v1887
  %v1889 = vpop.f32.mrb[0].mxu0
  %v1890 = vadd.f32 %v1748, %v1889
  %1891 = vdwg.mxu0
  %v1892 = vadd.f32 %v1817, %v1183
  %v1893 = vadd.f32 %v1819, %v1187
  %v1894 = vadd.f32 %v1888, %v1191
  %v1895 = vadd.f32 %v1890, %v1195
  %v1896 = vxor.u32 %v1892, 2147483648
  %v1897 = vmul.f32 %v1896, 1.442695
  %v1898 = vpow.pop %v1897
  %v1899 = vadd.f32 %v1898, 1.0
  %v1900 = vrcp.pop %v1899
  %v1901 = vmul.f32 1.0, %v1900
  %v1902 = vxor.u32 %v1893, 2147483648
  %v1903 = vmul.f32 %v1902, 1.442695
  %v1904 = vpow.pop %v1903
  %v1905 = vadd.f32 %v1904, 1.0
  %v1906 = vrcp.pop %v1905
  %v1907 = vmul.f32 1.0, %v1906
  %v1908 = vtanh.pop %v1894
  %v1909 = vxor.u32 %v1895, 2147483648
  %v1910 = vmul.f32 %v1909, 1.442695
  %v1911 = vpow.pop %v1910
  %v1912 = vadd.f32 %v1911, 1.0
  %v1913 = vrcp.pop %v1912
  %v1914 = vmul.f32 1.0, %v1913
  %v1915 = vmul.f32 %v1907, %v1521
  %v1916 = vmul.f32 %v1901, %v1908
  %v1917 = vadd.f32 %v1915, %v1916
  %v1918 = vtanh.pop %v1917
  %v1919 = vmul.f32 %v1914, %v1918
  %1920 = vmatprep.subr.mxu0 %v1147
  %1921 = vmatpush1.msra.mxu0 %v1146
  %1922 = vmatprep.subr.mxu0 %v1149
  %1923 = vmatpush1.msra.mxu0 %v1148
  %1924 = vmatprep.subr.mxu0 %v1151
  %1925 = vmatpush1.msra.mxu0 %v1150
  %1926 = vmatprep.subr.mxu0 %v1153
  %1927 = vmatpush1.msra.mxu0 %v1152
  %1928 = vmatprep.subr.mxu0 %v1155
  %1929 = vmatpush1.msra.mxu0 %v1154
  %1930 = vmatprep.subr.mxu0 %v1157
  %1931 = vmatpush1.msra.mxu0 %v1156
  %1932 = vmatprep.subr.mxu0 %v1159
  %1933 = vmatpush1.msra.mxu0 %v1158
  %1934 = vmatprep.subr.mxu0 %v1161
  %1935 = vmatpush1.msra.mxu0 %v1160
  %1936 = vmatprep.subr.mxu0 %v1163
  %1937 = vmatpush1.msra.mxu0 %v1162
  %1938 = vmatprep.subr.mxu0 %v1165
  %1939 = vmatpush1.msra.mxu0 %v1164
  %1940 = vmatprep.subr.mxu0 %v1167
  %1941 = vmatpush1.msra.mxu0 %v1166
  %1942 = vmatprep.subr.mxu0 %v1169
  %1943 = vmatpush1.msra.mxu0 %v1168
  %1944 = vmatprep.subr.mxu0 %v1171
  %1945 = vmatpush1.msra.mxu0 %v1170
  %1946 = vmatprep.subr.mxu0 %v1173
  %1947 = vmatpush1.msra.mxu0 %v1172
  %1948 = vmatprep.subr.mxu0 %v1175
  %1949 = vmatpush1.msra.mxu0 %v1174
  %1950 = vmatprep.subr.mxu0 %v1177
  %1951 = vmatpush1.msra.mxu0 %v1176
  %1952 = vmatprep.subr.mxu0 0.0
  %1953 = vmatpush1.msra.mxu0 0.0
  %1954 = vmatprep.subr.mxu0 0.0
  %1955 = vmatpush1.msra.mxu0 0.0
  %1956 = vmatprep.subr.mxu0 0.0
  %1957 = vmatpush1.msra.mxu0 0.0
  %1958 = vmatprep.subr.mxu0 0.0
  %1959 = vmatpush1.msra.mxu0 0.0
  %1960 = vmatprep.subr.mxu0 0.0
  %1961 = vmatpush1.msra.mxu0 0.0
  %1962 = vmatprep.subr.mxu0 0.0
  %1963 = vmatpush1.msra.mxu0 0.0
  %1964 = vmatprep.subr.mxu0 0.0
  %1965 = vmatpush1.msra.mxu0 0.0
  %1966 = vmatprep.subr.mxu0 0.0
  %1967 = vmatpush1.msra.mxu0 0.0
  %1968 = vmatprep.subr.mxu0 0.0
  %1969 = vmatpush1.msra.mxu0 0.0
  %1970 = vmatprep.subr.mxu0 0.0
  %1971 = vmatpush1.msra.mxu0 0.0
  %1972 = vmatprep.subr.mxu0 0.0
  %1973 = vmatpush1.msra.mxu0 0.0
  %1974 = vmatprep.subr.mxu0 0.0
  %1975 = vmatpush1.msra.mxu0 0.0
  %1976 = vmatprep.subr.mxu0 0.0
  %1977 = vmatpush1.msra.mxu0 0.0
  %1978 = vmatprep.subr.mxu0 0.0
  %1979 = vmatpush1.msra.mxu0 0.0
  %1980 = vmatprep.subr.mxu0 0.0
  %1981 = vmatpush1.msra.mxu0 0.0
  %1982 = vmatprep.subr.mxu0 0.0
  %1983 = vmatpush1.msra.mxu0 0.0
  %1984 = vmatprep.mubr.f32.mxu0 0.0
  %1985 = vmatmul.mubr.f32.gmra.mrb[0].mxu0 %v1919
  %v1986 = vpop.f32.mrb[0].mxu0
  %v1987 = vadd.f32 %v1205, %v1986
  %v1988 = vpop.f32.mrb[0].mxu0
  %v1989 = vadd.f32 %v1209, %v1988
  %1990 = vdwg.mxu0
  %v1993 = vcombine.low %v1987, %v1989
  %v1995 = vunpack.c.l.s4 1983009808
  %v1996 = vunpack.c.0.s8 %v1995
  %v1997 = vlaneseq
  %v1998 = vshrl.u32 %v1997, 7
  %v1999 = vsub.s32 %v1996, %v1998
  %v2000 = vrot.slane %v1993, %v1999
  %s2002 = scalar_lea.vmem %s11, 4
  %2003 = vst [vmem:[%s2002] sm:$0xf] %v2000
  %s2004 = scalar_lea.vmem %s1, 2
  %v2005 = vld [vmem:[%s2004] sm:$0x3]
  %2006 = vmatprep.subr.mxu0 %v1083
  %2007 = vmatpush1.msra.mxu0 %v1082
  %2008 = vmatprep.subr.mxu0 %v1087
  %2009 = vmatpush1.msra.mxu0 %v1086
  %2010 = vmatprep.subr.mxu0 %v1091
  %2011 = vmatpush1.msra.mxu0 %v1090
  %2012 = vmatprep.subr.mxu0 %v1095
  %2013 = vmatpush1.msra.mxu0 %v1094
  %2014 = vmatprep.subr.mxu0 %v1099
  %2015 = vmatpush1.msra.mxu0 %v1098
  %2016 = vmatprep.subr.mxu0 %v1103
  %2017 = vmatpush1.msra.mxu0 %v1102
  %2018 = vmatprep.subr.mxu0 %v1107
  %2019 = vmatpush1.msra.mxu0 %v1106
  %2020 = vmatprep.subr.mxu0 %v1111
  %2021 = vmatpush1.msra.mxu0 %v1110
  %2022 = vmatprep.subr.mxu0 %v1115
  %2023 = vmatpush1.msra.mxu0 %v1114
  %2024 = vmatprep.subr.mxu0 %v1119
  %2025 = vmatpush1.msra.mxu0 %v1118
  %2026 = vmatprep.subr.mxu0 %v1123
  %2027 = vmatpush1.msra.mxu0 %v1122
  %2028 = vmatprep.subr.mxu0 %v1127
  %2029 = vmatpush1.msra.mxu0 %v1126
  %2030 = vmatprep.subr.mxu0 %v1131
  %2031 = vmatpush1.msra.mxu0 %v1130
  %2032 = vmatprep.subr.mxu0 %v1135
  %2033 = vmatpush1.msra.mxu0 %v1134
  %2034 = vmatprep.subr.mxu0 %v1139
  %2035 = vmatpush1.msra.mxu0 %v1138
  %2036 = vmatprep.subr.mxu0 %v1143
  %2037 = vmatpush1.msra.mxu0 %v1142
  %2038 = vmatprep.subr.mxu0 0.0
  %2039 = vmatpush1.msra.mxu0 0.0
  %2040 = vmatprep.subr.mxu0 0.0
  %2041 = vmatpush1.msra.mxu0 0.0
  %2042 = vmatprep.subr.mxu0 0.0
  %2043 = vmatpush1.msra.mxu0 0.0
  %2044 = vmatprep.subr.mxu0 0.0
  %2045 = vmatpush1.msra.mxu0 0.0
  %2046 = vmatprep.subr.mxu0 0.0
  %2047 = vmatpush1.msra.mxu0 0.0
  %2048 = vmatprep.subr.mxu0 0.0
  %2049 = vmatpush1.msra.mxu0 0.0
  %2050 = vmatprep.subr.mxu0 0.0
  %2051 = vmatpush1.msra.mxu0 0.0
  %2052 = vmatprep.subr.mxu0 0.0
  %2053 = vmatpush1.msra.mxu0 0.0
  %2054 = vmatprep.subr.mxu0 0.0
  %2055 = vmatpush1.msra.mxu0 0.0
  %2056 = vmatprep.subr.mxu0 0.0
  %2057 = vmatpush1.msra.mxu0 0.0
  %2058 = vmatprep.subr.mxu0 0.0
  %2059 = vmatpush1.msra.mxu0 0.0
  %2060 = vmatprep.subr.mxu0 0.0
  %2061 = vmatpush1.msra.mxu0 0.0
  %2062 = vmatprep.subr.mxu0 0.0
  %2063 = vmatpush1.msra.mxu0 0.0
  %2064 = vmatprep.subr.mxu0 0.0
  %2065 = vmatpush1.msra.mxu0 0.0
  %2066 = vmatprep.subr.mxu0 0.0
  %2067 = vmatpush1.msra.mxu0 0.0
  %2068 = vmatprep.subr.mxu0 0.0
  %2069 = vmatpush1.msra.mxu0 0.0
  %2070 = vmatprep.mubr.f32.mxu0 0.0
  %2071 = vmatmul.mubr.f32.gmra.mrb[0].mxu0 %v1919
  %v2072 = vpop.f32.mrb[0].mxu0
  %v2073 = vadd.f32 0.0, %v2072
  %v2074 = vpop.f32.mrb[0].mxu0
  %v2075 = vadd.f32 0.0, %v2074
  %2076 = vdwg.mxu0
  %2077 = vmatprep.subr.mxu0 %v1085
  %2078 = vmatpush1.msra.mxu0 %v1084
  %2079 = vmatprep.subr.mxu0 %v1089
  %2080 = vmatpush1.msra.mxu0 %v1088
  %2081 = vmatprep.subr.mxu0 %v1093
  %2082 = vmatpush1.msra.mxu0 %v1092
  %2083 = vmatprep.subr.mxu0 %v1097
  %2084 = vmatpush1.msra.mxu0 %v1096
  %2085 = vmatprep.subr.mxu0 %v1101
  %2086 = vmatpush1.msra.mxu0 %v1100
  %2087 = vmatprep.subr.mxu0 %v1105
  %2088 = vmatpush1.msra.mxu0 %v1104
  %2089 = vmatprep.subr.mxu0 %v1109
  %2090 = vmatpush1.msra.mxu0 %v1108
  %2091 = vmatprep.subr.mxu0 %v1113
  %2092 = vmatpush1.msra.mxu0 %v1112
  %2093 = vmatprep.subr.mxu0 %v1117
  %2094 = vmatpush1.msra.mxu0 %v1116
  %2095 = vmatprep.subr.mxu0 %v1121
  %2096 = vmatpush1.msra.mxu0 %v1120
  %2097 = vmatprep.subr.mxu0 %v1125
  %2098 = vmatpush1.msra.mxu0 %v1124
  %2099 = vmatprep.subr.mxu0 %v1129
  %2100 = vmatpush1.msra.mxu0 %v1128
  %2101 = vmatprep.subr.mxu0 %v1133
  %2102 = vmatpush1.msra.mxu0 %v1132
  %2103 = vmatprep.subr.mxu0 %v1137
  %2104 = vmatpush1.msra.mxu0 %v1136
  %2105 = vmatprep.subr.mxu0 %v1141
  %2106 = vmatpush1.msra.mxu0 %v1140
  %2107 = vmatprep.subr.mxu0 %v1145
  %2108 = vmatpush1.msra.mxu0 %v1144
  %2109 = vmatprep.subr.mxu0 0.0
  %2110 = vmatpush1.msra.mxu0 0.0
  %2111 = vmatprep.subr.mxu0 0.0
  %2112 = vmatpush1.msra.mxu0 0.0
  %2113 = vmatprep.subr.mxu0 0.0
  %2114 = vmatpush1.msra.mxu0 0.0
  %2115 = vmatprep.subr.mxu0 0.0
  %2116 = vmatpush1.msra.mxu0 0.0
  %2117 = vmatprep.subr.mxu0 0.0
  %2118 = vmatpush1.msra.mxu0 0.0
  %2119 = vmatprep.subr.mxu0 0.0
  %2120 = vmatpush1.msra.mxu0 0.0
  %2121 = vmatprep.subr.mxu0 0.0
  %2122 = vmatpush1.msra.mxu0 0.0
  %2123 = vmatprep.subr.mxu0 0.0
  %2124 = vmatpush1.msra.mxu0 0.0
  %2125 = vmatprep.subr.mxu0 0.0
  %2126 = vmatpush1.msra.mxu0 0.0
  %2127 = vmatprep.subr.mxu0 0.0
  %2128 = vmatpush1.msra.mxu0 0.0
  %2129 = vmatprep.subr.mxu0 0.0
  %2130 = vmatpush1.msra.mxu0 0.0
  %2131 = vmatprep.subr.mxu0 0.0
  %2132 = vmatpush1.msra.mxu0 0.0
  %2133 = vmatprep.subr.mxu0 0.0
  %2134 = vmatpush1.msra.mxu0 0.0
  %2135 = vmatprep.subr.mxu0 0.0
  %2136 = vmatpush1.msra.mxu0 0.0
  %2137 = vmatprep.subr.mxu0 0.0
  %2138 = vmatpush1.msra.mxu0 0.0
  %2139 = vmatprep.subr.mxu0 0.0
  %2140 = vmatpush1.msra.mxu0 0.0
  %2141 = vmatprep.mubr.f32.mxu0 0.0
  %2142 = vmatmul.mubr.f32.gmra.mrb[0].mxu0 %v1919
  %v2143 = vpop.f32.mrb[0].mxu0
  %v2144 = vadd.f32 0.0, %v2143
  %v2145 = vpop.f32.mrb[0].mxu0
  %v2146 = vadd.f32 0.0, %v2145
  %2147 = vdwg.mxu0
  %2148 = vmatprep.subr.mxu0 %v1019
  %2149 = vmatpush1.msra.mxu0 %v1018
  %2150 = vmatprep.subr.mxu0 %v1023
  %2151 = vmatpush1.msra.mxu0 %v1022
  %2152 = vmatprep.subr.mxu0 %v1027
  %2153 = vmatpush1.msra.mxu0 %v1026
  %2154 = vmatprep.subr.mxu0 %v1031
  %2155 = vmatpush1.msra.mxu0 %v1030
  %2156 = vmatprep.subr.mxu0 %v1035
  %2157 = vmatpush1.msra.mxu0 %v1034
  %2158 = vmatprep.subr.mxu0 %v1039
  %2159 = vmatpush1.msra.mxu0 %v1038
  %2160 = vmatprep.subr.mxu0 %v1043
  %2161 = vmatpush1.msra.mxu0 %v1042
  %2162 = vmatprep.subr.mxu0 %v1047
  %2163 = vmatpush1.msra.mxu0 %v1046
  %2164 = vmatprep.subr.mxu0 %v1051
  %2165 = vmatpush1.msra.mxu0 %v1050
  %2166 = vmatprep.subr.mxu0 %v1055
  %2167 = vmatpush1.msra.mxu0 %v1054
  %2168 = vmatprep.subr.mxu0 %v1059
  %2169 = vmatpush1.msra.mxu0 %v1058
  %2170 = vmatprep.subr.mxu0 %v1063
  %2171 = vmatpush1.msra.mxu0 %v1062
  %2172 = vmatprep.subr.mxu0 %v1067
  %2173 = vmatpush1.msra.mxu0 %v1066
  %2174 = vmatprep.subr.mxu0 %v1071
  %2175 = vmatpush1.msra.mxu0 %v1070
  %2176 = vmatprep.subr.mxu0 %v1075
  %2177 = vmatpush1.msra.mxu0 %v1074
  %2178 = vmatprep.subr.mxu0 %v1079
  %2179 = vmatpush1.msra.mxu0 %v1078
  %2180 = vmatprep.subr.mxu0 0.0
  %2181 = vmatpush1.msra.mxu0 0.0
  %2182 = vmatprep.subr.mxu0 0.0
  %2183 = vmatpush1.msra.mxu0 0.0
  %2184 = vmatprep.subr.mxu0 0.0
  %2185 = vmatpush1.msra.mxu0 0.0
  %2186 = vmatprep.subr.mxu0 0.0
  %2187 = vmatpush1.msra.mxu0 0.0
  %2188 = vmatprep.subr.mxu0 0.0
  %2189 = vmatpush1.msra.mxu0 0.0
  %2190 = vmatprep.subr.mxu0 0.0
  %2191 = vmatpush1.msra.mxu0 0.0
  %2192 = vmatprep.subr.mxu0 0.0
  %2193 = vmatpush1.msra.mxu0 0.0
  %2194 = vmatprep.subr.mxu0 0.0
  %2195 = vmatpush1.msra.mxu0 0.0
  %2196 = vmatprep.subr.mxu0 0.0
  %2197 = vmatpush1.msra.mxu0 0.0
  %2198 = vmatprep.subr.mxu0 0.0
  %2199 = vmatpush1.msra.mxu0 0.0
  %2200 = vmatprep.subr.mxu0 0.0
  %2201 = vmatpush1.msra.mxu0 0.0
  %2202 = vmatprep.subr.mxu0 0.0
  %2203 = vmatpush1.msra.mxu0 0.0
  %2204 = vmatprep.subr.mxu0 0.0
  %2205 = vmatpush1.msra.mxu0 0.0
  %2206 = vmatprep.subr.mxu0 0.0
  %2207 = vmatpush1.msra.mxu0 0.0
  %2208 = vmatprep.subr.mxu0 0.0
  %2209 = vmatpush1.msra.mxu0 0.0
  %2210 = vmatprep.subr.mxu0 0.0
  %2211 = vmatpush1.msra.mxu0 0.0
  %2212 = vmatprep.mubr.f32.mxu0 0.0
  %2213 = vmatmul.mubr.f32.gmra.mrb[0].mxu0 %v2005
  %v2214 = vpop.f32.mrb[0].mxu0
  %v2215 = vadd.f32 %v2073, %v2214
  %v2216 = vpop.f32.mrb[0].mxu0
  %v2217 = vadd.f32 %v2075, %v2216
  %2218 = vdwg.mxu0
  %2219 = vmatprep.subr.mxu0 %v1021
  %2220 = vmatpush1.msra.mxu0 %v1020
  %2221 = vmatprep.subr.mxu0 %v1025
  %2222 = vmatpush1.msra.mxu0 %v1024
  %2223 = vmatprep.subr.mxu0 %v1029
  %2224 = vmatpush1.msra.mxu0 %v1028
  %2225 = vmatprep.subr.mxu0 %v1033
  %2226 = vmatpush1.msra.mxu0 %v1032
  %2227 = vmatprep.subr.mxu0 %v1037
  %2228 = vmatpush1.msra.mxu0 %v1036
  %2229 = vmatprep.subr.mxu0 %v1041
  %2230 = vmatpush1.msra.mxu0 %v1040
  %2231 = vmatprep.subr.mxu0 %v1045
  %2232 = vmatpush1.msra.mxu0 %v1044
  %2233 = vmatprep.subr.mxu0 %v1049
  %2234 = vmatpush1.msra.mxu0 %v1048
  %2235 = vmatprep.subr.mxu0 %v1053
  %2236 = vmatpush1.msra.mxu0 %v1052
  %2237 = vmatprep.subr.mxu0 %v1057
  %2238 = vmatpush1.msra.mxu0 %v1056
  %2239 = vmatprep.subr.mxu0 %v1061
  %2240 = vmatpush1.msra.mxu0 %v1060
  %2241 = vmatprep.subr.mxu0 %v1065
  %2242 = vmatpush1.msra.mxu0 %v1064
  %2243 = vmatprep.subr.mxu0 %v1069
  %2244 = vmatpush1.msra.mxu0 %v1068
  %2245 = vmatprep.subr.mxu0 %v1073
  %2246 = vmatpush1.msra.mxu0 %v1072
  %2247 = vmatprep.subr.mxu0 %v1077
  %2248 = vmatpush1.msra.mxu0 %v1076
  %2249 = vmatprep.subr.mxu0 %v1081
  %2250 = vmatpush1.msra.mxu0 %v1080
  %2251 = vmatprep.subr.mxu0 0.0
  %2252 = vmatpush1.msra.mxu0 0.0
  %2253 = vmatprep.subr.mxu0 0.0
  %2254 = vmatpush1.msra.mxu0 0.0
  %2255 = vmatprep.subr.mxu0 0.0
  %2256 = vmatpush1.msra.mxu0 0.0
  %2257 = vmatprep.subr.mxu0 0.0
  %2258 = vmatpush1.msra.mxu0 0.0
  %2259 = vmatprep.subr.mxu0 0.0
  %2260 = vmatpush1.msra.mxu0 0.0
  %2261 = vmatprep.subr.mxu0 0.0
  %2262 = vmatpush1.msra.mxu0 0.0
  %2263 = vmatprep.subr.mxu0 0.0
  %2264 = vmatpush1.msra.mxu0 0.0
  %2265 = vmatprep.subr.mxu0 0.0
  %2266 = vmatpush1.msra.mxu0 0.0
  %2267 = vmatprep.subr.mxu0 0.0
  %2268 = vmatpush1.msra.mxu0 0.0
  %2269 = vmatprep.subr.mxu0 0.0
  %2270 = vmatpush1.msra.mxu0 0.0
  %2271 = vmatprep.subr.mxu0 0.0
  %2272 = vmatpush1.msra.mxu0 0.0
  %2273 = vmatprep.subr.mxu0 0.0
  %2274 = vmatpush1.msra.mxu0 0.0
  %2275 = vmatprep.subr.mxu0 0.0
  %2276 = vmatpush1.msra.mxu0 0.0
  %2277 = vmatprep.subr.mxu0 0.0
  %2278 = vmatpush1.msra.mxu0 0.0
  %2279 = vmatprep.subr.mxu0 0.0
  %2280 = vmatpush1.msra.mxu0 0.0
  %2281 = vmatprep.subr.mxu0 0.0
  %2282 = vmatpush1.msra.mxu0 0.0
  %2283 = vmatprep.mubr.f32.mxu0 0.0
  %2284 = vmatmul.mubr.f32.gmra.mrb[0].mxu0 %v2005
  %v2285 = vpop.f32.mrb[0].mxu0
  %v2286 = vadd.f32 %v2144, %v2285
  %v2287 = vpop.f32.mrb[0].mxu0
  %v2288 = vadd.f32 %v2146, %v2287
  %2289 = vdwg.mxu0
  %v2290 = vadd.f32 %v2215, %v1183
  %v2291 = vadd.f32 %v2217, %v1187
  %v2292 = vadd.f32 %v2286, %v1191
  %v2293 = vadd.f32 %v2288, %v1195
  %v2294 = vxor.u32 %v2290, 2147483648
  %v2295 = vmul.f32 %v2294, 1.442695
  %v2296 = vpow.pop %v2295
  %v2297 = vadd.f32 %v2296, 1.0
  %v2298 = vrcp.pop %v2297
  %v2299 = vmul.f32 1.0, %v2298
  %v2300 = vxor.u32 %v2291, 2147483648
  %v2301 = vmul.f32 %v2300, 1.442695
  %v2302 = vpow.pop %v2301
  %v2303 = vadd.f32 %v2302, 1.0
  %v2304 = vrcp.pop %v2303
  %v2305 = vmul.f32 1.0, %v2304
  %v2306 = vtanh.pop %v2292
  %v2307 = vxor.u32 %v2293, 2147483648
  %v2308 = vmul.f32 %v2307, 1.442695
  %v2309 = vpow.pop %v2308
  %v2310 = vadd.f32 %v2309, 1.0
  %v2311 = vrcp.pop %v2310
  %v2312 = vmul.f32 1.0, %v2311
  %v2313 = vmul.f32 %v2305, %v1917
  %v2314 = vmul.f32 %v2299, %v2306
  %v2315 = vadd.f32 %v2313, %v2314
  %v2316 = vtanh.pop %v2315
  %v2317 = vmul.f32 %v2312, %v2316
  %2318 = vmatprep.subr.mxu0 %v1147
  %2319 = vmatpush1.msra.mxu0 %v1146
  %2320 = vmatprep.subr.mxu0 %v1149
  %2321 = vmatpush1.msra.mxu0 %v1148
  %2322 = vmatprep.subr.mxu0 %v1151
  %2323 = vmatpush1.msra.mxu0 %v1150
  %2324 = vmatprep.subr.mxu0 %v1153
  %2325 = vmatpush1.msra.mxu0 %v1152
  %2326 = vmatprep.subr.mxu0 %v1155
  %2327 = vmatpush1.msra.mxu0 %v1154
  %2328 = vmatprep.subr.mxu0 %v1157
  %2329 = vmatpush1.msra.mxu0 %v1156
  %2330 = vmatprep.subr.mxu0 %v1159
  %2331 = vmatpush1.msra.mxu0 %v1158
  %2332 = vmatprep.subr.mxu0 %v1161
  %2333 = vmatpush1.msra.mxu0 %v1160
  %2334 = vmatprep.subr.mxu0 %v1163
  %2335 = vmatpush1.msra.mxu0 %v1162
  %2336 = vmatprep.subr.mxu0 %v1165
  %2337 = vmatpush1.msra.mxu0 %v1164
  %2338 = vmatprep.subr.mxu0 %v1167
  %2339 = vmatpush1.msra.mxu0 %v1166
  %2340 = vmatprep.subr.mxu0 %v1169
  %2341 = vmatpush1.msra.mxu0 %v1168
  %2342 = vmatprep.subr.mxu0 %v1171
  %2343 = vmatpush1.msra.mxu0 %v1170
  %2344 = vmatprep.subr.mxu0 %v1173
  %2345 = vmatpush1.msra.mxu0 %v1172
  %2346 = vmatprep.subr.mxu0 %v1175
  %2347 = vmatpush1.msra.mxu0 %v1174
  %2348 = vmatprep.subr.mxu0 %v1177
  %2349 = vmatpush1.msra.mxu0 %v1176
  %2350 = vmatprep.subr.mxu0 0.0
  %2351 = vmatpush1.msra.mxu0 0.0
  %2352 = vmatprep.subr.mxu0 0.0
  %2353 = vmatpush1.msra.mxu0 0.0
  %2354 = vmatprep.subr.mxu0 0.0
  %2355 = vmatpush1.msra.mxu0 0.0
  %2356 = vmatprep.subr.mxu0 0.0
  %2357 = vmatpush1.msra.mxu0 0.0
  %2358 = vmatprep.subr.mxu0 0.0
  %2359 = vmatpush1.msra.mxu0 0.0
  %2360 = vmatprep.subr.mxu0 0.0
  %2361 = vmatpush1.msra.mxu0 0.0
  %2362 = vmatprep.subr.mxu0 0.0
  %2363 = vmatpush1.msra.mxu0 0.0
  %2364 = vmatprep.subr.mxu0 0.0
  %2365 = vmatpush1.msra.mxu0 0.0
  %2366 = vmatprep.subr.mxu0 0.0
  %2367 = vmatpush1.msra.mxu0 0.0
  %2368 = vmatprep.subr.mxu0 0.0
  %2369 = vmatpush1.msra.mxu0 0.0
  %2370 = vmatprep.subr.mxu0 0.0
  %2371 = vmatpush1.msra.mxu0 0.0
  %2372 = vmatprep.subr.mxu0 0.0
  %2373 = vmatpush1.msra.mxu0 0.0
  %2374 = vmatprep.subr.mxu0 0.0
  %2375 = vmatpush1.msra.mxu0 0.0
  %2376 = vmatprep.subr.mxu0 0.0
  %2377 = vmatpush1.msra.mxu0 0.0
  %2378 = vmatprep.subr.mxu0 0.0
  %2379 = vmatpush1.msra.mxu0 0.0
  %2380 = vmatprep.subr.mxu0 0.0
  %2381 = vmatpush1.msra.mxu0 0.0
  %2382 = vmatprep.mubr.f32.mxu0 0.0
  %2383 = vmatmul.mubr.f32.gmra.mrb[0].mxu0 %v2317
  %v2384 = vpop.f32.mrb[0].mxu0
  %v2385 = vadd.f32 %v1205, %v2384
  %v2386 = vpop.f32.mrb[0].mxu0
  %v2387 = vadd.f32 %v1209, %v2386
  %2388 = vdwg.mxu0
  %v2391 = vcombine.low %v2385, %v2387
  %v2393 = vunpack.c.l.s4 1983009808
  %v2394 = vunpack.c.0.s8 %v2393
  %v2395 = vlaneseq
  %v2396 = vshrl.u32 %v2395, 7
  %v2397 = vsub.s32 %v2394, %v2396
  %v2398 = vrot.slane %v2391, %v2397
  %s2400 = scalar_lea.vmem %s11, 8
  %2401 = vst [vmem:[%s2400] sm:$0xf] %v2398
  %s2402 = scalar_lea.vmem %s1, 4
  %v2403 = vld [vmem:[%s2402] sm:$0x3]
  %2404 = vmatprep.subr.mxu0 %v1083
  %2405 = vmatpush1.msra.mxu0 %v1082
  %2406 = vmatprep.subr.mxu0 %v1087
  %2407 = vmatpush1.msra.mxu0 %v1086
  %2408 = vmatprep.subr.mxu0 %v1091
  %2409 = vmatpush1.msra.mxu0 %v1090
  %2410 = vmatprep.subr.mxu0 %v1095
  %2411 = vmatpush1.msra.mxu0 %v1094
  %2412 = vmatprep.subr.mxu0 %v1099
  %2413 = vmatpush1.msra.mxu0 %v1098
  %2414 = vmatprep.subr.mxu0 %v1103
  %2415 = vmatpush1.msra.mxu0 %v1102
  %2416 = vmatprep.subr.mxu0 %v1107
  %2417 = vmatpush1.msra.mxu0 %v1106
  %2418 = vmatprep.subr.mxu0 %v1111
  %2419 = vmatpush1.msra.mxu0 %v1110
  %2420 = vmatprep.subr.mxu0 %v1115
  %2421 = vmatpush1.msra.mxu0 %v1114
  %2422 = vmatprep.subr.mxu0 %v1119
  %2423 = vmatpush1.msra.mxu0 %v1118
  %2424 = vmatprep.subr.mxu0 %v1123
  %2425 = vmatpush1.msra.mxu0 %v1122
  %2426 = vmatprep.subr.mxu0 %v1127
  %2427 = vmatpush1.msra.mxu0 %v1126
  %2428 = vmatprep.subr.mxu0 %v1131
  %2429 = vmatpush1.msra.mxu0 %v1130
  %2430 = vmatprep.subr.mxu0 %v1135
  %2431 = vmatpush1.msra.mxu0 %v1134
  %2432 = vmatprep.subr.mxu0 %v1139
  %2433 = vmatpush1.msra.mxu0 %v1138
  %2434 = vmatprep.subr.mxu0 %v1143
  %2435 = vmatpush1.msra.mxu0 %v1142
  %2436 = vmatprep.subr.mxu0 0.0
  %2437 = vmatpush1.msra.mxu0 0.0
  %2438 = vmatprep.subr.mxu0 0.0
  %2439 = vmatpush1.msra.mxu0 0.0
  %2440 = vmatprep.subr.mxu0 0.0
  %2441 = vmatpush1.msra.mxu0 0.0
  %2442 = vmatprep.subr.mxu0 0.0
  %2443 = vmatpush1.msra.mxu0 0.0
  %2444 = vmatprep.subr.mxu0 0.0
  %2445 = vmatpush1.msra.mxu0 0.0
  %2446 = vmatprep.subr.mxu0 0.0
  %2447 = vmatpush1.msra.mxu0 0.0
  %2448 = vmatprep.subr.mxu0 0.0
  %2449 = vmatpush1.msra.mxu0 0.0
  %2450 = vmatprep.subr.mxu0 0.0
  %2451 = vmatpush1.msra.mxu0 0.0
  %2452 = vmatprep.subr.mxu0 0.0
  %2453 = vmatpush1.msra.mxu0 0.0
  %2454 = vmatprep.subr.mxu0 0.0
  %2455 = vmatpush1.msra.mxu0 0.0
  %2456 = vmatprep.subr.mxu0 0.0
  %2457 = vmatpush1.msra.mxu0 0.0
  %2458 = vmatprep.subr.mxu0 0.0
  %2459 = vmatpush1.msra.mxu0 0.0
  %2460 = vmatprep.subr.mxu0 0.0
  %2461 = vmatpush1.msra.mxu0 0.0
  %2462 = vmatprep.subr.mxu0 0.0
  %2463 = vmatpush1.msra.mxu0 0.0
  %2464 = vmatprep.subr.mxu0 0.0
  %2465 = vmatpush1.msra.mxu0 0.0
  %2466 = vmatprep.subr.mxu0 0.0
  %2467 = vmatpush1.msra.mxu0 0.0
  %2468 = vmatprep.mubr.f32.mxu0 0.0
  %2469 = vmatmul.mubr.f32.gmra.mrb[0].mxu0 %v2317
  %v2470 = vpop.f32.mrb[0].mxu0
  %v2471 = vadd.f32 0.0, %v2470
  %v2472 = vpop.f32.mrb[0].mxu0
  %v2473 = vadd.f32 0.0, %v2472
  %2474 = vdwg.mxu0
  %2475 = vmatprep.subr.mxu0 %v1085
  %2476 = vmatpush1.msra.mxu0 %v1084
  %2477 = vmatprep.subr.mxu0 %v1089
  %2478 = vmatpush1.msra.mxu0 %v1088
  %2479 = vmatprep.subr.mxu0 %v1093
  %2480 = vmatpush1.msra.mxu0 %v1092
  %2481 = vmatprep.subr.mxu0 %v1097
  %2482 = vmatpush1.msra.mxu0 %v1096
  %2483 = vmatprep.subr.mxu0 %v1101
  %2484 = vmatpush1.msra.mxu0 %v1100
  %2485 = vmatprep.subr.mxu0 %v1105
  %2486 = vmatpush1.msra.mxu0 %v1104
  %2487 = vmatprep.subr.mxu0 %v1109
  %2488 = vmatpush1.msra.mxu0 %v1108
  %2489 = vmatprep.subr.mxu0 %v1113
  %2490 = vmatpush1.msra.mxu0 %v1112
  %2491 = vmatprep.subr.mxu0 %v1117
  %2492 = vmatpush1.msra.mxu0 %v1116
  %2493 = vmatprep.subr.mxu0 %v1121
  %2494 = vmatpush1.msra.mxu0 %v1120
  %2495 = vmatprep.subr.mxu0 %v1125
  %2496 = vmatpush1.msra.mxu0 %v1124
  %2497 = vmatprep.subr.mxu0 %v1129
  %2498 = vmatpush1.msra.mxu0 %v1128
  %2499 = vmatprep.subr.mxu0 %v1133
  %2500 = vmatpush1.msra.mxu0 %v1132
  %2501 = vmatprep.subr.mxu0 %v1137
  %2502 = vmatpush1.msra.mxu0 %v1136
  %2503 = vmatprep.subr.mxu0 %v1141
  %2504 = vmatpush1.msra.mxu0 %v1140
  %2505 = vmatprep.subr.mxu0 %v1145
  %2506 = vmatpush1.msra.mxu0 %v1144
  %2507 = vmatprep.subr.mxu0 0.0
  %2508 = vmatpush1.msra.mxu0 0.0
  %2509 = vmatprep.subr.mxu0 0.0
  %2510 = vmatpush1.msra.mxu0 0.0
  %2511 = vmatprep.subr.mxu0 0.0
  %2512 = vmatpush1.msra.mxu0 0.0
  %2513 = vmatprep.subr.mxu0 0.0
  %2514 = vmatpush1.msra.mxu0 0.0
  %2515 = vmatprep.subr.mxu0 0.0
  %2516 = vmatpush1.msra.mxu0 0.0
  %2517 = vmatprep.subr.mxu0 0.0
  %2518 = vmatpush1.msra.mxu0 0.0
  %2519 = vmatprep.subr.mxu0 0.0
  %2520 = vmatpush1.msra.mxu0 0.0
  %2521 = vmatprep.subr.mxu0 0.0
  %2522 = vmatpush1.msra.mxu0 0.0
  %2523 = vmatprep.subr.mxu0 0.0
  %2524 = vmatpush1.msra.mxu0 0.0
  %2525 = vmatprep.subr.mxu0 0.0
  %2526 = vmatpush1.msra.mxu0 0.0
  %2527 = vmatprep.subr.mxu0 0.0
  %2528 = vmatpush1.msra.mxu0 0.0
  %2529 = vmatprep.subr.mxu0 0.0
  %2530 = vmatpush1.msra.mxu0 0.0
  %2531 = vmatprep.subr.mxu0 0.0
  %2532 = vmatpush1.msra.mxu0 0.0
  %2533 = vmatprep.subr.mxu0 0.0
  %2534 = vmatpush1.msra.mxu0 0.0
  %2535 = vmatprep.subr.mxu0 0.0
  %2536 = vmatpush1.msra.mxu0 0.0
  %2537 = vmatprep.subr.mxu0 0.0
  %2538 = vmatpush1.msra.mxu0 0.0
  %2539 = vmatprep.mubr.f32.mxu0 0.0
  %2540 = vmatmul.mubr.f32.gmra.mrb[0].mxu0 %v2317
  %v2541 = vpop.f32.mrb[0].mxu0
  %v2542 = vadd.f32 0.0, %v2541
  %v2543 = vpop.f32.mrb[0].mxu0
  %v2544 = vadd.f32 0.0, %v2543
  %2545 = vdwg.mxu0
  %2546 = vmatprep.subr.mxu0 %v1019
  %2547 = vmatpush1.msra.mxu0 %v1018
  %2548 = vmatprep.subr.mxu0 %v1023
  %2549 = vmatpush1.msra.mxu0 %v1022
  %2550 = vmatprep.subr.mxu0 %v1027
  %2551 = vmatpush1.msra.mxu0 %v1026
  %2552 = vmatprep.subr.mxu0 %v1031
  %2553 = vmatpush1.msra.mxu0 %v1030
  %2554 = vmatprep.subr.mxu0 %v1035
  %2555 = vmatpush1.msra.mxu0 %v1034
  %2556 = vmatprep.subr.mxu0 %v1039
  %2557 = vmatpush1.msra.mxu0 %v1038
  %2558 = vmatprep.subr.mxu0 %v1043
  %2559 = vmatpush1.msra.mxu0 %v1042
  %2560 = vmatprep.subr.mxu0 %v1047
  %2561 = vmatpush1.msra.mxu0 %v1046
  %2562 = vmatprep.subr.mxu0 %v1051
  %2563 = vmatpush1.msra.mxu0 %v1050
  %2564 = vmatprep.subr.mxu0 %v1055
  %2565 = vmatpush1.msra.mxu0 %v1054
  %2566 = vmatprep.subr.mxu0 %v1059
  %2567 = vmatpush1.msra.mxu0 %v1058
  %2568 = vmatprep.subr.mxu0 %v1063
  %2569 = vmatpush1.msra.mxu0 %v1062
  %2570 = vmatprep.subr.mxu0 %v1067
  %2571 = vmatpush1.msra.mxu0 %v1066
  %2572 = vmatprep.subr.mxu0 %v1071
  %2573 = vmatpush1.msra.mxu0 %v1070
  %2574 = vmatprep.subr.mxu0 %v1075
  %2575 = vmatpush1.msra.mxu0 %v1074
  %2576 = vmatprep.subr.mxu0 %v1079
  %2577 = vmatpush1.msra.mxu0 %v1078
  %2578 = vmatprep.subr.mxu0 0.0
  %2579 = vmatpush1.msra.mxu0 0.0
  %2580 = vmatprep.subr.mxu0 0.0
  %2581 = vmatpush1.msra.mxu0 0.0
  %2582 = vmatprep.subr.mxu0 0.0
  %2583 = vmatpush1.msra.mxu0 0.0
  %2584 = vmatprep.subr.mxu0 0.0
  %2585 = vmatpush1.msra.mxu0 0.0
  %2586 = vmatprep.subr.mxu0 0.0
  %2587 = vmatpush1.msra.mxu0 0.0
  %2588 = vmatprep.subr.mxu0 0.0
  %2589 = vmatpush1.msra.mxu0 0.0
  %2590 = vmatprep.subr.mxu0 0.0
  %2591 = vmatpush1.msra.mxu0 0.0
  %2592 = vmatprep.subr.mxu0 0.0
  %2593 = vmatpush1.msra.mxu0 0.0
  %2594 = vmatprep.subr.mxu0 0.0
  %2595 = vmatpush1.msra.mxu0 0.0
  %2596 = vmatprep.subr.mxu0 0.0
  %2597 = vmatpush1.msra.mxu0 0.0
  %2598 = vmatprep.subr.mxu0 0.0
  %2599 = vmatpush1.msra.mxu0 0.0
  %2600 = vmatprep.subr.mxu0 0.0
  %2601 = vmatpush1.msra.mxu0 0.0
  %2602 = vmatprep.subr.mxu0 0.0
  %2603 = vmatpush1.msra.mxu0 0.0
  %2604 = vmatprep.subr.mxu0 0.0
  %2605 = vmatpush1.msra.mxu0 0.0
  %2606 = vmatprep.subr.mxu0 0.0
  %2607 = vmatpush1.msra.mxu0 0.0
  %2608 = vmatprep.subr.mxu0 0.0
  %2609 = vmatpush1.msra.mxu0 0.0
  %2610 = vmatprep.mubr.f32.mxu0 0.0
  %2611 = vmatmul.mubr.f32.gmra.mrb[0].mxu0 %v2403
  %v2612 = vpop.f32.mrb[0].mxu0
  %v2613 = vadd.f32 %v2471, %v2612
  %v2614 = vpop.f32.mrb[0].mxu0
  %v2615 = vadd.f32 %v2473, %v2614
  %2616 = vdwg.mxu0
  %2617 = vmatprep.subr.mxu0 %v1021
  %2618 = vmatpush1.msra.mxu0 %v1020
  %2619 = vmatprep.subr.mxu0 %v1025
  %2620 = vmatpush1.msra.mxu0 %v1024
  %2621 = vmatprep.subr.mxu0 %v1029
  %2622 = vmatpush1.msra.mxu0 %v1028
  %2623 = vmatprep.subr.mxu0 %v1033
  %2624 = vmatpush1.msra.mxu0 %v1032
  %2625 = vmatprep.subr.mxu0 %v1037
  %2626 = vmatpush1.msra.mxu0 %v1036
  %2627 = vmatprep.subr.mxu0 %v1041
  %2628 = vmatpush1.msra.mxu0 %v1040
  %2629 = vmatprep.subr.mxu0 %v1045
  %2630 = vmatpush1.msra.mxu0 %v1044
  %2631 = vmatprep.subr.mxu0 %v1049
  %2632 = vmatpush1.msra.mxu0 %v1048
  %2633 = vmatprep.subr.mxu0 %v1053
  %2634 = vmatpush1.msra.mxu0 %v1052
  %2635 = vmatprep.subr.mxu0 %v1057
  %2636 = vmatpush1.msra.mxu0 %v1056
  %2637 = vmatprep.subr.mxu0 %v1061
  %2638 = vmatpush1.msra.mxu0 %v1060
  %2639 = vmatprep.subr.mxu0 %v1065
  %2640 = vmatpush1.msra.mxu0 %v1064
  %2641 = vmatprep.subr.mxu0 %v1069
  %2642 = vmatpush1.msra.mxu0 %v1068
  %2643 = vmatprep.subr.mxu0 %v1073
  %2644 = vmatpush1.msra.mxu0 %v1072
  %2645 = vmatprep.subr.mxu0 %v1077
  %2646 = vmatpush1.msra.mxu0 %v1076
  %2647 = vmatprep.subr.mxu0 %v1081
  %2648 = vmatpush1.msra.mxu0 %v1080
  %2649 = vmatprep.subr.mxu0 0.0
  %2650 = vmatpush1.msra.mxu0 0.0
  %2651 = vmatprep.subr.mxu0 0.0
  %2652 = vmatpush1.msra.mxu0 0.0
  %2653 = vmatprep.subr.mxu0 0.0
  %2654 = vmatpush1.msra.mxu0 0.0
  %2655 = vmatprep.subr.mxu0 0.0
  %2656 = vmatpush1.msra.mxu0 0.0
  %2657 = vmatprep.subr.mxu0 0.0
  %2658 = vmatpush1.msra.mxu0 0.0
  %2659 = vmatprep.subr.mxu0 0.0
  %2660 = vmatpush1.msra.mxu0 0.0
  %2661 = vmatprep.subr.mxu0 0.0
  %2662 = vmatpush1.msra.mxu0 0.0
  %2663 = vmatprep.subr.mxu0 0.0
  %2664 = vmatpush1.msra.mxu0 0.0
  %2665 = vmatprep.subr.mxu0 0.0
  %2666 = vmatpush1.msra.mxu0 0.0
  %2667 = vmatprep.subr.mxu0 0.0
  %2668 = vmatpush1.msra.mxu0 0.0
  %2669 = vmatprep.subr.mxu0 0.0
  %2670 = vmatpush1.msra.mxu0 0.0
  %2671 = vmatprep.subr.mxu0 0.0
  %2672 = vmatpush1.msra.mxu0 0.0
  %2673 = vmatprep.subr.mxu0 0.0
  %2674 = vmatpush1.msra.mxu0 0.0
  %2675 = vmatprep.subr.mxu0 0.0
  %2676 = vmatpush1.msra.mxu0 0.0
  %2677 = vmatprep.subr.mxu0 0.0
  %2678 = vmatpush1.msra.mxu0 0.0
  %2679 = vmatprep.subr.mxu0 0.0
  %2680 = vmatpush1.msra.mxu0 0.0
  %2681 = vmatprep.mubr.f32.mxu0 0.0
  %2682 = vmatmul.mubr.f32.gmra.mrb[0].mxu0 %v2403
  %v2683 = vpop.f32.mrb[0].mxu0
  %v2684 = vadd.f32 %v2542, %v2683
  %v2685 = vpop.f32.mrb[0].mxu0
  %v2686 = vadd.f32 %v2544, %v2685
  %2687 = vdwg.mxu0
  %v2688 = vadd.f32 %v2613, %v1183
  %v2689 = vadd.f32 %v2615, %v1187
  %v2690 = vadd.f32 %v2684, %v1191
  %v2691 = vadd.f32 %v2686, %v1195
  %v2692 = vxor.u32 %v2688, 2147483648
  %v2693 = vmul.f32 %v2692, 1.442695
  %v2694 = vpow.pop %v2693
  %v2695 = vadd.f32 %v2694, 1.0
  %v2696 = vrcp.pop %v2695
  %v2697 = vmul.f32 1.0, %v2696
  %v2698 = vxor.u32 %v2689, 2147483648
  %v2699 = vmul.f32 %v2698, 1.442695
  %v2700 = vpow.pop %v2699
  %v2701 = vadd.f32 %v2700, 1.0
  %v2702 = vrcp.pop %v2701
  %v2703 = vmul.f32 1.0, %v2702
  %v2704 = vtanh.pop %v2690
  %v2705 = vxor.u32 %v2691, 2147483648
  %v2706 = vmul.f32 %v2705, 1.442695
  %v2707 = vpow.pop %v2706
  %v2708 = vadd.f32 %v2707, 1.0
  %v2709 = vrcp.pop %v2708
  %v2710 = vmul.f32 1.0, %v2709
  %v2711 = vmul.f32 %v2703, %v2315
  %v2712 = vmul.f32 %v2697, %v2704
  %v2713 = vadd.f32 %v2711, %v2712
  %v2714 = vtanh.pop %v2713
  %v2715 = vmul.f32 %v2710, %v2714
  %2716 = vmatprep.subr.mxu0 %v1147
  %2717 = vmatpush1.msra.mxu0 %v1146
  %2718 = vmatprep.subr.mxu0 %v1149
  %2719 = vmatpush1.msra.mxu0 %v1148
  %2720 = vmatprep.subr.mxu0 %v1151
  %2721 = vmatpush1.msra.mxu0 %v1150
  %2722 = vmatprep.subr.mxu0 %v1153
  %2723 = vmatpush1.msra.mxu0 %v1152
  %2724 = vmatprep.subr.mxu0 %v1155
  %2725 = vmatpush1.msra.mxu0 %v1154
  %2726 = vmatprep.subr.mxu0 %v1157
  %2727 = vmatpush1.msra.mxu0 %v1156
  %2728 = vmatprep.subr.mxu0 %v1159
  %2729 = vmatpush1.msra.mxu0 %v1158
  %2730 = vmatprep.subr.mxu0 %v1161
  %2731 = vmatpush1.msra.mxu0 %v1160
  %2732 = vmatprep.subr.mxu0 %v1163
  %2733 = vmatpush1.msra.mxu0 %v1162
  %2734 = vmatprep.subr.mxu0 %v1165
  %2735 = vmatpush1.msra.mxu0 %v1164
  %2736 = vmatprep.subr.mxu0 %v1167
  %2737 = vmatpush1.msra.mxu0 %v1166
  %2738 = vmatprep.subr.mxu0 %v1169
  %2739 = vmatpush1.msra.mxu0 %v1168
  %2740 = vmatprep.subr.mxu0 %v1171
  %2741 = vmatpush1.msra.mxu0 %v1170
  %2742 = vmatprep.subr.mxu0 %v1173
  %2743 = vmatpush1.msra.mxu0 %v1172
  %2744 = vmatprep.subr.mxu0 %v1175
  %2745 = vmatpush1.msra.mxu0 %v1174
  %2746 = vmatprep.subr.mxu0 %v1177
  %2747 = vmatpush1.msra.mxu0 %v1176
  %2748 = vmatprep.subr.mxu0 0.0
  %2749 = vmatpush1.msra.mxu0 0.0
  %2750 = vmatprep.subr.mxu0 0.0
  %2751 = vmatpush1.msra.mxu0 0.0
  %2752 = vmatprep.subr.mxu0 0.0
  %2753 = vmatpush1.msra.mxu0 0.0
  %2754 = vmatprep.subr.mxu0 0.0
  %2755 = vmatpush1.msra.mxu0 0.0
  %2756 = vmatprep.subr.mxu0 0.0
  %2757 = vmatpush1.msra.mxu0 0.0
  %2758 = vmatprep.subr.mxu0 0.0
  %2759 = vmatpush1.msra.mxu0 0.0
  %2760 = vmatprep.subr.mxu0 0.0
  %2761 = vmatpush1.msra.mxu0 0.0
  %2762 = vmatprep.subr.mxu0 0.0
  %2763 = vmatpush1.msra.mxu0 0.0
  %2764 = vmatprep.subr.mxu0 0.0
  %2765 = vmatpush1.msra.mxu0 0.0
  %2766 = vmatprep.subr.mxu0 0.0
  %2767 = vmatpush1.msra.mxu0 0.0
  %2768 = vmatprep.subr.mxu0 0.0
  %2769 = vmatpush1.msra.mxu0 0.0
  %2770 = vmatprep.subr.mxu0 0.0
  %2771 = vmatpush1.msra.mxu0 0.0
  %2772 = vmatprep.subr.mxu0 0.0
  %2773 = vmatpush1.msra.mxu0 0.0
  %2774 = vmatprep.subr.mxu0 0.0
  %2775 = vmatpush1.msra.mxu0 0.0
  %2776 = vmatprep.subr.mxu0 0.0
  %2777 = vmatpush1.msra.mxu0 0.0
  %2778 = vmatprep.subr.mxu0 0.0
  %2779 = vmatpush1.msra.mxu0 0.0
  %2780 = vmatprep.mubr.f32.mxu0 0.0
  %2781 = vmatmul.mubr.f32.gmra.mrb[0].mxu0 %v2715
  %v2782 = vpop.f32.mrb[0].mxu0
  %v2783 = vadd.f32 %v1205, %v2782
  %v2784 = vpop.f32.mrb[0].mxu0
  %v2785 = vadd.f32 %v1209, %v2784
  %2786 = vdwg.mxu0
  %v2789 = vcombine.low %v2783, %v2785
  %v2791 = vunpack.c.l.s4 1983009808
  %v2792 = vunpack.c.0.s8 %v2791
  %v2793 = vlaneseq
  %v2794 = vshrl.u32 %v2793, 7
  %v2795 = vsub.s32 %v2792, %v2794
  %v2796 = vrot.slane %v2789, %v2795
  %s2798 = scalar_lea.vmem %s11, 12
  %2799 = vst [vmem:[%s2798] sm:$0xf] %v2796
  %s2800 = scalar_lea.vmem %s1, 6
  %v2801 = vld [vmem:[%s2800] sm:$0x3]
  %2802 = vmatprep.subr.mxu0 %v1083
  %2803 = vmatpush1.msra.mxu0 %v1082
  %2804 = vmatprep.subr.mxu0 %v1087
  %2805 = vmatpush1.msra.mxu0 %v1086
  %2806 = vmatprep.subr.mxu0 %v1091
  %2807 = vmatpush1.msra.mxu0 %v1090
  %2808 = vmatprep.subr.mxu0 %v1095
  %2809 = vmatpush1.msra.mxu0 %v1094
  %2810 = vmatprep.subr.mxu0 %v1099
  %2811 = vmatpush1.msra.mxu0 %v1098
  %2812 = vmatprep.subr.mxu0 %v1103
  %2813 = vmatpush1.msra.mxu0 %v1102
  %2814 = vmatprep.subr.mxu0 %v1107
  %2815 = vmatpush1.msra.mxu0 %v1106
  %2816 = vmatprep.subr.mxu0 %v1111
  %2817 = vmatpush1.msra.mxu0 %v1110
  %2818 = vmatprep.subr.mxu0 %v1115
  %2819 = vmatpush1.msra.mxu0 %v1114
  %2820 = vmatprep.subr.mxu0 %v1119
  %2821 = vmatpush1.msra.mxu0 %v1118
  %2822 = vmatprep.subr.mxu0 %v1123
  %2823 = vmatpush1.msra.mxu0 %v1122
  %2824 = vmatprep.subr.mxu0 %v1127
  %2825 = vmatpush1.msra.mxu0 %v1126
  %2826 = vmatprep.subr.mxu0 %v1131
  %2827 = vmatpush1.msra.mxu0 %v1130
  %2828 = vmatprep.subr.mxu0 %v1135
  %2829 = vmatpush1.msra.mxu0 %v1134
  %2830 = vmatprep.subr.mxu0 %v1139
  %2831 = vmatpush1.msra.mxu0 %v1138
  %2832 = vmatprep.subr.mxu0 %v1143
  %2833 = vmatpush1.msra.mxu0 %v1142
  %2834 = vmatprep.subr.mxu0 0.0
  %2835 = vmatpush1.msra.mxu0 0.0
  %2836 = vmatprep.subr.mxu0 0.0
  %2837 = vmatpush1.msra.mxu0 0.0
  %2838 = vmatprep.subr.mxu0 0.0
  %2839 = vmatpush1.msra.mxu0 0.0
  %2840 = vmatprep.subr.mxu0 0.0
  %2841 = vmatpush1.msra.mxu0 0.0
  %2842 = vmatprep.subr.mxu0 0.0
  %2843 = vmatpush1.msra.mxu0 0.0
  %2844 = vmatprep.subr.mxu0 0.0
  %2845 = vmatpush1.msra.mxu0 0.0
  %2846 = vmatprep.subr.mxu0 0.0
  %2847 = vmatpush1.msra.mxu0 0.0
  %2848 = vmatprep.subr.mxu0 0.0
  %2849 = vmatpush1.msra.mxu0 0.0
  %2850 = vmatprep.subr.mxu0 0.0
  %2851 = vmatpush1.msra.mxu0 0.0
  %2852 = vmatprep.subr.mxu0 0.0
  %2853 = vmatpush1.msra.mxu0 0.0
  %2854 = vmatprep.subr.mxu0 0.0
  %2855 = vmatpush1.msra.mxu0 0.0
  %2856 = vmatprep.subr.mxu0 0.0
  %2857 = vmatpush1.msra.mxu0 0.0
  %2858 = vmatprep.subr.mxu0 0.0
  %2859 = vmatpush1.msra.mxu0 0.0
  %2860 = vmatprep.subr.mxu0 0.0
  %2861 = vmatpush1.msra.mxu0 0.0
  %2862 = vmatprep.subr.mxu0 0.0
  %2863 = vmatpush1.msra.mxu0 0.0
  %2864 = vmatprep.subr.mxu0 0.0
  %2865 = vmatpush1.msra.mxu0 0.0
  %2866 = vmatprep.mubr.f32.mxu0 0.0
  %2867 = vmatmul.mubr.f32.gmra.mrb[0].mxu0 %v2715
  %v2868 = vpop.f32.mrb[0].mxu0
  %v2869 = vadd.f32 0.0, %v2868
  %v2870 = vpop.f32.mrb[0].mxu0
  %v2871 = vadd.f32 0.0, %v2870
  %2872 = vdwg.mxu0
  %2873 = vmatprep.subr.mxu0 %v1085
  %2874 = vmatpush1.msra.mxu0 %v1084
  %2875 = vmatprep.subr.mxu0 %v1089
  %2876 = vmatpush1.msra.mxu0 %v1088
  %2877 = vmatprep.subr.mxu0 %v1093
  %2878 = vmatpush1.msra.mxu0 %v1092
  %2879 = vmatprep.subr.mxu0 %v1097
  %2880 = vmatpush1.msra.mxu0 %v1096
  %2881 = vmatprep.subr.mxu0 %v1101
  %2882 = vmatpush1.msra.mxu0 %v1100
  %2883 = vmatprep.subr.mxu0 %v1105
  %2884 = vmatpush1.msra.mxu0 %v1104
  %2885 = vmatprep.subr.mxu0 %v1109
  %2886 = vmatpush1.msra.mxu0 %v1108
  %2887 = vmatprep.subr.mxu0 %v1113
  %2888 = vmatpush1.msra.mxu0 %v1112
  %2889 = vmatprep.subr.mxu0 %v1117
  %2890 = vmatpush1.msra.mxu0 %v1116
  %2891 = vmatprep.subr.mxu0 %v1121
  %2892 = vmatpush1.msra.mxu0 %v1120
  %2893 = vmatprep.subr.mxu0 %v1125
  %2894 = vmatpush1.msra.mxu0 %v1124
  %2895 = vmatprep.subr.mxu0 %v1129
  %2896 = vmatpush1.msra.mxu0 %v1128
  %2897 = vmatprep.subr.mxu0 %v1133
  %2898 = vmatpush1.msra.mxu0 %v1132
  %2899 = vmatprep.subr.mxu0 %v1137
  %2900 = vmatpush1.msra.mxu0 %v1136
  %2901 = vmatprep.subr.mxu0 %v1141
  %2902 = vmatpush1.msra.mxu0 %v1140
  %2903 = vmatprep.subr.mxu0 %v1145
  %2904 = vmatpush1.msra.mxu0 %v1144
  %2905 = vmatprep.subr.mxu0 0.0
  %2906 = vmatpush1.msra.mxu0 0.0
  %2907 = vmatprep.subr.mxu0 0.0
  %2908 = vmatpush1.msra.mxu0 0.0
  %2909 = vmatprep.subr.mxu0 0.0
  %2910 = vmatpush1.msra.mxu0 0.0
  %2911 = vmatprep.subr.mxu0 0.0
  %2912 = vmatpush1.msra.mxu0 0.0
  %2913 = vmatprep.subr.mxu0 0.0
  %2914 = vmatpush1.msra.mxu0 0.0
  %2915 = vmatprep.subr.mxu0 0.0
  %2916 = vmatpush1.msra.mxu0 0.0
  %2917 = vmatprep.subr.mxu0 0.0
  %2918 = vmatpush1.msra.mxu0 0.0
  %2919 = vmatprep.subr.mxu0 0.0
  %2920 = vmatpush1.msra.mxu0 0.0
  %2921 = vmatprep.subr.mxu0 0.0
  %2922 = vmatpush1.msra.mxu0 0.0
  %2923 = vmatprep.subr.mxu0 0.0
  %2924 = vmatpush1.msra.mxu0 0.0
  %2925 = vmatprep.subr.mxu0 0.0
  %2926 = vmatpush1.msra.mxu0 0.0
  %2927 = vmatprep.subr.mxu0 0.0
  %2928 = vmatpush1.msra.mxu0 0.0
  %2929 = vmatprep.subr.mxu0 0.0
  %2930 = vmatpush1.msra.mxu0 0.0
  %2931 = vmatprep.subr.mxu0 0.0
  %2932 = vmatpush1.msra.mxu0 0.0
  %2933 = vmatprep.subr.mxu0 0.0
  %2934 = vmatpush1.msra.mxu0 0.0
  %2935 = vmatprep.subr.mxu0 0.0
  %2936 = vmatpush1.msra.mxu0 0.0
  %2937 = vmatprep.mubr.f32.mxu0 0.0
  %2938 = vmatmul.mubr.f32.gmra.mrb[0].mxu0 %v2715
  %v2939 = vpop.f32.mrb[0].mxu0
  %v2940 = vadd.f32 0.0, %v2939
  %v2941 = vpop.f32.mrb[0].mxu0
  %v2942 = vadd.f32 0.0, %v2941
  %2943 = vdwg.mxu0
  %2944 = vmatprep.subr.mxu0 %v1019
  %2945 = vmatpush1.msra.mxu0 %v1018
  %2946 = vmatprep.subr.mxu0 %v1023
  %2947 = vmatpush1.msra.mxu0 %v1022
  %2948 = vmatprep.subr.mxu0 %v1027
  %2949 = vmatpush1.msra.mxu0 %v1026
  %2950 = vmatprep.subr.mxu0 %v1031
  %2951 = vmatpush1.msra.mxu0 %v1030
  %2952 = vmatprep.subr.mxu0 %v1035
  %2953 = vmatpush1.msra.mxu0 %v1034
  %2954 = vmatprep.subr.mxu0 %v1039
  %2955 = vmatpush1.msra.mxu0 %v1038
  %2956 = vmatprep.subr.mxu0 %v1043
  %2957 = vmatpush1.msra.mxu0 %v1042
  %2958 = vmatprep.subr.mxu0 %v1047
  %2959 = vmatpush1.msra.mxu0 %v1046
  %2960 = vmatprep.subr.mxu0 %v1051
  %2961 = vmatpush1.msra.mxu0 %v1050
  %2962 = vmatprep.subr.mxu0 %v1055
  %2963 = vmatpush1.msra.mxu0 %v1054
  %2964 = vmatprep.subr.mxu0 %v1059
  %2965 = vmatpush1.msra.mxu0 %v1058
  %2966 = vmatprep.subr.mxu0 %v1063
  %2967 = vmatpush1.msra.mxu0 %v1062
  %2968 = vmatprep.subr.mxu0 %v1067
  %2969 = vmatpush1.msra.mxu0 %v1066
  %2970 = vmatprep.subr.mxu0 %v1071
  %2971 = vmatpush1.msra.mxu0 %v1070
  %2972 = vmatprep.subr.mxu0 %v1075
  %2973 = vmatpush1.msra.mxu0 %v1074
  %2974 = vmatprep.subr.mxu0 %v1079
  %2975 = vmatpush1.msra.mxu0 %v1078
  %2976 = vmatprep.subr.mxu0 0.0
  %2977 = vmatpush1.msra.mxu0 0.0
  %2978 = vmatprep.subr.mxu0 0.0
  %2979 = vmatpush1.msra.mxu0 0.0
  %2980 = vmatprep.subr.mxu0 0.0
  %2981 = vmatpush1.msra.mxu0 0.0
  %2982 = vmatprep.subr.mxu0 0.0
  %2983 = vmatpush1.msra.mxu0 0.0
  %2984 = vmatprep.subr.mxu0 0.0
  %2985 = vmatpush1.msra.mxu0 0.0
  %2986 = vmatprep.subr.mxu0 0.0
  %2987 = vmatpush1.msra.mxu0 0.0
  %2988 = vmatprep.subr.mxu0 0.0
  %2989 = vmatpush1.msra.mxu0 0.0
  %2990 = vmatprep.subr.mxu0 0.0
  %2991 = vmatpush1.msra.mxu0 0.0
  %2992 = vmatprep.subr.mxu0 0.0
  %2993 = vmatpush1.msra.mxu0 0.0
  %2994 = vmatprep.subr.mxu0 0.0
  %2995 = vmatpush1.msra.mxu0 0.0
  %2996 = vmatprep.subr.mxu0 0.0
  %2997 = vmatpush1.msra.mxu0 0.0
  %2998 = vmatprep.subr.mxu0 0.0
  %2999 = vmatpush1.msra.mxu0 0.0
  %3000 = vmatprep.subr.mxu0 0.0
  %3001 = vmatpush1.msra.mxu0 0.0
  %3002 = vmatprep.subr.mxu0 0.0
  %3003 = vmatpush1.msra.mxu0 0.0
  %3004 = vmatprep.subr.mxu0 0.0
  %3005 = vmatpush1.msra.mxu0 0.0
  %3006 = vmatprep.subr.mxu0 0.0
  %3007 = vmatpush1.msra.mxu0 0.0
  %3008 = vmatprep.mubr.f32.mxu0 0.0
  %3009 = vmatmul.mubr.f32.gmra.mrb[0].mxu0 %v2801
  %v3010 = vpop.f32.mrb[0].mxu0
  %v3011 = vadd.f32 %v2869, %v3010
  %v3012 = vpop.f32.mrb[0].mxu0
  %v3013 = vadd.f32 %v2871, %v3012
  %3014 = vdwg.mxu0
  %3015 = vmatprep.subr.mxu0 %v1021
  %3016 = vmatpush1.msra.mxu0 %v1020
  %3017 = vmatprep.subr.mxu0 %v1025
  %3018 = vmatpush1.msra.mxu0 %v1024
  %3019 = vmatprep.subr.mxu0 %v1029
  %3020 = vmatpush1.msra.mxu0 %v1028
  %3021 = vmatprep.subr.mxu0 %v1033
  %3022 = vmatpush1.msra.mxu0 %v1032
  %3023 = vmatprep.subr.mxu0 %v1037
  %3024 = vmatpush1.msra.mxu0 %v1036
  %3025 = vmatprep.subr.mxu0 %v1041
  %3026 = vmatpush1.msra.mxu0 %v1040
  %3027 = vmatprep.subr.mxu0 %v1045
  %3028 = vmatpush1.msra.mxu0 %v1044
  %3029 = vmatprep.subr.mxu0 %v1049
  %3030 = vmatpush1.msra.mxu0 %v1048
  %3031 = vmatprep.subr.mxu0 %v1053
  %3032 = vmatpush1.msra.mxu0 %v1052
  %3033 = vmatprep.subr.mxu0 %v1057
  %3034 = vmatpush1.msra.mxu0 %v1056
  %3035 = vmatprep.subr.mxu0 %v1061
  %3036 = vmatpush1.msra.mxu0 %v1060
  %3037 = vmatprep.subr.mxu0 %v1065
  %3038 = vmatpush1.msra.mxu0 %v1064
  %3039 = vmatprep.subr.mxu0 %v1069
  %3040 = vmatpush1.msra.mxu0 %v1068
  %3041 = vmatprep.subr.mxu0 %v1073
  %3042 = vmatpush1.msra.mxu0 %v1072
  %3043 = vmatprep.subr.mxu0 %v1077
  %3044 = vmatpush1.msra.mxu0 %v1076
  %3045 = vmatprep.subr.mxu0 %v1081
  %3046 = vmatpush1.msra.mxu0 %v1080
  %3047 = vmatprep.subr.mxu0 0.0
  %3048 = vmatpush1.msra.mxu0 0.0
  %3049 = vmatprep.subr.mxu0 0.0
  %3050 = vmatpush1.msra.mxu0 0.0
  %3051 = vmatprep.subr.mxu0 0.0
  %3052 = vmatpush1.msra.mxu0 0.0
  %3053 = vmatprep.subr.mxu0 0.0
  %3054 = vmatpush1.msra.mxu0 0.0
  %3055 = vmatprep.subr.mxu0 0.0
  %3056 = vmatpush1.msra.mxu0 0.0
  %3057 = vmatprep.subr.mxu0 0.0
  %3058 = vmatpush1.msra.mxu0 0.0
  %3059 = vmatprep.subr.mxu0 0.0
  %3060 = vmatpush1.msra.mxu0 0.0
  %3061 = vmatprep.subr.mxu0 0.0
  %3062 = vmatpush1.msra.mxu0 0.0
  %3063 = vmatprep.subr.mxu0 0.0
  %3064 = vmatpush1.msra.mxu0 0.0
  %3065 = vmatprep.subr.mxu0 0.0
  %3066 = vmatpush1.msra.mxu0 0.0
  %3067 = vmatprep.subr.mxu0 0.0
  %3068 = vmatpush1.msra.mxu0 0.0
  %3069 = vmatprep.subr.mxu0 0.0
  %3070 = vmatpush1.msra.mxu0 0.0
  %3071 = vmatprep.subr.mxu0 0.0
  %3072 = vmatpush1.msra.mxu0 0.0
  %3073 = vmatprep.subr.mxu0 0.0
  %3074 = vmatpush1.msra.mxu0 0.0
  %3075 = vmatprep.subr.mxu0 0.0
  %3076 = vmatpush1.msra.mxu0 0.0
  %3077 = vmatprep.subr.mxu0 0.0
  %3078 = vmatpush1.msra.mxu0 0.0
  %3079 = vmatprep.mubr.f32.mxu0 0.0
  %3080 = vmatmul.mubr.f32.gmra.mrb[0].mxu0 %v2801
  %v3081 = vpop.f32.mrb[0].mxu0
  %v3082 = vadd.f32 %v2940, %v3081
  %v3083 = vpop.f32.mrb[0].mxu0
  %v3084 = vadd.f32 %v2942, %v3083
  %3085 = vdwg.mxu0
  %v3086 = vadd.f32 %v3011, %v1183
  %v3087 = vadd.f32 %v3013, %v1187
  %v3088 = vadd.f32 %v3082, %v1191
  %v3089 = vadd.f32 %v3084, %v1195
  %v3090 = vxor.u32 %v3086, 2147483648
  %v3091 = vmul.f32 %v3090, 1.442695
  %v3092 = vpow.pop %v3091
  %v3093 = vadd.f32 %v3092, 1.0
  %v3094 = vrcp.pop %v3093
  %v3095 = vmul.f32 1.0, %v3094
  %v3096 = vxor.u32 %v3087, 2147483648
  %v3097 = vmul.f32 %v3096, 1.442695
  %v3098 = vpow.pop %v3097
  %v3099 = vadd.f32 %v3098, 1.0
  %v3100 = vrcp.pop %v3099
  %v3101 = vmul.f32 1.0, %v3100
  %v3102 = vtanh.pop %v3088
  %v3103 = vxor.u32 %v3089, 2147483648
  %v3104 = vmul.f32 %v3103, 1.442695
  %v3105 = vpow.pop %v3104
  %v3106 = vadd.f32 %v3105, 1.0
  %v3107 = vrcp.pop %v3106
  %v3108 = vmul.f32 1.0, %v3107
  %v3109 = vmul.f32 %v3101, %v2713
  %v3110 = vmul.f32 %v3095, %v3102
  %v3111 = vadd.f32 %v3109, %v3110
  %v3112 = vtanh.pop %v3111
  %v3113 = vmul.f32 %v3108, %v3112
  %3114 = vmatprep.subr.mxu0 %v1147
  %3115 = vmatpush1.msra.mxu0 %v1146
  %3116 = vmatprep.subr.mxu0 %v1149
  %3117 = vmatpush1.msra.mxu0 %v1148
  %3118 = vmatprep.subr.mxu0 %v1151
  %3119 = vmatpush1.msra.mxu0 %v1150
  %3120 = vmatprep.subr.mxu0 %v1153
  %3121 = vmatpush1.msra.mxu0 %v1152
  %3122 = vmatprep.subr.mxu0 %v1155
  %3123 = vmatpush1.msra.mxu0 %v1154
  %3124 = vmatprep.subr.mxu0 %v1157
  %3125 = vmatpush1.msra.mxu0 %v1156
  %3126 = vmatprep.subr.mxu0 %v1159
  %3127 = vmatpush1.msra.mxu0 %v1158
  %3128 = vmatprep.subr.mxu0 %v1161
  %3129 = vmatpush1.msra.mxu0 %v1160
  %3130 = vmatprep.subr.mxu0 %v1163
  %3131 = vmatpush1.msra.mxu0 %v1162
  %3132 = vmatprep.subr.mxu0 %v1165
  %3133 = vmatpush1.msra.mxu0 %v1164
  %3134 = vmatprep.subr.mxu0 %v1167
  %3135 = vmatpush1.msra.mxu0 %v1166
  %3136 = vmatprep.subr.mxu0 %v1169
  %3137 = vmatpush1.msra.mxu0 %v1168
  %3138 = vmatprep.subr.mxu0 %v1171
  %3139 = vmatpush1.msra.mxu0 %v1170
  %3140 = vmatprep.subr.mxu0 %v1173
  %3141 = vmatpush1.msra.mxu0 %v1172
  %3142 = vmatprep.subr.mxu0 %v1175
  %3143 = vmatpush1.msra.mxu0 %v1174
  %3144 = vmatprep.subr.mxu0 %v1177
  %3145 = vmatpush1.msra.mxu0 %v1176
  %3146 = vmatprep.subr.mxu0 0.0
  %3147 = vmatpush1.msra.mxu0 0.0
  %3148 = vmatprep.subr.mxu0 0.0
  %3149 = vmatpush1.msra.mxu0 0.0
  %3150 = vmatprep.subr.mxu0 0.0
  %3151 = vmatpush1.msra.mxu0 0.0
  %3152 = vmatprep.subr.mxu0 0.0
  %3153 = vmatpush1.msra.mxu0 0.0
  %3154 = vmatprep.subr.mxu0 0.0
  %3155 = vmatpush1.msra.mxu0 0.0
  %3156 = vmatprep.subr.mxu0 0.0
  %3157 = vmatpush1.msra.mxu0 0.0
  %3158 = vmatprep.subr.mxu0 0.0
  %3159 = vmatpush1.msra.mxu0 0.0
  %3160 = vmatprep.subr.mxu0 0.0
  %3161 = vmatpush1.msra.mxu0 0.0
  %3162 = vmatprep.subr.mxu0 0.0
  %3163 = vmatpush1.msra.mxu0 0.0
  %3164 = vmatprep.subr.mxu0 0.0
  %3165 = vmatpush1.msra.mxu0 0.0
  %3166 = vmatprep.subr.mxu0 0.0
  %3167 = vmatpush1.msra.mxu0 0.0
  %3168 = vmatprep.subr.mxu0 0.0
  %3169 = vmatpush1.msra.mxu0 0.0
  %3170 = vmatprep.subr.mxu0 0.0
  %3171 = vmatpush1.msra.mxu0 0.0
  %3172 = vmatprep.subr.mxu0 0.0
  %3173 = vmatpush1.msra.mxu0 0.0
  %3174 = vmatprep.subr.mxu0 0.0
  %3175 = vmatpush1.msra.mxu0 0.0
  %3176 = vmatprep.subr.mxu0 0.0
  %3177 = vmatpush1.msra.mxu0 0.0
  %3178 = vmatprep.mubr.f32.mxu0 0.0
  %3179 = vmatmul.mubr.f32.gmra.mrb[0].mxu0 %v3113
  %v3180 = vpop.f32.mrb[0].mxu0
  %v3181 = vadd.f32 %v1205, %v3180
  %v3182 = vpop.f32.mrb[0].mxu0
  %v3183 = vadd.f32 %v1209, %v3182
  %3184 = vdwg.mxu0
  %v3187 = vcombine.low %v3181, %v3183
  %v3189 = vunpack.c.l.s4 1983009808
  %v3190 = vunpack.c.0.s8 %v3189
  %v3191 = vlaneseq
  %v3192 = vshrl.u32 %v3191, 7
  %v3193 = vsub.s32 %v3190, %v3192
  %v3194 = vrot.slane %v3187, %v3193
  %s3196 = scalar_lea.vmem %s11, 16
  %3197 = vst [vmem:[%s3196] sm:$0xf] %v3194
  %s3198 = scalar_lea.vmem %s1, 8
  %v3199 = vld [vmem:[%s3198] sm:$0x3]
  %3200 = vmatprep.subr.mxu0 %v1083
  %3201 = vmatpush1.msra.mxu0 %v1082
  %3202 = vmatprep.subr.mxu0 %v1087
  %3203 = vmatpush1.msra.mxu0 %v1086
  %3204 = vmatprep.subr.mxu0 %v1091
  %3205 = vmatpush1.msra.mxu0 %v1090
  %3206 = vmatprep.subr.mxu0 %v1095
  %3207 = vmatpush1.msra.mxu0 %v1094
  %3208 = vmatprep.subr.mxu0 %v1099
  %3209 = vmatpush1.msra.mxu0 %v1098
  %3210 = vmatprep.subr.mxu0 %v1103
  %3211 = vmatpush1.msra.mxu0 %v1102
  %3212 = vmatprep.subr.mxu0 %v1107
  %3213 = vmatpush1.msra.mxu0 %v1106
  %3214 = vmatprep.subr.mxu0 %v1111
  %3215 = vmatpush1.msra.mxu0 %v1110
  %3216 = vmatprep.subr.mxu0 %v1115
  %3217 = vmatpush1.msra.mxu0 %v1114
  %3218 = vmatprep.subr.mxu0 %v1119
  %3219 = vmatpush1.msra.mxu0 %v1118
  %3220 = vmatprep.subr.mxu0 %v1123
  %3221 = vmatpush1.msra.mxu0 %v1122
  %3222 = vmatprep.subr.mxu0 %v1127
  %3223 = vmatpush1.msra.mxu0 %v1126
  %3224 = vmatprep.subr.mxu0 %v1131
  %3225 = vmatpush1.msra.mxu0 %v1130
  %3226 = vmatprep.subr.mxu0 %v1135
  %3227 = vmatpush1.msra.mxu0 %v1134
  %3228 = vmatprep.subr.mxu0 %v1139
  %3229 = vmatpush1.msra.mxu0 %v1138
  %3230 = vmatprep.subr.mxu0 %v1143
  %3231 = vmatpush1.msra.mxu0 %v1142
  %3232 = vmatprep.subr.mxu0 0.0
  %3233 = vmatpush1.msra.mxu0 0.0
  %3234 = vmatprep.subr.mxu0 0.0
  %3235 = vmatpush1.msra.mxu0 0.0
  %3236 = vmatprep.subr.mxu0 0.0
  %3237 = vmatpush1.msra.mxu0 0.0
  %3238 = vmatprep.subr.mxu0 0.0
  %3239 = vmatpush1.msra.mxu0 0.0
  %3240 = vmatprep.subr.mxu0 0.0
  %3241 = vmatpush1.msra.mxu0 0.0
  %3242 = vmatprep.subr.mxu0 0.0
  %3243 = vmatpush1.msra.mxu0 0.0
  %3244 = vmatprep.subr.mxu0 0.0
  %3245 = vmatpush1.msra.mxu0 0.0
  %3246 = vmatprep.subr.mxu0 0.0
  %3247 = vmatpush1.msra.mxu0 0.0
  %3248 = vmatprep.subr.mxu0 0.0
  %3249 = vmatpush1.msra.mxu0 0.0
  %3250 = vmatprep.subr.mxu0 0.0
  %3251 = vmatpush1.msra.mxu0 0.0
  %3252 = vmatprep.subr.mxu0 0.0
  %3253 = vmatpush1.msra.mxu0 0.0
  %3254 = vmatprep.subr.mxu0 0.0
  %3255 = vmatpush1.msra.mxu0 0.0
  %3256 = vmatprep.subr.mxu0 0.0
  %3257 = vmatpush1.msra.mxu0 0.0
  %3258 = vmatprep.subr.mxu0 0.0
  %3259 = vmatpush1.msra.mxu0 0.0
  %3260 = vmatprep.subr.mxu0 0.0
  %3261 = vmatpush1.msra.mxu0 0.0
  %3262 = vmatprep.subr.mxu0 0.0
  %3263 = vmatpush1.msra.mxu0 0.0
  %3264 = vmatprep.mubr.f32.mxu0 0.0
  %3265 = vmatmul.mubr.f32.gmra.mrb[0].mxu0 %v3113
  %v3266 = vpop.f32.mrb[0].mxu0
  %v3267 = vadd.f32 0.0, %v3266
  %v3268 = vpop.f32.mrb[0].mxu0
  %v3269 = vadd.f32 0.0, %v3268
  %3270 = vdwg.mxu0
  %3271 = vmatprep.subr.mxu0 %v1085
  %3272 = vmatpush1.msra.mxu0 %v1084
  %3273 = vmatprep.subr.mxu0 %v1089
  %3274 = vmatpush1.msra.mxu0 %v1088
  %3275 = vmatprep.subr.mxu0 %v1093
  %3276 = vmatpush1.msra.mxu0 %v1092
  %3277 = vmatprep.subr.mxu0 %v1097
  %3278 = vmatpush1.msra.mxu0 %v1096
  %3279 = vmatprep.subr.mxu0 %v1101
  %3280 = vmatpush1.msra.mxu0 %v1100
  %3281 = vmatprep.subr.mxu0 %v1105
  %3282 = vmatpush1.msra.mxu0 %v1104
  %3283 = vmatprep.subr.mxu0 %v1109
  %3284 = vmatpush1.msra.mxu0 %v1108
  %3285 = vmatprep.subr.mxu0 %v1113
  %3286 = vmatpush1.msra.mxu0 %v1112
  %3287 = vmatprep.subr.mxu0 %v1117
  %3288 = vmatpush1.msra.mxu0 %v1116
  %3289 = vmatprep.subr.mxu0 %v1121
  %3290 = vmatpush1.msra.mxu0 %v1120
  %3291 = vmatprep.subr.mxu0 %v1125
  %3292 = vmatpush1.msra.mxu0 %v1124
  %3293 = vmatprep.subr.mxu0 %v1129
  %3294 = vmatpush1.msra.mxu0 %v1128
  %3295 = vmatprep.subr.mxu0 %v1133
  %3296 = vmatpush1.msra.mxu0 %v1132
  %3297 = vmatprep.subr.mxu0 %v1137
  %3298 = vmatpush1.msra.mxu0 %v1136
  %3299 = vmatprep.subr.mxu0 %v1141
  %3300 = vmatpush1.msra.mxu0 %v1140
  %3301 = vmatprep.subr.mxu0 %v1145
  %3302 = vmatpush1.msra.mxu0 %v1144
  %3303 = vmatprep.subr.mxu0 0.0
  %3304 = vmatpush1.msra.mxu0 0.0
  %3305 = vmatprep.subr.mxu0 0.0
  %3306 = vmatpush1.msra.mxu0 0.0
  %3307 = vmatprep.subr.mxu0 0.0
  %3308 = vmatpush1.msra.mxu0 0.0
  %3309 = vmatprep.subr.mxu0 0.0
  %3310 = vmatpush1.msra.mxu0 0.0
  %3311 = vmatprep.subr.mxu0 0.0
  %3312 = vmatpush1.msra.mxu0 0.0
  %3313 = vmatprep.subr.mxu0 0.0
  %3314 = vmatpush1.msra.mxu0 0.0
  %3315 = vmatprep.subr.mxu0 0.0
  %3316 = vmatpush1.msra.mxu0 0.0
  %3317 = vmatprep.subr.mxu0 0.0
  %3318 = vmatpush1.msra.mxu0 0.0
  %3319 = vmatprep.subr.mxu0 0.0
  %3320 = vmatpush1.msra.mxu0 0.0
  %3321 = vmatprep.subr.mxu0 0.0
  %3322 = vmatpush1.msra.mxu0 0.0
  %3323 = vmatprep.subr.mxu0 0.0
  %3324 = vmatpush1.msra.mxu0 0.0
  %3325 = vmatprep.subr.mxu0 0.0
  %3326 = vmatpush1.msra.mxu0 0.0
  %3327 = vmatprep.subr.mxu0 0.0
  %3328 = vmatpush1.msra.mxu0 0.0
  %3329 = vmatprep.subr.mxu0 0.0
  %3330 = vmatpush1.msra.mxu0 0.0
  %3331 = vmatprep.subr.mxu0 0.0
  %3332 = vmatpush1.msra.mxu0 0.0
  %3333 = vmatprep.subr.mxu0 0.0
  %3334 = vmatpush1.msra.mxu0 0.0
  %3335 = vmatprep.mubr.f32.mxu0 0.0
  %3336 = vmatmul.mubr.f32.gmra.mrb[0].mxu0 %v3113
  %v3337 = vpop.f32.mrb[0].mxu0
  %v3338 = vadd.f32 0.0, %v3337
  %v3339 = vpop.f32.mrb[0].mxu0
  %v3340 = vadd.f32 0.0, %v3339
  %3341 = vdwg.mxu0
  %3342 = vmatprep.subr.mxu0 %v1019
  %3343 = vmatpush1.msra.mxu0 %v1018
  %3344 = vmatprep.subr.mxu0 %v1023
  %3345 = vmatpush1.msra.mxu0 %v1022
  %3346 = vmatprep.subr.mxu0 %v1027
  %3347 = vmatpush1.msra.mxu0 %v1026
  %3348 = vmatprep.subr.mxu0 %v1031
  %3349 = vmatpush1.msra.mxu0 %v1030
  %3350 = vmatprep.subr.mxu0 %v1035
  %3351 = vmatpush1.msra.mxu0 %v1034
  %3352 = vmatprep.subr.mxu0 %v1039
  %3353 = vmatpush1.msra.mxu0 %v1038
  %3354 = vmatprep.subr.mxu0 %v1043
  %3355 = vmatpush1.msra.mxu0 %v1042
  %3356 = vmatprep.subr.mxu0 %v1047
  %3357 = vmatpush1.msra.mxu0 %v1046
  %3358 = vmatprep.subr.mxu0 %v1051
  %3359 = vmatpush1.msra.mxu0 %v1050
  %3360 = vmatprep.subr.mxu0 %v1055
  %3361 = vmatpush1.msra.mxu0 %v1054
  %3362 = vmatprep.subr.mxu0 %v1059
  %3363 = vmatpush1.msra.mxu0 %v1058
  %3364 = vmatprep.subr.mxu0 %v1063
  %3365 = vmatpush1.msra.mxu0 %v1062
  %3366 = vmatprep.subr.mxu0 %v1067
  %3367 = vmatpush1.msra.mxu0 %v1066
  %3368 = vmatprep.subr.mxu0 %v1071
  %3369 = vmatpush1.msra.mxu0 %v1070
  %3370 = vmatprep.subr.mxu0 %v1075
  %3371 = vmatpush1.msra.mxu0 %v1074
  %3372 = vmatprep.subr.mxu0 %v1079
  %3373 = vmatpush1.msra.mxu0 %v1078
  %3374 = vmatprep.subr.mxu0 0.0
  %3375 = vmatpush1.msra.mxu0 0.0
  %3376 = vmatprep.subr.mxu0 0.0
  %3377 = vmatpush1.msra.mxu0 0.0
  %3378 = vmatprep.subr.mxu0 0.0
  %3379 = vmatpush1.msra.mxu0 0.0
  %3380 = vmatprep.subr.mxu0 0.0
  %3381 = vmatpush1.msra.mxu0 0.0
  %3382 = vmatprep.subr.mxu0 0.0
  %3383 = vmatpush1.msra.mxu0 0.0
  %3384 = vmatprep.subr.mxu0 0.0
  %3385 = vmatpush1.msra.mxu0 0.0
  %3386 = vmatprep.subr.mxu0 0.0
  %3387 = vmatpush1.msra.mxu0 0.0
  %3388 = vmatprep.subr.mxu0 0.0
  %3389 = vmatpush1.msra.mxu0 0.0
  %3390 = vmatprep.subr.mxu0 0.0
  %3391 = vmatpush1.msra.mxu0 0.0
  %3392 = vmatprep.subr.mxu0 0.0
  %3393 = vmatpush1.msra.mxu0 0.0
  %3394 = vmatprep.subr.mxu0 0.0
  %3395 = vmatpush1.msra.mxu0 0.0
  %3396 = vmatprep.subr.mxu0 0.0
  %3397 = vmatpush1.msra.mxu0 0.0
  %3398 = vmatprep.subr.mxu0 0.0
  %3399 = vmatpush1.msra.mxu0 0.0
  %3400 = vmatprep.subr.mxu0 0.0
  %3401 = vmatpush1.msra.mxu0 0.0
  %3402 = vmatprep.subr.mxu0 0.0
  %3403 = vmatpush1.msra.mxu0 0.0
  %3404 = vmatprep.subr.mxu0 0.0
  %3405 = vmatpush1.msra.mxu0 0.0
  %3406 = vmatprep.mubr.f32.mxu0 0.0
  %3407 = vmatmul.mubr.f32.gmra.mrb[0].mxu0 %v3199
  %v3408 = vpop.f32.mrb[0].mxu0
  %v3409 = vadd.f32 %v3267, %v3408
  %v3410 = vpop.f32.mrb[0].mxu0
  %v3411 = vadd.f32 %v3269, %v3410
  %3412 = vdwg.mxu0
  %3413 = vmatprep.subr.mxu0 %v1021
  %3414 = vmatpush1.msra.mxu0 %v1020
  %3415 = vmatprep.subr.mxu0 %v1025
  %3416 = vmatpush1.msra.mxu0 %v1024
  %3417 = vmatprep.subr.mxu0 %v1029
  %3418 = vmatpush1.msra.mxu0 %v1028
  %3419 = vmatprep.subr.mxu0 %v1033
  %3420 = vmatpush1.msra.mxu0 %v1032
  %3421 = vmatprep.subr.mxu0 %v1037
  %3422 = vmatpush1.msra.mxu0 %v1036
  %3423 = vmatprep.subr.mxu0 %v1041
  %3424 = vmatpush1.msra.mxu0 %v1040
  %3425 = vmatprep.subr.mxu0 %v1045
  %3426 = vmatpush1.msra.mxu0 %v1044
  %3427 = vmatprep.subr.mxu0 %v1049
  %3428 = vmatpush1.msra.mxu0 %v1048
  %3429 = vmatprep.subr.mxu0 %v1053
  %3430 = vmatpush1.msra.mxu0 %v1052
  %3431 = vmatprep.subr.mxu0 %v1057
  %3432 = vmatpush1.msra.mxu0 %v1056
  %3433 = vmatprep.subr.mxu0 %v1061
  %3434 = vmatpush1.msra.mxu0 %v1060
  %3435 = vmatprep.subr.mxu0 %v1065
  %3436 = vmatpush1.msra.mxu0 %v1064
  %3437 = vmatprep.subr.mxu0 %v1069
  %3438 = vmatpush1.msra.mxu0 %v1068
  %3439 = vmatprep.subr.mxu0 %v1073
  %3440 = vmatpush1.msra.mxu0 %v1072
  %3441 = vmatprep.subr.mxu0 %v1077
  %3442 = vmatpush1.msra.mxu0 %v1076
  %3443 = vmatprep.subr.mxu0 %v1081
  %3444 = vmatpush1.msra.mxu0 %v1080
  %3445 = vmatprep.subr.mxu0 0.0
  %3446 = vmatpush1.msra.mxu0 0.0
  %3447 = vmatprep.subr.mxu0 0.0
  %3448 = vmatpush1.msra.mxu0 0.0
  %3449 = vmatprep.subr.mxu0 0.0
  %3450 = vmatpush1.msra.mxu0 0.0
  %3451 = vmatprep.subr.mxu0 0.0
  %3452 = vmatpush1.msra.mxu0 0.0
  %3453 = vmatprep.subr.mxu0 0.0
  %3454 = vmatpush1.msra.mxu0 0.0
  %3455 = vmatprep.subr.mxu0 0.0
  %3456 = vmatpush1.msra.mxu0 0.0
  %3457 = vmatprep.subr.mxu0 0.0
  %3458 = vmatpush1.msra.mxu0 0.0
  %3459 = vmatprep.subr.mxu0 0.0
  %3460 = vmatpush1.msra.mxu0 0.0
  %3461 = vmatprep.subr.mxu0 0.0
  %3462 = vmatpush1.msra.mxu0 0.0
  %3463 = vmatprep.subr.mxu0 0.0
  %3464 = vmatpush1.msra.mxu0 0.0
  %3465 = vmatprep.subr.mxu0 0.0
  %3466 = vmatpush1.msra.mxu0 0.0
  %3467 = vmatprep.subr.mxu0 0.0
  %3468 = vmatpush1.msra.mxu0 0.0
  %3469 = vmatprep.subr.mxu0 0.0
  %3470 = vmatpush1.msra.mxu0 0.0
  %3471 = vmatprep.subr.mxu0 0.0
  %3472 = vmatpush1.msra.mxu0 0.0
  %3473 = vmatprep.subr.mxu0 0.0
  %3474 = vmatpush1.msra.mxu0 0.0
  %3475 = vmatprep.subr.mxu0 0.0
  %3476 = vmatpush1.msra.mxu0 0.0
  %3477 = vmatprep.mubr.f32.mxu0 0.0
  %3478 = vmatmul.mubr.f32.gmra.mrb[0].mxu0 %v3199
  %v3479 = vpop.f32.mrb[0].mxu0
  %v3480 = vadd.f32 %v3338, %v3479
  %v3481 = vpop.f32.mrb[0].mxu0
  %v3482 = vadd.f32 %v3340, %v3481
  %3483 = vdwg.mxu0
  %v3484 = vadd.f32 %v3409, %v1183
  %v3485 = vadd.f32 %v3411, %v1187
  %v3486 = vadd.f32 %v3480, %v1191
  %v3487 = vadd.f32 %v3482, %v1195
  %v3488 = vxor.u32 %v3484, 2147483648
  %v3489 = vmul.f32 %v3488, 1.442695
  %v3490 = vpow.pop %v3489
  %v3491 = vadd.f32 %v3490, 1.0
  %v3492 = vrcp.pop %v3491
  %v3493 = vmul.f32 1.0, %v3492
  %v3494 = vxor.u32 %v3485, 2147483648
  %v3495 = vmul.f32 %v3494, 1.442695
  %v3496 = vpow.pop %v3495
  %v3497 = vadd.f32 %v3496, 1.0
  %v3498 = vrcp.pop %v3497
  %v3499 = vmul.f32 1.0, %v3498
  %v3500 = vtanh.pop %v3486
  %v3501 = vxor.u32 %v3487, 2147483648
  %v3502 = vmul.f32 %v3501, 1.442695
  %v3503 = vpow.pop %v3502
  %v3504 = vadd.f32 %v3503, 1.0
  %v3505 = vrcp.pop %v3504
  %v3506 = vmul.f32 1.0, %v3505
  %v3507 = vmul.f32 %v3499, %v3111
  %v3508 = vmul.f32 %v3493, %v3500
  %v3509 = vadd.f32 %v3507, %v3508
  %v3510 = vtanh.pop %v3509
  %v3511 = vmul.f32 %v3506, %v3510
  %3512 = vmatprep.subr.mxu0 %v1147
  %3513 = vmatpush1.msra.mxu0 %v1146
  %3514 = vmatprep.subr.mxu0 %v1149
  %3515 = vmatpush1.msra.mxu0 %v1148
  %3516 = vmatprep.subr.mxu0 %v1151
  %3517 = vmatpush1.msra.mxu0 %v1150
  %3518 = vmatprep.subr.mxu0 %v1153
  %3519 = vmatpush1.msra.mxu0 %v1152
  %3520 = vmatprep.subr.mxu0 %v1155
  %3521 = vmatpush1.msra.mxu0 %v1154
  %3522 = vmatprep.subr.mxu0 %v1157
  %3523 = vmatpush1.msra.mxu0 %v1156
  %3524 = vmatprep.subr.mxu0 %v1159
  %3525 = vmatpush1.msra.mxu0 %v1158
  %3526 = vmatprep.subr.mxu0 %v1161
  %3527 = vmatpush1.msra.mxu0 %v1160
  %3528 = vmatprep.subr.mxu0 %v1163
  %3529 = vmatpush1.msra.mxu0 %v1162
  %3530 = vmatprep.subr.mxu0 %v1165
  %3531 = vmatpush1.msra.mxu0 %v1164
  %3532 = vmatprep.subr.mxu0 %v1167
  %3533 = vmatpush1.msra.mxu0 %v1166
  %3534 = vmatprep.subr.mxu0 %v1169
  %3535 = vmatpush1.msra.mxu0 %v1168
  %3536 = vmatprep.subr.mxu0 %v1171
  %3537 = vmatpush1.msra.mxu0 %v1170
  %3538 = vmatprep.subr.mxu0 %v1173
  %3539 = vmatpush1.msra.mxu0 %v1172
  %3540 = vmatprep.subr.mxu0 %v1175
  %3541 = vmatpush1.msra.mxu0 %v1174
  %3542 = vmatprep.subr.mxu0 %v1177
  %3543 = vmatpush1.msra.mxu0 %v1176
  %3544 = vmatprep.subr.mxu0 0.0
  %3545 = vmatpush1.msra.mxu0 0.0
  %3546 = vmatprep.subr.mxu0 0.0
  %3547 = vmatpush1.msra.mxu0 0.0
  %3548 = vmatprep.subr.mxu0 0.0
  %3549 = vmatpush1.msra.mxu0 0.0
  %3550 = vmatprep.subr.mxu0 0.0
  %3551 = vmatpush1.msra.mxu0 0.0
  %3552 = vmatprep.subr.mxu0 0.0
  %3553 = vmatpush1.msra.mxu0 0.0
  %3554 = vmatprep.subr.mxu0 0.0
  %3555 = vmatpush1.msra.mxu0 0.0
  %3556 = vmatprep.subr.mxu0 0.0
  %3557 = vmatpush1.msra.mxu0 0.0
  %3558 = vmatprep.subr.mxu0 0.0
  %3559 = vmatpush1.msra.mxu0 0.0
  %3560 = vmatprep.subr.mxu0 0.0
  %3561 = vmatpush1.msra.mxu0 0.0
  %3562 = vmatprep.subr.mxu0 0.0
  %3563 = vmatpush1.msra.mxu0 0.0
  %3564 = vmatprep.subr.mxu0 0.0
  %3565 = vmatpush1.msra.mxu0 0.0
  %3566 = vmatprep.subr.mxu0 0.0
  %3567 = vmatpush1.msra.mxu0 0.0
  %3568 = vmatprep.subr.mxu0 0.0
  %3569 = vmatpush1.msra.mxu0 0.0
  %3570 = vmatprep.subr.mxu0 0.0
  %3571 = vmatpush1.msra.mxu0 0.0
  %3572 = vmatprep.subr.mxu0 0.0
  %3573 = vmatpush1.msra.mxu0 0.0
  %3574 = vmatprep.subr.mxu0 0.0
  %3575 = vmatpush1.msra.mxu0 0.0
  %3576 = vmatprep.mubr.f32.mxu0 0.0
  %3577 = vmatmul.mubr.f32.gmra.mrb[0].mxu0 %v3511
  %v3578 = vpop.f32.mrb[0].mxu0
  %v3579 = vadd.f32 %v1205, %v3578
  %v3580 = vpop.f32.mrb[0].mxu0
  %v3581 = vadd.f32 %v1209, %v3580
  %3582 = vdwg.mxu0
  %v3585 = vcombine.low %v3579, %v3581
  %v3587 = vunpack.c.l.s4 1983009808
  %v3588 = vunpack.c.0.s8 %v3587
  %v3589 = vlaneseq
  %v3590 = vshrl.u32 %v3589, 7
  %v3591 = vsub.s32 %v3588, %v3590
  %v3592 = vrot.slane %v3585, %v3591
  %s3594 = scalar_lea.vmem %s11, 20
  %3595 = vst [vmem:[%s3594] sm:$0xf] %v3592
  %s3596 = scalar_lea.vmem %s1, 10
  %v3597 = vld [vmem:[%s3596] sm:$0x3]
  %3598 = vmatprep.subr.mxu0 %v1083
  %3599 = vmatpush1.msra.mxu0 %v1082
  %3600 = vmatprep.subr.mxu0 %v1087
  %3601 = vmatpush1.msra.mxu0 %v1086
  %3602 = vmatprep.subr.mxu0 %v1091
  %3603 = vmatpush1.msra.mxu0 %v1090
  %3604 = vmatprep.subr.mxu0 %v1095
  %3605 = vmatpush1.msra.mxu0 %v1094
  %3606 = vmatprep.subr.mxu0 %v1099
  %3607 = vmatpush1.msra.mxu0 %v1098
  %3608 = vmatprep.subr.mxu0 %v1103
  %3609 = vmatpush1.msra.mxu0 %v1102
  %3610 = vmatprep.subr.mxu0 %v1107
  %3611 = vmatpush1.msra.mxu0 %v1106
  %3612 = vmatprep.subr.mxu0 %v1111
  %3613 = vmatpush1.msra.mxu0 %v1110
  %3614 = vmatprep.subr.mxu0 %v1115
  %3615 = vmatpush1.msra.mxu0 %v1114
  %3616 = vmatprep.subr.mxu0 %v1119
  %3617 = vmatpush1.msra.mxu0 %v1118
  %3618 = vmatprep.subr.mxu0 %v1123
  %3619 = vmatpush1.msra.mxu0 %v1122
  %3620 = vmatprep.subr.mxu0 %v1127
  %3621 = vmatpush1.msra.mxu0 %v1126
  %3622 = vmatprep.subr.mxu0 %v1131
  %3623 = vmatpush1.msra.mxu0 %v1130
  %3624 = vmatprep.subr.mxu0 %v1135
  %3625 = vmatpush1.msra.mxu0 %v1134
  %3626 = vmatprep.subr.mxu0 %v1139
  %3627 = vmatpush1.msra.mxu0 %v1138
  %3628 = vmatprep.subr.mxu0 %v1143
  %3629 = vmatpush1.msra.mxu0 %v1142
  %3630 = vmatprep.subr.mxu0 0.0
  %3631 = vmatpush1.msra.mxu0 0.0
  %3632 = vmatprep.subr.mxu0 0.0
  %3633 = vmatpush1.msra.mxu0 0.0
  %3634 = vmatprep.subr.mxu0 0.0
  %3635 = vmatpush1.msra.mxu0 0.0
  %3636 = vmatprep.subr.mxu0 0.0
  %3637 = vmatpush1.msra.mxu0 0.0
  %3638 = vmatprep.subr.mxu0 0.0
  %3639 = vmatpush1.msra.mxu0 0.0
  %3640 = vmatprep.subr.mxu0 0.0
  %3641 = vmatpush1.msra.mxu0 0.0
  %3642 = vmatprep.subr.mxu0 0.0
  %3643 = vmatpush1.msra.mxu0 0.0
  %3644 = vmatprep.subr.mxu0 0.0
  %3645 = vmatpush1.msra.mxu0 0.0
  %3646 = vmatprep.subr.mxu0 0.0
  %3647 = vmatpush1.msra.mxu0 0.0
  %3648 = vmatprep.subr.mxu0 0.0
  %3649 = vmatpush1.msra.mxu0 0.0
  %3650 = vmatprep.subr.mxu0 0.0
  %3651 = vmatpush1.msra.mxu0 0.0
  %3652 = vmatprep.subr.mxu0 0.0
  %3653 = vmatpush1.msra.mxu0 0.0
  %3654 = vmatprep.subr.mxu0 0.0
  %3655 = vmatpush1.msra.mxu0 0.0
  %3656 = vmatprep.subr.mxu0 0.0
  %3657 = vmatpush1.msra.mxu0 0.0
  %3658 = vmatprep.subr.mxu0 0.0
  %3659 = vmatpush1.msra.mxu0 0.0
  %3660 = vmatprep.subr.mxu0 0.0
  %3661 = vmatpush1.msra.mxu0 0.0
  %3662 = vmatprep.mubr.f32.mxu0 0.0
  %3663 = vmatmul.mubr.f32.gmra.mrb[0].mxu0 %v3511
  %v3664 = vpop.f32.mrb[0].mxu0
  %v3665 = vadd.f32 0.0, %v3664
  %v3666 = vpop.f32.mrb[0].mxu0
  %v3667 = vadd.f32 0.0, %v3666
  %3668 = vdwg.mxu0
  %3669 = vmatprep.subr.mxu0 %v1085
  %3670 = vmatpush1.msra.mxu0 %v1084
  %3671 = vmatprep.subr.mxu0 %v1089
  %3672 = vmatpush1.msra.mxu0 %v1088
  %3673 = vmatprep.subr.mxu0 %v1093
  %3674 = vmatpush1.msra.mxu0 %v1092
  %3675 = vmatprep.subr.mxu0 %v1097
  %3676 = vmatpush1.msra.mxu0 %v1096
  %3677 = vmatprep.subr.mxu0 %v1101
  %3678 = vmatpush1.msra.mxu0 %v1100
  %3679 = vmatprep.subr.mxu0 %v1105
  %3680 = vmatpush1.msra.mxu0 %v1104
  %3681 = vmatprep.subr.mxu0 %v1109
  %3682 = vmatpush1.msra.mxu0 %v1108
  %3683 = vmatprep.subr.mxu0 %v1113
  %3684 = vmatpush1.msra.mxu0 %v1112
  %3685 = vmatprep.subr.mxu0 %v1117
  %3686 = vmatpush1.msra.mxu0 %v1116
  %3687 = vmatprep.subr.mxu0 %v1121
  %3688 = vmatpush1.msra.mxu0 %v1120
  %3689 = vmatprep.subr.mxu0 %v1125
  %3690 = vmatpush1.msra.mxu0 %v1124
  %3691 = vmatprep.subr.mxu0 %v1129
  %3692 = vmatpush1.msra.mxu0 %v1128
  %3693 = vmatprep.subr.mxu0 %v1133
  %3694 = vmatpush1.msra.mxu0 %v1132
  %3695 = vmatprep.subr.mxu0 %v1137
  %3696 = vmatpush1.msra.mxu0 %v1136
  %3697 = vmatprep.subr.mxu0 %v1141
  %3698 = vmatpush1.msra.mxu0 %v1140
  %3699 = vmatprep.subr.mxu0 %v1145
  %3700 = vmatpush1.msra.mxu0 %v1144
  %3701 = vmatprep.subr.mxu0 0.0
  %3702 = vmatpush1.msra.mxu0 0.0
  %3703 = vmatprep.subr.mxu0 0.0
  %3704 = vmatpush1.msra.mxu0 0.0
  %3705 = vmatprep.subr.mxu0 0.0
  %3706 = vmatpush1.msra.mxu0 0.0
  %3707 = vmatprep.subr.mxu0 0.0
  %3708 = vmatpush1.msra.mxu0 0.0
  %3709 = vmatprep.subr.mxu0 0.0
  %3710 = vmatpush1.msra.mxu0 0.0
  %3711 = vmatprep.subr.mxu0 0.0
  %3712 = vmatpush1.msra.mxu0 0.0
  %3713 = vmatprep.subr.mxu0 0.0
  %3714 = vmatpush1.msra.mxu0 0.0
  %3715 = vmatprep.subr.mxu0 0.0
  %3716 = vmatpush1.msra.mxu0 0.0
  %3717 = vmatprep.subr.mxu0 0.0
  %3718 = vmatpush1.msra.mxu0 0.0
  %3719 = vmatprep.subr.mxu0 0.0
  %3720 = vmatpush1.msra.mxu0 0.0
  %3721 = vmatprep.subr.mxu0 0.0
  %3722 = vmatpush1.msra.mxu0 0.0
  %3723 = vmatprep.subr.mxu0 0.0
  %3724 = vmatpush1.msra.mxu0 0.0
  %3725 = vmatprep.subr.mxu0 0.0
  %3726 = vmatpush1.msra.mxu0 0.0
  %3727 = vmatprep.subr.mxu0 0.0
  %3728 = vmatpush1.msra.mxu0 0.0
  %3729 = vmatprep.subr.mxu0 0.0
  %3730 = vmatpush1.msra.mxu0 0.0
  %3731 = vmatprep.subr.mxu0 0.0
  %3732 = vmatpush1.msra.mxu0 0.0
  %3733 = vmatprep.mubr.f32.mxu0 0.0
  %3734 = vmatmul.mubr.f32.gmra.mrb[0].mxu0 %v3511
  %v3735 = vpop.f32.mrb[0].mxu0
  %v3736 = vadd.f32 0.0, %v3735
  %v3737 = vpop.f32.mrb[0].mxu0
  %v3738 = vadd.f32 0.0, %v3737
  %3739 = vdwg.mxu0
  %3740 = vmatprep.subr.mxu0 %v1019
  %3741 = vmatpush1.msra.mxu0 %v1018
  %3742 = vmatprep.subr.mxu0 %v1023
  %3743 = vmatpush1.msra.mxu0 %v1022
  %3744 = vmatprep.subr.mxu0 %v1027
  %3745 = vmatpush1.msra.mxu0 %v1026
  %3746 = vmatprep.subr.mxu0 %v1031
  %3747 = vmatpush1.msra.mxu0 %v1030
  %3748 = vmatprep.subr.mxu0 %v1035
  %3749 = vmatpush1.msra.mxu0 %v1034
  %3750 = vmatprep.subr.mxu0 %v1039
  %3751 = vmatpush1.msra.mxu0 %v1038
  %3752 = vmatprep.subr.mxu0 %v1043
  %3753 = vmatpush1.msra.mxu0 %v1042
  %3754 = vmatprep.subr.mxu0 %v1047
  %3755 = vmatpush1.msra.mxu0 %v1046
  %3756 = vmatprep.subr.mxu0 %v1051
  %3757 = vmatpush1.msra.mxu0 %v1050
  %3758 = vmatprep.subr.mxu0 %v1055
  %3759 = vmatpush1.msra.mxu0 %v1054
  %3760 = vmatprep.subr.mxu0 %v1059
  %3761 = vmatpush1.msra.mxu0 %v1058
  %3762 = vmatprep.subr.mxu0 %v1063
  %3763 = vmatpush1.msra.mxu0 %v1062
  %3764 = vmatprep.subr.mxu0 %v1067
  %3765 = vmatpush1.msra.mxu0 %v1066
  %3766 = vmatprep.subr.mxu0 %v1071
  %3767 = vmatpush1.msra.mxu0 %v1070
  %3768 = vmatprep.subr.mxu0 %v1075
  %3769 = vmatpush1.msra.mxu0 %v1074
  %3770 = vmatprep.subr.mxu0 %v1079
  %3771 = vmatpush1.msra.mxu0 %v1078
  %3772 = vmatprep.subr.mxu0 0.0
  %3773 = vmatpush1.msra.mxu0 0.0
  %3774 = vmatprep.subr.mxu0 0.0
  %3775 = vmatpush1.msra.mxu0 0.0
  %3776 = vmatprep.subr.mxu0 0.0
  %3777 = vmatpush1.msra.mxu0 0.0
  %3778 = vmatprep.subr.mxu0 0.0
  %3779 = vmatpush1.msra.mxu0 0.0
  %3780 = vmatprep.subr.mxu0 0.0
  %3781 = vmatpush1.msra.mxu0 0.0
  %3782 = vmatprep.subr.mxu0 0.0
  %3783 = vmatpush1.msra.mxu0 0.0
  %3784 = vmatprep.subr.mxu0 0.0
  %3785 = vmatpush1.msra.mxu0 0.0
  %3786 = vmatprep.subr.mxu0 0.0
  %3787 = vmatpush1.msra.mxu0 0.0
  %3788 = vmatprep.subr.mxu0 0.0
  %3789 = vmatpush1.msra.mxu0 0.0
  %3790 = vmatprep.subr.mxu0 0.0
  %3791 = vmatpush1.msra.mxu0 0.0
  %3792 = vmatprep.subr.mxu0 0.0
  %3793 = vmatpush1.msra.mxu0 0.0
  %3794 = vmatprep.subr.mxu0 0.0
  %3795 = vmatpush1.msra.mxu0 0.0
  %3796 = vmatprep.subr.mxu0 0.0
  %3797 = vmatpush1.msra.mxu0 0.0
  %3798 = vmatprep.subr.mxu0 0.0
  %3799 = vmatpush1.msra.mxu0 0.0
  %3800 = vmatprep.subr.mxu0 0.0
  %3801 = vmatpush1.msra.mxu0 0.0
  %3802 = vmatprep.subr.mxu0 0.0
  %3803 = vmatpush1.msra.mxu0 0.0
  %3804 = vmatprep.mubr.f32.mxu0 0.0
  %3805 = vmatmul.mubr.f32.gmra.mrb[0].mxu0 %v3597
  %v3806 = vpop.f32.mrb[0].mxu0
  %v3807 = vadd.f32 %v3665, %v3806
  %v3808 = vpop.f32.mrb[0].mxu0
  %v3809 = vadd.f32 %v3667, %v3808
  %3810 = vdwg.mxu0
  %3811 = vmatprep.subr.mxu0 %v1021
  %3812 = vmatpush1.msra.mxu0 %v1020
  %3813 = vmatprep.subr.mxu0 %v1025
  %3814 = vmatpush1.msra.mxu0 %v1024
  %3815 = vmatprep.subr.mxu0 %v1029
  %3816 = vmatpush1.msra.mxu0 %v1028
  %3817 = vmatprep.subr.mxu0 %v1033
  %3818 = vmatpush1.msra.mxu0 %v1032
  %3819 = vmatprep.subr.mxu0 %v1037
  %3820 = vmatpush1.msra.mxu0 %v1036
  %3821 = vmatprep.subr.mxu0 %v1041
  %3822 = vmatpush1.msra.mxu0 %v1040
  %3823 = vmatprep.subr.mxu0 %v1045
  %3824 = vmatpush1.msra.mxu0 %v1044
  %3825 = vmatprep.subr.mxu0 %v1049
  %3826 = vmatpush1.msra.mxu0 %v1048
  %3827 = vmatprep.subr.mxu0 %v1053
  %3828 = vmatpush1.msra.mxu0 %v1052
  %3829 = vmatprep.subr.mxu0 %v1057
  %3830 = vmatpush1.msra.mxu0 %v1056
  %3831 = vmatprep.subr.mxu0 %v1061
  %3832 = vmatpush1.msra.mxu0 %v1060
  %3833 = vmatprep.subr.mxu0 %v1065
  %3834 = vmatpush1.msra.mxu0 %v1064
  %3835 = vmatprep.subr.mxu0 %v1069
  %3836 = vmatpush1.msra.mxu0 %v1068
  %3837 = vmatprep.subr.mxu0 %v1073
  %3838 = vmatpush1.msra.mxu0 %v1072
  %3839 = vmatprep.subr.mxu0 %v1077
  %3840 = vmatpush1.msra.mxu0 %v1076
  %3841 = vmatprep.subr.mxu0 %v1081
  %3842 = vmatpush1.msra.mxu0 %v1080
  %3843 = vmatprep.subr.mxu0 0.0
  %3844 = vmatpush1.msra.mxu0 0.0
  %3845 = vmatprep.subr.mxu0 0.0
  %3846 = vmatpush1.msra.mxu0 0.0
  %3847 = vmatprep.subr.mxu0 0.0
  %3848 = vmatpush1.msra.mxu0 0.0
  %3849 = vmatprep.subr.mxu0 0.0
  %3850 = vmatpush1.msra.mxu0 0.0
  %3851 = vmatprep.subr.mxu0 0.0
  %3852 = vmatpush1.msra.mxu0 0.0
  %3853 = vmatprep.subr.mxu0 0.0
  %3854 = vmatpush1.msra.mxu0 0.0
  %3855 = vmatprep.subr.mxu0 0.0
  %3856 = vmatpush1.msra.mxu0 0.0
  %3857 = vmatprep.subr.mxu0 0.0
  %3858 = vmatpush1.msra.mxu0 0.0
  %3859 = vmatprep.subr.mxu0 0.0
  %3860 = vmatpush1.msra.mxu0 0.0
  %3861 = vmatprep.subr.mxu0 0.0
  %3862 = vmatpush1.msra.mxu0 0.0
  %3863 = vmatprep.subr.mxu0 0.0
  %3864 = vmatpush1.msra.mxu0 0.0
  %3865 = vmatprep.subr.mxu0 0.0
  %3866 = vmatpush1.msra.mxu0 0.0
  %3867 = vmatprep.subr.mxu0 0.0
  %3868 = vmatpush1.msra.mxu0 0.0
  %3869 = vmatprep.subr.mxu0 0.0
  %3870 = vmatpush1.msra.mxu0 0.0
  %3871 = vmatprep.subr.mxu0 0.0
  %3872 = vmatpush1.msra.mxu0 0.0
  %3873 = vmatprep.subr.mxu0 0.0
  %3874 = vmatpush1.msra.mxu0 0.0
  %3875 = vmatprep.mubr.f32.mxu0 0.0
  %3876 = vmatmul.mubr.f32.gmra.mrb[0].mxu0 %v3597
  %v3877 = vpop.f32.mrb[0].mxu0
  %v3878 = vadd.f32 %v3736, %v3877
  %v3879 = vpop.f32.mrb[0].mxu0
  %v3880 = vadd.f32 %v3738, %v3879
  %3881 = vdwg.mxu0
  %v3882 = vadd.f32 %v3807, %v1183
  %v3883 = vadd.f32 %v3809, %v1187
  %v3884 = vadd.f32 %v3878, %v1191
  %v3885 = vadd.f32 %v3880, %v1195
  %v3886 = vxor.u32 %v3882, 2147483648
  %v3887 = vmul.f32 %v3886, 1.442695
  %v3888 = vpow.pop %v3887
  %v3889 = vadd.f32 %v3888, 1.0
  %v3890 = vrcp.pop %v3889
  %v3891 = vmul.f32 1.0, %v3890
  %v3892 = vxor.u32 %v3883, 2147483648
  %v3893 = vmul.f32 %v3892, 1.442695
  %v3894 = vpow.pop %v3893
  %v3895 = vadd.f32 %v3894, 1.0
  %v3896 = vrcp.pop %v3895
  %v3897 = vmul.f32 1.0, %v3896
  %v3898 = vtanh.pop %v3884
  %v3899 = vxor.u32 %v3885, 2147483648
  %v3900 = vmul.f32 %v3899, 1.442695
  %v3901 = vpow.pop %v3900
  %v3902 = vadd.f32 %v3901, 1.0
  %v3903 = vrcp.pop %v3902
  %v3904 = vmul.f32 1.0, %v3903
  %v3905 = vmul.f32 %v3897, %v3509
  %v3906 = vmul.f32 %v3891, %v3898
  %v3907 = vadd.f32 %v3905, %v3906
  %v3908 = vtanh.pop %v3907
  %v3909 = vmul.f32 %v3904, %v3908
  %3910 = vmatprep.subr.mxu0 %v1147
  %3911 = vmatpush1.msra.mxu0 %v1146
  %3912 = vmatprep.subr.mxu0 %v1149
  %3913 = vmatpush1.msra.mxu0 %v1148
  %3914 = vmatprep.subr.mxu0 %v1151
  %3915 = vmatpush1.msra.mxu0 %v1150
  %3916 = vmatprep.subr.mxu0 %v1153
  %3917 = vmatpush1.msra.mxu0 %v1152
  %3918 = vmatprep.subr.mxu0 %v1155
  %3919 = vmatpush1.msra.mxu0 %v1154
  %3920 = vmatprep.subr.mxu0 %v1157
  %3921 = vmatpush1.msra.mxu0 %v1156
  %3922 = vmatprep.subr.mxu0 %v1159
  %3923 = vmatpush1.msra.mxu0 %v1158
  %3924 = vmatprep.subr.mxu0 %v1161
  %3925 = vmatpush1.msra.mxu0 %v1160
  %3926 = vmatprep.subr.mxu0 %v1163
  %3927 = vmatpush1.msra.mxu0 %v1162
  %3928 = vmatprep.subr.mxu0 %v1165
  %3929 = vmatpush1.msra.mxu0 %v1164
  %3930 = vmatprep.subr.mxu0 %v1167
  %3931 = vmatpush1.msra.mxu0 %v1166
  %3932 = vmatprep.subr.mxu0 %v1169
  %3933 = vmatpush1.msra.mxu0 %v1168
  %3934 = vmatprep.subr.mxu0 %v1171
  %3935 = vmatpush1.msra.mxu0 %v1170
  %3936 = vmatprep.subr.mxu0 %v1173
  %3937 = vmatpush1.msra.mxu0 %v1172
  %3938 = vmatprep.subr.mxu0 %v1175
  %3939 = vmatpush1.msra.mxu0 %v1174
  %3940 = vmatprep.subr.mxu0 %v1177
  %3941 = vmatpush1.msra.mxu0 %v1176
  %3942 = vmatprep.subr.mxu0 0.0
  %3943 = vmatpush1.msra.mxu0 0.0
  %3944 = vmatprep.subr.mxu0 0.0
  %3945 = vmatpush1.msra.mxu0 0.0
  %3946 = vmatprep.subr.mxu0 0.0
  %3947 = vmatpush1.msra.mxu0 0.0
  %3948 = vmatprep.subr.mxu0 0.0
  %3949 = vmatpush1.msra.mxu0 0.0
  %3950 = vmatprep.subr.mxu0 0.0
  %3951 = vmatpush1.msra.mxu0 0.0
  %3952 = vmatprep.subr.mxu0 0.0
  %3953 = vmatpush1.msra.mxu0 0.0
  %3954 = vmatprep.subr.mxu0 0.0
  %3955 = vmatpush1.msra.mxu0 0.0
  %3956 = vmatprep.subr.mxu0 0.0
  %3957 = vmatpush1.msra.mxu0 0.0
  %3958 = vmatprep.subr.mxu0 0.0
  %3959 = vmatpush1.msra.mxu0 0.0
  %3960 = vmatprep.subr.mxu0 0.0
  %3961 = vmatpush1.msra.mxu0 0.0
  %3962 = vmatprep.subr.mxu0 0.0
  %3963 = vmatpush1.msra.mxu0 0.0
  %3964 = vmatprep.subr.mxu0 0.0
  %3965 = vmatpush1.msra.mxu0 0.0
  %3966 = vmatprep.subr.mxu0 0.0
  %3967 = vmatpush1.msra.mxu0 0.0
  %3968 = vmatprep.subr.mxu0 0.0
  %3969 = vmatpush1.msra.mxu0 0.0
  %3970 = vmatprep.subr.mxu0 0.0
  %3971 = vmatpush1.msra.mxu0 0.0
  %3972 = vmatprep.subr.mxu0 0.0
  %3973 = vmatpush1.msra.mxu0 0.0
  %3974 = vmatprep.mubr.f32.mxu0 0.0
  %3975 = vmatmul.mubr.f32.gmra.mrb[0].mxu0 %v3909
  %v3976 = vpop.f32.mrb[0].mxu0
  %v3977 = vadd.f32 %v1205, %v3976
  %v3978 = vpop.f32.mrb[0].mxu0
  %v3979 = vadd.f32 %v1209, %v3978
  %3980 = vdwg.mxu0
  %v3983 = vcombine.low %v3977, %v3979
  %v3985 = vunpack.c.l.s4 1983009808
  %v3986 = vunpack.c.0.s8 %v3985
  %v3987 = vlaneseq
  %v3988 = vshrl.u32 %v3987, 7
  %v3989 = vsub.s32 %v3986, %v3988
  %v3990 = vrot.slane %v3983, %v3989
  %s3992 = scalar_lea.vmem %s11, 24
  %3993 = vst [vmem:[%s3992] sm:$0xf] %v3990
  %s3994 = scalar_lea.vmem %s1, 12
  %v3995 = vld [vmem:[%s3994] sm:$0x3]
  %3996 = vmatprep.subr.mxu0 %v1083
  %3997 = vmatpush1.msra.mxu0 %v1082
  %3998 = vmatprep.subr.mxu0 %v1087
  %3999 = vmatpush1.msra.mxu0 %v1086
  %4000 = vmatprep.subr.mxu0 %v1091
  %4001 = vmatpush1.msra.mxu0 %v1090
  %4002 = vmatprep.subr.mxu0 %v1095
  %4003 = vmatpush1.msra.mxu0 %v1094
  %4004 = vmatprep.subr.mxu0 %v1099
  %4005 = vmatpush1.msra.mxu0 %v1098
  %4006 = vmatprep.subr.mxu0 %v1103
  %4007 = vmatpush1.msra.mxu0 %v1102
  %4008 = vmatprep.subr.mxu0 %v1107
  %4009 = vmatpush1.msra.mxu0 %v1106
  %4010 = vmatprep.subr.mxu0 %v1111
  %4011 = vmatpush1.msra.mxu0 %v1110
  %4012 = vmatprep.subr.mxu0 %v1115
  %4013 = vmatpush1.msra.mxu0 %v1114
  %4014 = vmatprep.subr.mxu0 %v1119
  %4015 = vmatpush1.msra.mxu0 %v1118
  %4016 = vmatprep.subr.mxu0 %v1123
  %4017 = vmatpush1.msra.mxu0 %v1122
  %4018 = vmatprep.subr.mxu0 %v1127
  %4019 = vmatpush1.msra.mxu0 %v1126
  %4020 = vmatprep.subr.mxu0 %v1131
  %4021 = vmatpush1.msra.mxu0 %v1130
  %4022 = vmatprep.subr.mxu0 %v1135
  %4023 = vmatpush1.msra.mxu0 %v1134
  %4024 = vmatprep.subr.mxu0 %v1139
  %4025 = vmatpush1.msra.mxu0 %v1138
  %4026 = vmatprep.subr.mxu0 %v1143
  %4027 = vmatpush1.msra.mxu0 %v1142
  %4028 = vmatprep.subr.mxu0 0.0
  %4029 = vmatpush1.msra.mxu0 0.0
  %4030 = vmatprep.subr.mxu0 0.0
  %4031 = vmatpush1.msra.mxu0 0.0
  %4032 = vmatprep.subr.mxu0 0.0
  %4033 = vmatpush1.msra.mxu0 0.0
  %4034 = vmatprep.subr.mxu0 0.0
  %4035 = vmatpush1.msra.mxu0 0.0
  %4036 = vmatprep.subr.mxu0 0.0
  %4037 = vmatpush1.msra.mxu0 0.0
  %4038 = vmatprep.subr.mxu0 0.0
  %4039 = vmatpush1.msra.mxu0 0.0
  %4040 = vmatprep.subr.mxu0 0.0
  %4041 = vmatpush1.msra.mxu0 0.0
  %4042 = vmatprep.subr.mxu0 0.0
  %4043 = vmatpush1.msra.mxu0 0.0
  %4044 = vmatprep.subr.mxu0 0.0
  %4045 = vmatpush1.msra.mxu0 0.0
  %4046 = vmatprep.subr.mxu0 0.0
  %4047 = vmatpush1.msra.mxu0 0.0
  %4048 = vmatprep.subr.mxu0 0.0
  %4049 = vmatpush1.msra.mxu0 0.0
  %4050 = vmatprep.subr.mxu0 0.0
  %4051 = vmatpush1.msra.mxu0 0.0
  %4052 = vmatprep.subr.mxu0 0.0
  %4053 = vmatpush1.msra.mxu0 0.0
  %4054 = vmatprep.subr.mxu0 0.0
  %4055 = vmatpush1.msra.mxu0 0.0
  %4056 = vmatprep.subr.mxu0 0.0
  %4057 = vmatpush1.msra.mxu0 0.0
  %4058 = vmatprep.subr.mxu0 0.0
  %4059 = vmatpush1.msra.mxu0 0.0
  %4060 = vmatprep.mubr.f32.mxu0 0.0
  %4061 = vmatmul.mubr.f32.gmra.mrb[0].mxu0 %v3909
  %v4062 = vpop.f32.mrb[0].mxu0
  %v4063 = vadd.f32 0.0, %v4062
  %v4064 = vpop.f32.mrb[0].mxu0
  %v4065 = vadd.f32 0.0, %v4064
  %4066 = vdwg.mxu0
  %4067 = vmatprep.subr.mxu0 %v1085
  %4068 = vmatpush1.msra.mxu0 %v1084
  %4069 = vmatprep.subr.mxu0 %v1089
  %4070 = vmatpush1.msra.mxu0 %v1088
  %4071 = vmatprep.subr.mxu0 %v1093
  %4072 = vmatpush1.msra.mxu0 %v1092
  %4073 = vmatprep.subr.mxu0 %v1097
  %4074 = vmatpush1.msra.mxu0 %v1096
  %4075 = vmatprep.subr.mxu0 %v1101
  %4076 = vmatpush1.msra.mxu0 %v1100
  %4077 = vmatprep.subr.mxu0 %v1105
  %4078 = vmatpush1.msra.mxu0 %v1104
  %4079 = vmatprep.subr.mxu0 %v1109
  %4080 = vmatpush1.msra.mxu0 %v1108
  %4081 = vmatprep.subr.mxu0 %v1113
  %4082 = vmatpush1.msra.mxu0 %v1112
  %4083 = vmatprep.subr.mxu0 %v1117
  %4084 = vmatpush1.msra.mxu0 %v1116
  %4085 = vmatprep.subr.mxu0 %v1121
  %4086 = vmatpush1.msra.mxu0 %v1120
  %4087 = vmatprep.subr.mxu0 %v1125
  %4088 = vmatpush1.msra.mxu0 %v1124
  %4089 = vmatprep.subr.mxu0 %v1129
  %4090 = vmatpush1.msra.mxu0 %v1128
  %4091 = vmatprep.subr.mxu0 %v1133
  %4092 = vmatpush1.msra.mxu0 %v1132
  %4093 = vmatprep.subr.mxu0 %v1137
  %4094 = vmatpush1.msra.mxu0 %v1136
  %4095 = vmatprep.subr.mxu0 %v1141
  %4096 = vmatpush1.msra.mxu0 %v1140
  %4097 = vmatprep.subr.mxu0 %v1145
  %4098 = vmatpush1.msra.mxu0 %v1144
  %4099 = vmatprep.subr.mxu0 0.0
  %4100 = vmatpush1.msra.mxu0 0.0
  %4101 = vmatprep.subr.mxu0 0.0
  %4102 = vmatpush1.msra.mxu0 0.0
  %4103 = vmatprep.subr.mxu0 0.0
  %4104 = vmatpush1.msra.mxu0 0.0
  %4105 = vmatprep.subr.mxu0 0.0
  %4106 = vmatpush1.msra.mxu0 0.0
  %4107 = vmatprep.subr.mxu0 0.0
  %4108 = vmatpush1.msra.mxu0 0.0
  %4109 = vmatprep.subr.mxu0 0.0
  %4110 = vmatpush1.msra.mxu0 0.0
  %4111 = vmatprep.subr.mxu0 0.0
  %4112 = vmatpush1.msra.mxu0 0.0
  %4113 = vmatprep.subr.mxu0 0.0
  %4114 = vmatpush1.msra.mxu0 0.0
  %4115 = vmatprep.subr.mxu0 0.0
  %4116 = vmatpush1.msra.mxu0 0.0
  %4117 = vmatprep.subr.mxu0 0.0
  %4118 = vmatpush1.msra.mxu0 0.0
  %4119 = vmatprep.subr.mxu0 0.0
  %4120 = vmatpush1.msra.mxu0 0.0
  %4121 = vmatprep.subr.mxu0 0.0
  %4122 = vmatpush1.msra.mxu0 0.0
  %4123 = vmatprep.subr.mxu0 0.0
  %4124 = vmatpush1.msra.mxu0 0.0
  %4125 = vmatprep.subr.mxu0 0.0
  %4126 = vmatpush1.msra.mxu0 0.0
  %4127 = vmatprep.subr.mxu0 0.0
  %4128 = vmatpush1.msra.mxu0 0.0
  %4129 = vmatprep.subr.mxu0 0.0
  %4130 = vmatpush1.msra.mxu0 0.0
  %4131 = vmatprep.mubr.f32.mxu0 0.0
  %4132 = vmatmul.mubr.f32.gmra.mrb[0].mxu0 %v3909
  %v4133 = vpop.f32.mrb[0].mxu0
  %v4134 = vadd.f32 0.0, %v4133
  %v4135 = vpop.f32.mrb[0].mxu0
  %v4136 = vadd.f32 0.0, %v4135
  %4137 = vdwg.mxu0
  %4138 = vmatprep.subr.mxu0 %v1019
  %4139 = vmatpush1.msra.mxu0 %v1018
  %4140 = vmatprep.subr.mxu0 %v1023
  %4141 = vmatpush1.msra.mxu0 %v1022
  %4142 = vmatprep.subr.mxu0 %v1027
  %4143 = vmatpush1.msra.mxu0 %v1026
  %4144 = vmatprep.subr.mxu0 %v1031
  %4145 = vmatpush1.msra.mxu0 %v1030
  %4146 = vmatprep.subr.mxu0 %v1035
  %4147 = vmatpush1.msra.mxu0 %v1034
  %4148 = vmatprep.subr.mxu0 %v1039
  %4149 = vmatpush1.msra.mxu0 %v1038
  %4150 = vmatprep.subr.mxu0 %v1043
  %4151 = vmatpush1.msra.mxu0 %v1042
  %4152 = vmatprep.subr.mxu0 %v1047
  %4153 = vmatpush1.msra.mxu0 %v1046
  %4154 = vmatprep.subr.mxu0 %v1051
  %4155 = vmatpush1.msra.mxu0 %v1050
  %4156 = vmatprep.subr.mxu0 %v1055
  %4157 = vmatpush1.msra.mxu0 %v1054
  %4158 = vmatprep.subr.mxu0 %v1059
  %4159 = vmatpush1.msra.mxu0 %v1058
  %4160 = vmatprep.subr.mxu0 %v1063
  %4161 = vmatpush1.msra.mxu0 %v1062
  %4162 = vmatprep.subr.mxu0 %v1067
  %4163 = vmatpush1.msra.mxu0 %v1066
  %4164 = vmatprep.subr.mxu0 %v1071
  %4165 = vmatpush1.msra.mxu0 %v1070
  %4166 = vmatprep.subr.mxu0 %v1075
  %4167 = vmatpush1.msra.mxu0 %v1074
  %4168 = vmatprep.subr.mxu0 %v1079
  %4169 = vmatpush1.msra.mxu0 %v1078
  %4170 = vmatprep.subr.mxu0 0.0
  %4171 = vmatpush1.msra.mxu0 0.0
  %4172 = vmatprep.subr.mxu0 0.0
  %4173 = vmatpush1.msra.mxu0 0.0
  %4174 = vmatprep.subr.mxu0 0.0
  %4175 = vmatpush1.msra.mxu0 0.0
  %4176 = vmatprep.subr.mxu0 0.0
  %4177 = vmatpush1.msra.mxu0 0.0
  %4178 = vmatprep.subr.mxu0 0.0
  %4179 = vmatpush1.msra.mxu0 0.0
  %4180 = vmatprep.subr.mxu0 0.0
  %4181 = vmatpush1.msra.mxu0 0.0
  %4182 = vmatprep.subr.mxu0 0.0
  %4183 = vmatpush1.msra.mxu0 0.0
  %4184 = vmatprep.subr.mxu0 0.0
  %4185 = vmatpush1.msra.mxu0 0.0
  %4186 = vmatprep.subr.mxu0 0.0
  %4187 = vmatpush1.msra.mxu0 0.0
  %4188 = vmatprep.subr.mxu0 0.0
  %4189 = vmatpush1.msra.mxu0 0.0
  %4190 = vmatprep.subr.mxu0 0.0
  %4191 = vmatpush1.msra.mxu0 0.0
  %4192 = vmatprep.subr.mxu0 0.0
  %4193 = vmatpush1.msra.mxu0 0.0
  %4194 = vmatprep.subr.mxu0 0.0
  %4195 = vmatpush1.msra.mxu0 0.0
  %4196 = vmatprep.subr.mxu0 0.0
  %4197 = vmatpush1.msra.mxu0 0.0
  %4198 = vmatprep.subr.mxu0 0.0
  %4199 = vmatpush1.msra.mxu0 0.0
  %4200 = vmatprep.subr.mxu0 0.0
  %4201 = vmatpush1.msra.mxu0 0.0
  %4202 = vmatprep.mubr.f32.mxu0 0.0
  %4203 = vmatmul.mubr.f32.gmra.mrb[0].mxu0 %v3995
  %v4204 = vpop.f32.mrb[0].mxu0
  %v4205 = vadd.f32 %v4063, %v4204
  %v4206 = vpop.f32.mrb[0].mxu0
  %v4207 = vadd.f32 %v4065, %v4206
  %4208 = vdwg.mxu0
  %4209 = vmatprep.subr.mxu0 %v1021
  %4210 = vmatpush1.msra.mxu0 %v1020
  %4211 = vmatprep.subr.mxu0 %v1025
  %4212 = vmatpush1.msra.mxu0 %v1024
  %4213 = vmatprep.subr.mxu0 %v1029
  %4214 = vmatpush1.msra.mxu0 %v1028
  %4215 = vmatprep.subr.mxu0 %v1033
  %4216 = vmatpush1.msra.mxu0 %v1032
  %4217 = vmatprep.subr.mxu0 %v1037
  %4218 = vmatpush1.msra.mxu0 %v1036
  %4219 = vmatprep.subr.mxu0 %v1041
  %4220 = vmatpush1.msra.mxu0 %v1040
  %4221 = vmatprep.subr.mxu0 %v1045
  %4222 = vmatpush1.msra.mxu0 %v1044
  %4223 = vmatprep.subr.mxu0 %v1049
  %4224 = vmatpush1.msra.mxu0 %v1048
  %4225 = vmatprep.subr.mxu0 %v1053
  %4226 = vmatpush1.msra.mxu0 %v1052
  %4227 = vmatprep.subr.mxu0 %v1057
  %4228 = vmatpush1.msra.mxu0 %v1056
  %4229 = vmatprep.subr.mxu0 %v1061
  %4230 = vmatpush1.msra.mxu0 %v1060
  %4231 = vmatprep.subr.mxu0 %v1065
  %4232 = vmatpush1.msra.mxu0 %v1064
  %4233 = vmatprep.subr.mxu0 %v1069
  %4234 = vmatpush1.msra.mxu0 %v1068
  %4235 = vmatprep.subr.mxu0 %v1073
  %4236 = vmatpush1.msra.mxu0 %v1072
  %4237 = vmatprep.subr.mxu0 %v1077
  %4238 = vmatpush1.msra.mxu0 %v1076
  %4239 = vmatprep.subr.mxu0 %v1081
  %4240 = vmatpush1.msra.mxu0 %v1080
  %4241 = vmatprep.subr.mxu0 0.0
  %4242 = vmatpush1.msra.mxu0 0.0
  %4243 = vmatprep.subr.mxu0 0.0
  %4244 = vmatpush1.msra.mxu0 0.0
  %4245 = vmatprep.subr.mxu0 0.0
  %4246 = vmatpush1.msra.mxu0 0.0
  %4247 = vmatprep.subr.mxu0 0.0
  %4248 = vmatpush1.msra.mxu0 0.0
  %4249 = vmatprep.subr.mxu0 0.0
  %4250 = vmatpush1.msra.mxu0 0.0
  %4251 = vmatprep.subr.mxu0 0.0
  %4252 = vmatpush1.msra.mxu0 0.0
  %4253 = vmatprep.subr.mxu0 0.0
  %4254 = vmatpush1.msra.mxu0 0.0
  %4255 = vmatprep.subr.mxu0 0.0
  %4256 = vmatpush1.msra.mxu0 0.0
  %4257 = vmatprep.subr.mxu0 0.0
  %4258 = vmatpush1.msra.mxu0 0.0
  %4259 = vmatprep.subr.mxu0 0.0
  %4260 = vmatpush1.msra.mxu0 0.0
  %4261 = vmatprep.subr.mxu0 0.0
  %4262 = vmatpush1.msra.mxu0 0.0
  %4263 = vmatprep.subr.mxu0 0.0
  %4264 = vmatpush1.msra.mxu0 0.0
  %4265 = vmatprep.subr.mxu0 0.0
  %4266 = vmatpush1.msra.mxu0 0.0
  %4267 = vmatprep.subr.mxu0 0.0
  %4268 = vmatpush1.msra.mxu0 0.0
  %4269 = vmatprep.subr.mxu0 0.0
  %4270 = vmatpush1.msra.mxu0 0.0
  %4271 = vmatprep.subr.mxu0 0.0
  %4272 = vmatpush1.msra.mxu0 0.0
  %4273 = vmatprep.mubr.f32.mxu0 0.0
  %4274 = vmatmul.mubr.f32.gmra.mrb[0].mxu0 %v3995
  %v4275 = vpop.f32.mrb[0].mxu0
  %v4276 = vadd.f32 %v4134, %v4275
  %v4277 = vpop.f32.mrb[0].mxu0
  %v4278 = vadd.f32 %v4136, %v4277
  %4279 = vdwg.mxu0
  %v4280 = vadd.f32 %v4205, %v1183
  %v4281 = vadd.f32 %v4207, %v1187
  %v4282 = vadd.f32 %v4276, %v1191
  %v4283 = vadd.f32 %v4278, %v1195
  %v4284 = vxor.u32 %v4280, 2147483648
  %v4285 = vmul.f32 %v4284, 1.442695
  %v4286 = vpow.pop %v4285
  %v4287 = vadd.f32 %v4286, 1.0
  %v4288 = vrcp.pop %v4287
  %v4289 = vmul.f32 1.0, %v4288
  %v4290 = vxor.u32 %v4281, 2147483648
  %v4291 = vmul.f32 %v4290, 1.442695
  %v4292 = vpow.pop %v4291
  %v4293 = vadd.f32 %v4292, 1.0
  %v4294 = vrcp.pop %v4293
  %v4295 = vmul.f32 1.0, %v4294
  %v4296 = vtanh.pop %v4282
  %v4297 = vxor.u32 %v4283, 2147483648
  %v4298 = vmul.f32 %v4297, 1.442695
  %v4299 = vpow.pop %v4298
  %v4300 = vadd.f32 %v4299, 1.0
  %v4301 = vrcp.pop %v4300
  %v4302 = vmul.f32 1.0, %v4301
  %v4303 = vmul.f32 %v4295, %v3907
  %v4304 = vmul.f32 %v4289, %v4296
  %v4305 = vadd.f32 %v4303, %v4304
  %v4306 = vtanh.pop %v4305
  %v4307 = vmul.f32 %v4302, %v4306
  %4308 = vmatprep.subr.mxu0 %v1147
  %4309 = vmatpush1.msra.mxu0 %v1146
  %4310 = vmatprep.subr.mxu0 %v1149
  %4311 = vmatpush1.msra.mxu0 %v1148
  %4312 = vmatprep.subr.mxu0 %v1151
  %4313 = vmatpush1.msra.mxu0 %v1150
  %4314 = vmatprep.subr.mxu0 %v1153
  %4315 = vmatpush1.msra.mxu0 %v1152
  %4316 = vmatprep.subr.mxu0 %v1155
  %4317 = vmatpush1.msra.mxu0 %v1154
  %4318 = vmatprep.subr.mxu0 %v1157
  %4319 = vmatpush1.msra.mxu0 %v1156
  %4320 = vmatprep.subr.mxu0 %v1159
  %4321 = vmatpush1.msra.mxu0 %v1158
  %4322 = vmatprep.subr.mxu0 %v1161
  %4323 = vmatpush1.msra.mxu0 %v1160
  %4324 = vmatprep.subr.mxu0 %v1163
  %4325 = vmatpush1.msra.mxu0 %v1162
  %4326 = vmatprep.subr.mxu0 %v1165
  %4327 = vmatpush1.msra.mxu0 %v1164
  %4328 = vmatprep.subr.mxu0 %v1167
  %4329 = vmatpush1.msra.mxu0 %v1166
  %4330 = vmatprep.subr.mxu0 %v1169
  %4331 = vmatpush1.msra.mxu0 %v1168
  %4332 = vmatprep.subr.mxu0 %v1171
  %4333 = vmatpush1.msra.mxu0 %v1170
  %4334 = vmatprep.subr.mxu0 %v1173
  %4335 = vmatpush1.msra.mxu0 %v1172
  %4336 = vmatprep.subr.mxu0 %v1175
  %4337 = vmatpush1.msra.mxu0 %v1174
  %4338 = vmatprep.subr.mxu0 %v1177
  %4339 = vmatpush1.msra.mxu0 %v1176
  %4340 = vmatprep.subr.mxu0 0.0
  %4341 = vmatpush1.msra.mxu0 0.0
  %4342 = vmatprep.subr.mxu0 0.0
  %4343 = vmatpush1.msra.mxu0 0.0
  %4344 = vmatprep.subr.mxu0 0.0
  %4345 = vmatpush1.msra.mxu0 0.0
  %4346 = vmatprep.subr.mxu0 0.0
  %4347 = vmatpush1.msra.mxu0 0.0
  %4348 = vmatprep.subr.mxu0 0.0
  %4349 = vmatpush1.msra.mxu0 0.0
  %4350 = vmatprep.subr.mxu0 0.0
  %4351 = vmatpush1.msra.mxu0 0.0
  %4352 = vmatprep.subr.mxu0 0.0
  %4353 = vmatpush1.msra.mxu0 0.0
  %4354 = vmatprep.subr.mxu0 0.0
  %4355 = vmatpush1.msra.mxu0 0.0
  %4356 = vmatprep.subr.mxu0 0.0
  %4357 = vmatpush1.msra.mxu0 0.0
  %4358 = vmatprep.subr.mxu0 0.0
  %4359 = vmatpush1.msra.mxu0 0.0
  %4360 = vmatprep.subr.mxu0 0.0
  %4361 = vmatpush1.msra.mxu0 0.0
  %4362 = vmatprep.subr.mxu0 0.0
  %4363 = vmatpush1.msra.mxu0 0.0
  %4364 = vmatprep.subr.mxu0 0.0
  %4365 = vmatpush1.msra.mxu0 0.0
  %4366 = vmatprep.subr.mxu0 0.0
  %4367 = vmatpush1.msra.mxu0 0.0
  %4368 = vmatprep.subr.mxu0 0.0
  %4369 = vmatpush1.msra.mxu0 0.0
  %4370 = vmatprep.subr.mxu0 0.0
  %4371 = vmatpush1.msra.mxu0 0.0
  %4372 = vmatprep.mubr.f32.mxu0 0.0
  %4373 = vmatmul.mubr.f32.gmra.mrb[0].mxu0 %v4307
  %v4374 = vpop.f32.mrb[0].mxu0
  %v4375 = vadd.f32 %v1205, %v4374
  %v4376 = vpop.f32.mrb[0].mxu0
  %v4377 = vadd.f32 %v1209, %v4376
  %4378 = vdwg.mxu0
  %v4381 = vcombine.low %v4375, %v4377
  %v4383 = vunpack.c.l.s4 1983009808
  %v4384 = vunpack.c.0.s8 %v4383
  %v4385 = vlaneseq
  %v4386 = vshrl.u32 %v4385, 7
  %v4387 = vsub.s32 %v4384, %v4386
  %v4388 = vrot.slane %v4381, %v4387
  %s4390 = scalar_lea.vmem %s11, 28
  %4391 = vst [vmem:[%s4390] sm:$0xf] %v4388
  %s4392 = scalar_lea.vmem %s1, 14
  %v4393 = vld [vmem:[%s4392] sm:$0x3]
  %4394 = vmatprep.subr.mxu0 %v1083
  %4395 = vmatpush1.msra.mxu0 %v1082
  %4396 = vmatprep.subr.mxu0 %v1087
  %4397 = vmatpush1.msra.mxu0 %v1086
  %4398 = vmatprep.subr.mxu0 %v1091
  %4399 = vmatpush1.msra.mxu0 %v1090
  %4400 = vmatprep.subr.mxu0 %v1095
  %4401 = vmatpush1.msra.mxu0 %v1094
  %4402 = vmatprep.subr.mxu0 %v1099
  %4403 = vmatpush1.msra.mxu0 %v1098
  %4404 = vmatprep.subr.mxu0 %v1103
  %4405 = vmatpush1.msra.mxu0 %v1102
  %4406 = vmatprep.subr.mxu0 %v1107
  %4407 = vmatpush1.msra.mxu0 %v1106
  %4408 = vmatprep.subr.mxu0 %v1111
  %4409 = vmatpush1.msra.mxu0 %v1110
  %4410 = vmatprep.subr.mxu0 %v1115
  %4411 = vmatpush1.msra.mxu0 %v1114
  %4412 = vmatprep.subr.mxu0 %v1119
  %4413 = vmatpush1.msra.mxu0 %v1118
  %4414 = vmatprep.subr.mxu0 %v1123
  %4415 = vmatpush1.msra.mxu0 %v1122
  %4416 = vmatprep.subr.mxu0 %v1127
  %4417 = vmatpush1.msra.mxu0 %v1126
  %4418 = vmatprep.subr.mxu0 %v1131
  %4419 = vmatpush1.msra.mxu0 %v1130
  %4420 = vmatprep.subr.mxu0 %v1135
  %4421 = vmatpush1.msra.mxu0 %v1134
  %4422 = vmatprep.subr.mxu0 %v1139
  %4423 = vmatpush1.msra.mxu0 %v1138
  %4424 = vmatprep.subr.mxu0 %v1143
  %4425 = vmatpush1.msra.mxu0 %v1142
  %4426 = vmatprep.subr.mxu0 0.0
  %4427 = vmatpush1.msra.mxu0 0.0
  %4428 = vmatprep.subr.mxu0 0.0
  %4429 = vmatpush1.msra.mxu0 0.0
  %4430 = vmatprep.subr.mxu0 0.0
  %4431 = vmatpush1.msra.mxu0 0.0
  %4432 = vmatprep.subr.mxu0 0.0
  %4433 = vmatpush1.msra.mxu0 0.0
  %4434 = vmatprep.subr.mxu0 0.0
  %4435 = vmatpush1.msra.mxu0 0.0
  %4436 = vmatprep.subr.mxu0 0.0
  %4437 = vmatpush1.msra.mxu0 0.0
  %4438 = vmatprep.subr.mxu0 0.0
  %4439 = vmatpush1.msra.mxu0 0.0
  %4440 = vmatprep.subr.mxu0 0.0
  %4441 = vmatpush1.msra.mxu0 0.0
  %4442 = vmatprep.subr.mxu0 0.0
  %4443 = vmatpush1.msra.mxu0 0.0
  %4444 = vmatprep.subr.mxu0 0.0
  %4445 = vmatpush1.msra.mxu0 0.0
  %4446 = vmatprep.subr.mxu0 0.0
  %4447 = vmatpush1.msra.mxu0 0.0
  %4448 = vmatprep.subr.mxu0 0.0
  %4449 = vmatpush1.msra.mxu0 0.0
  %4450 = vmatprep.subr.mxu0 0.0
  %4451 = vmatpush1.msra.mxu0 0.0
  %4452 = vmatprep.subr.mxu0 0.0
  %4453 = vmatpush1.msra.mxu0 0.0
  %4454 = vmatprep.subr.mxu0 0.0
  %4455 = vmatpush1.msra.mxu0 0.0
  %4456 = vmatprep.subr.mxu0 0.0
  %4457 = vmatpush1.msra.mxu0 0.0
  %4458 = vmatprep.mubr.f32.mxu0 0.0
  %4459 = vmatmul.mubr.f32.gmra.mrb[0].mxu0 %v4307
  %v4460 = vpop.f32.mrb[0].mxu0
  %v4461 = vadd.f32 0.0, %v4460
  %v4462 = vpop.f32.mrb[0].mxu0
  %v4463 = vadd.f32 0.0, %v4462
  %4464 = vdwg.mxu0
  %4465 = vmatprep.subr.mxu0 %v1085
  %4466 = vmatpush1.msra.mxu0 %v1084
  %4467 = vmatprep.subr.mxu0 %v1089
  %4468 = vmatpush1.msra.mxu0 %v1088
  %4469 = vmatprep.subr.mxu0 %v1093
  %4470 = vmatpush1.msra.mxu0 %v1092
  %4471 = vmatprep.subr.mxu0 %v1097
  %4472 = vmatpush1.msra.mxu0 %v1096
  %4473 = vmatprep.subr.mxu0 %v1101
  %4474 = vmatpush1.msra.mxu0 %v1100
  %4475 = vmatprep.subr.mxu0 %v1105
  %4476 = vmatpush1.msra.mxu0 %v1104
  %4477 = vmatprep.subr.mxu0 %v1109
  %4478 = vmatpush1.msra.mxu0 %v1108
  %4479 = vmatprep.subr.mxu0 %v1113
  %4480 = vmatpush1.msra.mxu0 %v1112
  %4481 = vmatprep.subr.mxu0 %v1117
  %4482 = vmatpush1.msra.mxu0 %v1116
  %4483 = vmatprep.subr.mxu0 %v1121
  %4484 = vmatpush1.msra.mxu0 %v1120
  %4485 = vmatprep.subr.mxu0 %v1125
  %4486 = vmatpush1.msra.mxu0 %v1124
  %4487 = vmatprep.subr.mxu0 %v1129
  %4488 = vmatpush1.msra.mxu0 %v1128
  %4489 = vmatprep.subr.mxu0 %v1133
  %4490 = vmatpush1.msra.mxu0 %v1132
  %4491 = vmatprep.subr.mxu0 %v1137
  %4492 = vmatpush1.msra.mxu0 %v1136
  %4493 = vmatprep.subr.mxu0 %v1141
  %4494 = vmatpush1.msra.mxu0 %v1140
  %4495 = vmatprep.subr.mxu0 %v1145
  %4496 = vmatpush1.msra.mxu0 %v1144
  %4497 = vmatprep.subr.mxu0 0.0
  %4498 = vmatpush1.msra.mxu0 0.0
  %4499 = vmatprep.subr.mxu0 0.0
  %4500 = vmatpush1.msra.mxu0 0.0
  %4501 = vmatprep.subr.mxu0 0.0
  %4502 = vmatpush1.msra.mxu0 0.0
  %4503 = vmatprep.subr.mxu0 0.0
  %4504 = vmatpush1.msra.mxu0 0.0
  %4505 = vmatprep.subr.mxu0 0.0
  %4506 = vmatpush1.msra.mxu0 0.0
  %4507 = vmatprep.subr.mxu0 0.0
  %4508 = vmatpush1.msra.mxu0 0.0
  %4509 = vmatprep.subr.mxu0 0.0
  %4510 = vmatpush1.msra.mxu0 0.0
  %4511 = vmatprep.subr.mxu0 0.0
  %4512 = vmatpush1.msra.mxu0 0.0
  %4513 = vmatprep.subr.mxu0 0.0
  %4514 = vmatpush1.msra.mxu0 0.0
  %4515 = vmatprep.subr.mxu0 0.0
  %4516 = vmatpush1.msra.mxu0 0.0
  %4517 = vmatprep.subr.mxu0 0.0
  %4518 = vmatpush1.msra.mxu0 0.0
  %4519 = vmatprep.subr.mxu0 0.0
  %4520 = vmatpush1.msra.mxu0 0.0
  %4521 = vmatprep.subr.mxu0 0.0
  %4522 = vmatpush1.msra.mxu0 0.0
  %4523 = vmatprep.subr.mxu0 0.0
  %4524 = vmatpush1.msra.mxu0 0.0
  %4525 = vmatprep.subr.mxu0 0.0
  %4526 = vmatpush1.msra.mxu0 0.0
  %4527 = vmatprep.subr.mxu0 0.0
  %4528 = vmatpush1.msra.mxu0 0.0
  %4529 = vmatprep.mubr.f32.mxu0 0.0
  %4530 = vmatmul.mubr.f32.gmra.mrb[0].mxu0 %v4307
  %v4531 = vpop.f32.mrb[0].mxu0
  %v4532 = vadd.f32 0.0, %v4531
  %v4533 = vpop.f32.mrb[0].mxu0
  %v4534 = vadd.f32 0.0, %v4533
  %4535 = vdwg.mxu0
  %4536 = vmatprep.subr.mxu0 %v1019
  %4537 = vmatpush1.msra.mxu0 %v1018
  %4538 = vmatprep.subr.mxu0 %v1023
  %4539 = vmatpush1.msra.mxu0 %v1022
  %4540 = vmatprep.subr.mxu0 %v1027
  %4541 = vmatpush1.msra.mxu0 %v1026
  %4542 = vmatprep.subr.mxu0 %v1031
  %4543 = vmatpush1.msra.mxu0 %v1030
  %4544 = vmatprep.subr.mxu0 %v1035
  %4545 = vmatpush1.msra.mxu0 %v1034
  %4546 = vmatprep.subr.mxu0 %v1039
  %4547 = vmatpush1.msra.mxu0 %v1038
  %4548 = vmatprep.subr.mxu0 %v1043
  %4549 = vmatpush1.msra.mxu0 %v1042
  %4550 = vmatprep.subr.mxu0 %v1047
  %4551 = vmatpush1.msra.mxu0 %v1046
  %4552 = vmatprep.subr.mxu0 %v1051
  %4553 = vmatpush1.msra.mxu0 %v1050
  %4554 = vmatprep.subr.mxu0 %v1055
  %4555 = vmatpush1.msra.mxu0 %v1054
  %4556 = vmatprep.subr.mxu0 %v1059
  %4557 = vmatpush1.msra.mxu0 %v1058
  %4558 = vmatprep.subr.mxu0 %v1063
  %4559 = vmatpush1.msra.mxu0 %v1062
  %4560 = vmatprep.subr.mxu0 %v1067
  %4561 = vmatpush1.msra.mxu0 %v1066
  %4562 = vmatprep.subr.mxu0 %v1071
  %4563 = vmatpush1.msra.mxu0 %v1070
  %4564 = vmatprep.subr.mxu0 %v1075
  %4565 = vmatpush1.msra.mxu0 %v1074
  %4566 = vmatprep.subr.mxu0 %v1079
  %4567 = vmatpush1.msra.mxu0 %v1078
  %4568 = vmatprep.subr.mxu0 0.0
  %4569 = vmatpush1.msra.mxu0 0.0
  %4570 = vmatprep.subr.mxu0 0.0
  %4571 = vmatpush1.msra.mxu0 0.0
  %4572 = vmatprep.subr.mxu0 0.0
  %4573 = vmatpush1.msra.mxu0 0.0
  %4574 = vmatprep.subr.mxu0 0.0
  %4575 = vmatpush1.msra.mxu0 0.0
  %4576 = vmatprep.subr.mxu0 0.0
  %4577 = vmatpush1.msra.mxu0 0.0
  %4578 = vmatprep.subr.mxu0 0.0
  %4579 = vmatpush1.msra.mxu0 0.0
  %4580 = vmatprep.subr.mxu0 0.0
  %4581 = vmatpush1.msra.mxu0 0.0
  %4582 = vmatprep.subr.mxu0 0.0
  %4583 = vmatpush1.msra.mxu0 0.0
  %4584 = vmatprep.subr.mxu0 0.0
  %4585 = vmatpush1.msra.mxu0 0.0
  %4586 = vmatprep.subr.mxu0 0.0
  %4587 = vmatpush1.msra.mxu0 0.0
  %4588 = vmatprep.subr.mxu0 0.0
  %4589 = vmatpush1.msra.mxu0 0.0
  %4590 = vmatprep.subr.mxu0 0.0
  %4591 = vmatpush1.msra.mxu0 0.0
  %4592 = vmatprep.subr.mxu0 0.0
  %4593 = vmatpush1.msra.mxu0 0.0
  %4594 = vmatprep.subr.mxu0 0.0
  %4595 = vmatpush1.msra.mxu0 0.0
  %4596 = vmatprep.subr.mxu0 0.0
  %4597 = vmatpush1.msra.mxu0 0.0
  %4598 = vmatprep.subr.mxu0 0.0
  %4599 = vmatpush1.msra.mxu0 0.0
  %4600 = vmatprep.mubr.f32.mxu0 0.0
  %4601 = vmatmul.mubr.f32.gmra.mrb[0].mxu0 %v4393
  %v4602 = vpop.f32.mrb[0].mxu0
  %v4603 = vadd.f32 %v4461, %v4602
  %v4604 = vpop.f32.mrb[0].mxu0
  %v4605 = vadd.f32 %v4463, %v4604
  %4606 = vdwg.mxu0
  %4607 = vmatprep.subr.mxu0 %v1021
  %4608 = vmatpush1.msra.mxu0 %v1020
  %4609 = vmatprep.subr.mxu0 %v1025
  %4610 = vmatpush1.msra.mxu0 %v1024
  %4611 = vmatprep.subr.mxu0 %v1029
  %4612 = vmatpush1.msra.mxu0 %v1028
  %4613 = vmatprep.subr.mxu0 %v1033
  %4614 = vmatpush1.msra.mxu0 %v1032
  %4615 = vmatprep.subr.mxu0 %v1037
  %4616 = vmatpush1.msra.mxu0 %v1036
  %4617 = vmatprep.subr.mxu0 %v1041
  %4618 = vmatpush1.msra.mxu0 %v1040
  %4619 = vmatprep.subr.mxu0 %v1045
  %4620 = vmatpush1.msra.mxu0 %v1044
  %4621 = vmatprep.subr.mxu0 %v1049
  %4622 = vmatpush1.msra.mxu0 %v1048
  %4623 = vmatprep.subr.mxu0 %v1053
  %4624 = vmatpush1.msra.mxu0 %v1052
  %4625 = vmatprep.subr.mxu0 %v1057
  %4626 = vmatpush1.msra.mxu0 %v1056
  %4627 = vmatprep.subr.mxu0 %v1061
  %4628 = vmatpush1.msra.mxu0 %v1060
  %4629 = vmatprep.subr.mxu0 %v1065
  %4630 = vmatpush1.msra.mxu0 %v1064
  %4631 = vmatprep.subr.mxu0 %v1069
  %4632 = vmatpush1.msra.mxu0 %v1068
  %4633 = vmatprep.subr.mxu0 %v1073
  %4634 = vmatpush1.msra.mxu0 %v1072
  %4635 = vmatprep.subr.mxu0 %v1077
  %4636 = vmatpush1.msra.mxu0 %v1076
  %4637 = vmatprep.subr.mxu0 %v1081
  %4638 = vmatpush1.msra.mxu0 %v1080
  %4639 = vmatprep.subr.mxu0 0.0
  %4640 = vmatpush1.msra.mxu0 0.0
  %4641 = vmatprep.subr.mxu0 0.0
  %4642 = vmatpush1.msra.mxu0 0.0
  %4643 = vmatprep.subr.mxu0 0.0
  %4644 = vmatpush1.msra.mxu0 0.0
  %4645 = vmatprep.subr.mxu0 0.0
  %4646 = vmatpush1.msra.mxu0 0.0
  %4647 = vmatprep.subr.mxu0 0.0
  %4648 = vmatpush1.msra.mxu0 0.0
  %4649 = vmatprep.subr.mxu0 0.0
  %4650 = vmatpush1.msra.mxu0 0.0
  %4651 = vmatprep.subr.mxu0 0.0
  %4652 = vmatpush1.msra.mxu0 0.0
  %4653 = vmatprep.subr.mxu0 0.0
  %4654 = vmatpush1.msra.mxu0 0.0
  %4655 = vmatprep.subr.mxu0 0.0
  %4656 = vmatpush1.msra.mxu0 0.0
  %4657 = vmatprep.subr.mxu0 0.0
  %4658 = vmatpush1.msra.mxu0 0.0
  %4659 = vmatprep.subr.mxu0 0.0
  %4660 = vmatpush1.msra.mxu0 0.0
  %4661 = vmatprep.subr.mxu0 0.0
  %4662 = vmatpush1.msra.mxu0 0.0
  %4663 = vmatprep.subr.mxu0 0.0
  %4664 = vmatpush1.msra.mxu0 0.0
  %4665 = vmatprep.subr.mxu0 0.0
  %4666 = vmatpush1.msra.mxu0 0.0
  %4667 = vmatprep.subr.mxu0 0.0
  %4668 = vmatpush1.msra.mxu0 0.0
  %4669 = vmatprep.subr.mxu0 0.0
  %4670 = vmatpush1.msra.mxu0 0.0
  %4671 = vmatprep.mubr.f32.mxu0 0.0
  %4672 = vmatmul.mubr.f32.gmra.mrb[0].mxu0 %v4393
  %v4673 = vpop.f32.mrb[0].mxu0
  %v4674 = vadd.f32 %v4532, %v4673
  %v4675 = vpop.f32.mrb[0].mxu0
  %v4676 = vadd.f32 %v4534, %v4675
  %4677 = vdwg.mxu0
  %v4678 = vadd.f32 %v4603, %v1183
  %v4679 = vadd.f32 %v4605, %v1187
  %v4680 = vadd.f32 %v4674, %v1191
  %v4681 = vadd.f32 %v4676, %v1195
  %v4682 = vxor.u32 %v4678, 2147483648
  %v4683 = vmul.f32 %v4682, 1.442695
  %v4684 = vpow.pop %v4683
  %v4685 = vadd.f32 %v4684, 1.0
  %v4686 = vrcp.pop %v4685
  %v4687 = vmul.f32 1.0, %v4686
  %v4688 = vxor.u32 %v4679, 2147483648
  %v4689 = vmul.f32 %v4688, 1.442695
  %v4690 = vpow.pop %v4689
  %v4691 = vadd.f32 %v4690, 1.0
  %v4692 = vrcp.pop %v4691
  %v4693 = vmul.f32 1.0, %v4692
  %v4694 = vtanh.pop %v4680
  %v4695 = vxor.u32 %v4681, 2147483648
  %v4696 = vmul.f32 %v4695, 1.442695
  %v4697 = vpow.pop %v4696
  %v4698 = vadd.f32 %v4697, 1.0
  %v4699 = vrcp.pop %v4698
  %v4700 = vmul.f32 1.0, %v4699
  %v4701 = vmul.f32 %v4693, %v4305
  %v4702 = vmul.f32 %v4687, %v4694
  %v4703 = vadd.f32 %v4701, %v4702
  %v4704 = vtanh.pop %v4703
  %v4705 = vmul.f32 %v4700, %v4704
  %4706 = vmatprep.subr.mxu0 %v1147
  %4707 = vmatpush1.msra.mxu0 %v1146
  %4708 = vmatprep.subr.mxu0 %v1149
  %4709 = vmatpush1.msra.mxu0 %v1148
  %4710 = vmatprep.subr.mxu0 %v1151
  %4711 = vmatpush1.msra.mxu0 %v1150
  %4712 = vmatprep.subr.mxu0 %v1153
  %4713 = vmatpush1.msra.mxu0 %v1152
  %4714 = vmatprep.subr.mxu0 %v1155
  %4715 = vmatpush1.msra.mxu0 %v1154
  %4716 = vmatprep.subr.mxu0 %v1157
  %4717 = vmatpush1.msra.mxu0 %v1156
  %4718 = vmatprep.subr.mxu0 %v1159
  %4719 = vmatpush1.msra.mxu0 %v1158
  %4720 = vmatprep.subr.mxu0 %v1161
  %4721 = vmatpush1.msra.mxu0 %v1160
  %4722 = vmatprep.subr.mxu0 %v1163
  %4723 = vmatpush1.msra.mxu0 %v1162
  %4724 = vmatprep.subr.mxu0 %v1165
  %4725 = vmatpush1.msra.mxu0 %v1164
  %4726 = vmatprep.subr.mxu0 %v1167
  %4727 = vmatpush1.msra.mxu0 %v1166
  %4728 = vmatprep.subr.mxu0 %v1169
  %4729 = vmatpush1.msra.mxu0 %v1168
  %4730 = vmatprep.subr.mxu0 %v1171
  %4731 = vmatpush1.msra.mxu0 %v1170
  %4732 = vmatprep.subr.mxu0 %v1173
  %4733 = vmatpush1.msra.mxu0 %v1172
  %4734 = vmatprep.subr.mxu0 %v1175
  %4735 = vmatpush1.msra.mxu0 %v1174
  %4736 = vmatprep.subr.mxu0 %v1177
  %4737 = vmatpush1.msra.mxu0 %v1176
  %4738 = vmatprep.subr.mxu0 0.0
  %4739 = vmatpush1.msra.mxu0 0.0
  %4740 = vmatprep.subr.mxu0 0.0
  %4741 = vmatpush1.msra.mxu0 0.0
  %4742 = vmatprep.subr.mxu0 0.0
  %4743 = vmatpush1.msra.mxu0 0.0
  %4744 = vmatprep.subr.mxu0 0.0
  %4745 = vmatpush1.msra.mxu0 0.0
  %4746 = vmatprep.subr.mxu0 0.0
  %4747 = vmatpush1.msra.mxu0 0.0
  %4748 = vmatprep.subr.mxu0 0.0
  %4749 = vmatpush1.msra.mxu0 0.0
  %4750 = vmatprep.subr.mxu0 0.0
  %4751 = vmatpush1.msra.mxu0 0.0
  %4752 = vmatprep.subr.mxu0 0.0
  %4753 = vmatpush1.msra.mxu0 0.0
  %4754 = vmatprep.subr.mxu0 0.0
  %4755 = vmatpush1.msra.mxu0 0.0
  %4756 = vmatprep.subr.mxu0 0.0
  %4757 = vmatpush1.msra.mxu0 0.0
  %4758 = vmatprep.subr.mxu0 0.0
  %4759 = vmatpush1.msra.mxu0 0.0
  %4760 = vmatprep.subr.mxu0 0.0
  %4761 = vmatpush1.msra.mxu0 0.0
  %4762 = vmatprep.subr.mxu0 0.0
  %4763 = vmatpush1.msra.mxu0 0.0
  %4764 = vmatprep.subr.mxu0 0.0
  %4765 = vmatpush1.msra.mxu0 0.0
  %4766 = vmatprep.subr.mxu0 0.0
  %4767 = vmatpush1.msra.mxu0 0.0
  %4768 = vmatprep.subr.mxu0 0.0
  %4769 = vmatpush1.msra.mxu0 0.0
  %4770 = vmatprep.mubr.f32.mxu0 0.0
  %4771 = vmatmul.mubr.f32.gmra.mrb[0].mxu0 %v4705
  %v4772 = vpop.f32.mrb[0].mxu0
  %v4773 = vadd.f32 %v1205, %v4772
  %v4774 = vpop.f32.mrb[0].mxu0
  %v4775 = vadd.f32 %v1209, %v4774
  %4776 = vdwg.mxu0
  %v4779 = vcombine.low %v4773, %v4775
  %v4781 = vunpack.c.l.s4 1983009808
  %v4782 = vunpack.c.0.s8 %v4781
  %v4783 = vlaneseq
  %v4784 = vshrl.u32 %v4783, 7
  %v4785 = vsub.s32 %v4782, %v4784
  %v4786 = vrot.slane %v4779, %v4785
  %s4788 = scalar_lea.vmem %s11, 32
  %4789 = vst [vmem:[%s4788] sm:$0xf] %v4786
  // Predicated region
  $region46: #{forward.1} parent=0 // pred_check
    _
  $region47: #{forward.1} parent=0 // pred_check_branch
    %4791 = sbr.rel (0) target = $region49
  $region48: #{forward.1} parent=0 // pred_region
    _
  $region49: #{forward.1} parent=0 // pred_fallthru
    _
  // Predicated region
  $region50: #{forward.1} parent=0 // pred_check
    _
  $region51: #{forward.1} parent=0 // pred_check_branch
    %4793 = sbr.rel (0) target = $region53
  $region52: #{forward.1} parent=0 // pred_region
    _
  $region53: #{forward.1} parent=0 // pred_fallthru
    _

</llo_original>
